<compile_context>
chip_gen: v5e
topology: v5e:2x2
jax: 0.10.0
libtpu: 0.0.40
codegen_flags: <defaults>
</compile_context>

<pallas_src>
import functools

import jax
import jax.numpy as jnp
from jax import lax
from jax.experimental import pallas as pl
from jax.experimental.pallas import tpu as pltpu


def _c3_kernel(n_bt, shortcut, Wd, TR, halo, P, *refs):
    ER = TR + 2 * halo            # image rows per (haloed) tile
    NE = ER * Wd                  # flattened positions per haloed tile
    NC = TR * Wd                  # flattened positions per core tile
    CO = halo * Wd                # core offset inside the haloed tile

    (x_ref, w1_ref, s1_ref, t1_ref, w2_ref, s2_ref, t2_ref) = refs[:7]
    pos = 7
    bt_refs = []
    for _ in range(n_bt):
        bt_refs.append(refs[pos:pos + 6])
        pos += 6
    w3a_ref, w3b_ref, s3_ref, t3_ref = refs[pos:pos + 4]
    o_ref = refs[pos + 4]
    pad_ref = refs[pos + 5]

    r = pl.program_id(1)
    last_r = pl.num_programs(1) - 1

    def leaky(t):                                    # LeakyReLU(0.1)
        return jnp.maximum(t, 0.1 * t)

    # window of (row-padded) x for this tile
    align = NC & -NC
    x0 = pl.multiple_of(r * NC, align)
    xw = x_ref[0, pl.ds(x0, NE), :]                  # (NE, c1) bf16

    # cv1 : 1x1 conv + folded BN + LeakyReLU over the full haloed window
    y1 = leaky(jnp.dot(xw, w1_ref[...], preferred_element_type=jnp.float32)
               * s1_ref[...] + t1_ref[...])          # (NE, c_) f32

    # left/right image-border masks for the 3x3 taps (indexed by output position),
    # generated in-kernel and hoisted out of the bottleneck loop.
    col = lax.broadcasted_iota(jnp.int32, (NE, 1), 0) % Wd
    mask_l = (col >= 1).astype(jnp.float32)          # valid when dj = -1
    mask_r = (col <= Wd - 2).astype(jnp.float32)     # valid when dj = +1

    # zero only the scratch pad rows (interior rows are fully overwritten each bottleneck)
    c_ = pad_ref.shape[1]
    pad_ref[0:P, :] = jnp.zeros((P, c_), pad_ref.dtype)
    pad_ref[P + NE:2 * P + NE, :] = jnp.zeros((P, c_), pad_ref.dtype)

    m = y1
    for (wm1_ref, sm1_ref, tm1_ref, wm2_ref, sm2_ref, tm2_ref) in bt_refs:
        # bottleneck cv1 : 1x1 conv + BN + LeakyReLU
        b1 = leaky(jnp.dot(m.astype(jnp.bfloat16), wm1_ref[...],
                           preferred_element_type=jnp.float32)
                   * sm1_ref[...] + tm1_ref[...])    # (NE, c_) f32
        pad_ref[P:P + NE, :] = b1

        if halo > 0:
            # halo rows outside the image must be zero in the 3x3 input (SAME padding);
            # only the first / last row-blocks have such rows.
            @pl.when(r == 0)
            def _():
                pad_ref[P:P + CO, :] = jnp.zeros((CO, c_), pad_ref.dtype)

            @pl.when(r == last_r)
            def _():
                pad_ref[P + NE - CO:P + NE, :] = jnp.zeros((CO, c_), pad_ref.dtype)

        # bottleneck cv2 : 3x3 conv (pad=1) == 9 shifted 1x1 matmuls, grouped by column
        # shift dj so each border mask is applied once per group, after the matmul.
        groups = []
        for dj in (-1, 0, 1):
            g = None
            for di in (-1, 0, 1):
                k = di * Wd + dj
                sh = pad_ref[P + k:P + k + NE, :]    # shifted view, zero-padded top/bottom
                d = jnp.dot(sh.astype(jnp.bfloat16), wm2_ref[(di + 1) * 3 + (dj + 1)],
                            preferred_element_type=jnp.float32)
                g = d if g is None else g + d        # acc seeded by the first dot
            groups.append(g)
        acc = groups[1] + mask_l * groups[0] + mask_r * groups[2]
        b2 = leaky(acc * sm2_ref[...] + tm2_ref[...])
        m = m + b2 if shortcut else b2

    m_core = m[CO:CO + NC, :].astype(jnp.bfloat16)   # (NC, c_) bf16

    # cv2 : computed late, only over the core rows (shorter live range, smaller matmul)
    xc = x_ref[0, pl.ds(x0 + CO, NC), :]             # (NC, c1) bf16
    y2 = leaky(jnp.dot(xc, w2_ref[...], preferred_element_type=jnp.float32)
               * s2_ref[...] + t2_ref[...]).astype(jnp.bfloat16)

    # cv3 on cat(m, y2) without materializing the concat: W3 split by input-channel halves
    pre3 = (jnp.dot(m_core, w3a_ref[...], preferred_element_type=jnp.float32)
            + jnp.dot(y2, w3b_ref[...], preferred_element_type=jnp.float32))
    o_ref[0] = leaky(pre3 * s3_ref[...] + t3_ref[...]).astype(o_ref.dtype)


def _full_spec(a):
    zeros = (0,) * a.ndim
    return pl.BlockSpec(a.shape, lambda b, r, _z=zeros: _z)


def _pick_row_tile(H, Wd, c_, n_bt):
    """Largest divisor of H whose tile footprint fits a v7x-friendly VMEM budget."""
    budget = 24 << 20                      # resident f32 intermediates per tile (approx)
    pick = H
    for d in sorted((d for d in range(1, H + 1) if H % d == 0), reverse=True):
        if d != H and (d < n_bt or H < d + 2 * n_bt):
            continue                       # haloed tile must fit inside the image
        pick = d
        er = d if d == H else d + 2 * n_bt
        if er * Wd * c_ * 4 * 6 <= budget:
            break
    return pick


def c3_forward(x_nchw, params, shortcut=True, eps=1e-5, row_tile=None):
    B, c1, H, Wd = x_nchw.shape
    c_ = params["w_cv1"].shape[0]
    c2 = params["w_cv3"].shape[0]
    n_bt = len(params["bottlenecks"])

    # ---- spatial (image-row) tiling --------------------------------------------------
    TR = _pick_row_tile(H, Wd, c_, n_bt) if row_tile is None else int(row_tile)
    assert H % TR == 0, "row_tile must divide H"
    R = H // TR
    halo = n_bt if R > 1 else 0
    if R > 1:
        assert TR >= halo and H >= TR + 2 * halo, "row tile too small for the 3x3 halo"
    ER = TR + 2 * halo
    NE = ER * Wd
    NC = TR * Wd
    N = H * Wd
    P = ((Wd + 1 + 7) // 8) * 8            # zero-pad rows (flattened) each side of scratch

    # ---- NCHW -> channels-last flattened spatial, zero-row-padded for the halo --------
    x = x_nchw.transpose(0, 2, 3, 1)                       # (B, H, Wd, c1)
    if halo > 0:
        zrow = jnp.zeros((B, halo, Wd, c1), x.dtype)
        x = jnp.concatenate([zrow, x, zrow], axis=1)       # (B, H + 2*halo, Wd, c1)
    Hp = H + 2 * halo
    x = x.reshape(B, Hp * Wd, c1).astype(jnp.bfloat16)

    # ---- fold eval-mode BatchNorm into per-channel scale/shift ------------------------
    def fold(p):
        g, beta, mean, var = p
        s = g / jnp.sqrt(var + eps)
        return (s[None, :].astype(jnp.float32),
                (beta - mean * s)[None, :].astype(jnp.float32))

    s1, t1 = fold(params["bn_cv1"])
    s2, t2 = fold(params["bn_cv2"])
    s3, t3 = fold(params["bn_cv3"])

    bf = lambda a: a.astype(jnp.bfloat16)

    args = [x,
            bf(params["w_cv1"].T), s1, t1,
            bf(params["w_cv2"].T), s2, t2]
    for bp in params["bottlenecks"]:
        sm1, tm1 = fold(bp["bn1"])
        sm2, tm2 = fold(bp["bn2"])
        w3x3 = bf(bp["w2"].transpose(2, 3, 1, 0).reshape(9, c_, c_))   # (tap, cin, cout)
        args += [bf(bp["w1"].T), sm1, tm1, w3x3, sm2, tm2]
    w3t = params["w_cv3"].T                                            # (2c_, c2)
    args += [bf(w3t[:c_]), bf(w3t[c_:]), s3, t3]

    in_specs = [pl.BlockSpec((1, Hp * Wd, c1), lambda b, r: (b, 0, 0))]
    in_specs += [_full_spec(a) for a in args[1:]]

    # ---- VMEM budget (inputs x2 buffers + weights + scratch + live intermediates) -----
    weight_bytes = sum(int(a.size) * a.dtype.itemsize for a in args[1:])
    x_block = Hp * Wd * c1 * 2
    out_block = NC * c2 * 4
    scratch_bytes = (2 * P + NE) * c_ * 4
    live_bytes = NE * c_ * 4 * 8 + NC * (c_ + 2 * c2) * 4
    est = 2 * (x_block + out_block + weight_bytes) + scratch_bytes + live_bytes
    vmem_limit = int(min(max(32 << 20, int(est * 1.5)), 100 << 20))

    out = pl.pallas_call(
        functools.partial(_c3_kernel, n_bt, shortcut, Wd, TR, halo, P),
        out_shape=jax.ShapeDtypeStruct((B, N, c2), jnp.float32),
        grid_spec=pltpu.PrefetchScalarGridSpec(
            num_scalar_prefetch=0,
            grid=(B, R),
            in_specs=in_specs,
            out_specs=pl.BlockSpec((1, NC, c2), lambda b, r: (b, r, 0)),
            scratch_shapes=[pltpu.VMEM((2 * P + NE, c_), jnp.float32)],
        ),
        compiler_params=pltpu.CompilerParams(
            dimension_semantics=("parallel", "parallel"),
            vmem_limit_bytes=vmem_limit),
    )(*args)

    # (B, N, c2) -> NCHW
    return out.transpose(0, 2, 1).reshape(B, c2, H, Wd)


def init_params(key, c1, c2, n=1, e=0.5):
    c_ = int(c2 * e)
    ks = iter(jax.random.split(key, 64))

    def rnd(shape, scale=0.1):
        return scale * jax.random.normal(next(ks), shape, dtype=jnp.float32)

    def bn_p(c):
        # (gamma, beta, running_mean, running_var) -- eval-mode BatchNorm
        return (1.0 + rnd((c,)), rnd((c,)),
                jnp.zeros((c,), jnp.float32), jnp.ones((c,), jnp.float32))

    return dict(
        w_cv1=rnd((c_, c1)), bn_cv1=bn_p(c_),
        w_cv2=rnd((c_, c1)), bn_cv2=bn_p(c_),
        w_cv3=rnd((c2, 2 * c_)), bn_cv3=bn_p(c2),
        bottlenecks=[dict(w1=rnd((c_, c_)), bn1=bn_p(c_),
                          w2=rnd((c_, c_, 3, 3)), bn2=bn_p(c_))
                     for _ in range(n)],
    )


def reference(x, params, shortcut=True, eps=1e-5):
    """Pure-JAX NCHW mirror of the PyTorch C3 forward (eval-mode BN).  Conv inputs are cast
    to bf16 with f32 accumulation so the comparison matches the kernel's MXU precision."""
    bf16 = jnp.bfloat16

    def bn(y, p):
        g, beta, mean, var = p
        return (g[:, None, None] * (y - mean[:, None, None])
                / jnp.sqrt(var[:, None, None] + eps) + beta[:, None, None])

    def leaky(t):
        return jnp.where(t >= 0, t, 0.1 * t)

    def conv1x1(y, w):
        return jnp.einsum("bchw,oc->bohw", y.astype(bf16), w.astype(bf16),
                          preferred_element_type=jnp.float32)

    def conv3x3(y, w):
        return lax.conv_general_dilated(
            y.astype(bf16), w.astype(bf16), window_strides=(1, 1),
            padding=((1, 1), (1, 1)),
            dimension_numbers=("NCHW", "OIHW", "NCHW"),
            preferred_element_type=jnp.float32)

    y1 = leaky(bn(conv1x1(x, params["w_cv1"]), params["bn_cv1"]))
    y2 = leaky(bn(conv1x1(x, params["w_cv2"]), params["bn_cv2"]))
    m = y1
    for bp in params["bottlenecks"]:
        b1 = leaky(bn(conv1x1(m, bp["w1"]), bp["bn1"]))
        b2 = leaky(bn(conv3x3(b1, bp["w2"]), bp["bn2"]))
        m = m + b2 if shortcut else b2
    cat = jnp.concatenate([m, y2], axis=1)
    return leaky(bn(conv1x1(cat, params["w_cv3"]), params["bn_cv3"]))


if __name__ == "__main__":
    key = jax.random.PRNGKey(0)
    B, c1, c2 = 2, 64, 64
    H, Wd = 16, 16

    kx, kp = jax.random.split(key)
    x = jax.random.normal(kx, (B, c1, H, Wd), dtype=jnp.float32)

    configs = [
        dict(n=1, shortcut=True, row_tile=8),      # tiled path: R=2, halo=1
        dict(n=2, shortcut=True, row_tile=4),      # deeper chain: R=4, halo=2
        dict(n=1, shortcut=False, row_tile=None),  # auto tile: single block, no halo
    ]
    for i, cfg in enumerate(configs):
        params = init_params(jax.random.fold_in(kp, i), c1, c2, n=cfg["n"], e=0.5)
        out = jax.block_until_ready(
            c3_forward(x, params, shortcut=cfg["shortcut"], row_tile=cfg["row_tile"]))
        ref = jax.block_until_ready(reference(x, params, shortcut=cfg["shortcut"]))
        assert out.shape == ref.shape == (B, c2, H, Wd)
        err = float(jnp.max(jnp.abs(out - ref)))
        assert jnp.allclose(out, ref, rtol=2e-3, atol=2e-3), f"cfg {i}: max abs err {err}"
    print("KERNEL_OK")
</pallas_src>

<mosaic_0001>
module attributes {stable_mosaic.version = 11 : i64} {
  func.func @_c3_kernel(%arg0: i32, %arg1: i32, %arg2: memref<1x288x64xbf16, #tpu.memory_space<vmem>>, %arg3: memref<64x32xbf16, #tpu.memory_space<vmem>>, %arg4: memref<1x32xf32, #tpu.memory_space<vmem>>, %arg5: memref<1x32xf32, #tpu.memory_space<vmem>>, %arg6: memref<64x32xbf16, #tpu.memory_space<vmem>>, %arg7: memref<1x32xf32, #tpu.memory_space<vmem>>, %arg8: memref<1x32xf32, #tpu.memory_space<vmem>>, %arg9: memref<32x32xbf16, #tpu.memory_space<vmem>>, %arg10: memref<1x32xf32, #tpu.memory_space<vmem>>, %arg11: memref<1x32xf32, #tpu.memory_space<vmem>>, %arg12: memref<9x32x32xbf16, #tpu.memory_space<vmem>>, %arg13: memref<1x32xf32, #tpu.memory_space<vmem>>, %arg14: memref<1x32xf32, #tpu.memory_space<vmem>>, %arg15: memref<32x64xbf16, #tpu.memory_space<vmem>>, %arg16: memref<32x64xbf16, #tpu.memory_space<vmem>>, %arg17: memref<1x64xf32, #tpu.memory_space<vmem>>, %arg18: memref<1x64xf32, #tpu.memory_space<vmem>>, %arg19: memref<1x128x64xf32, #tpu.memory_space<vmem>>, %arg20: memref<208x32xf32, #tpu.memory_space<vmem>>) attributes {dimension_semantics = [#tpu.dimension_semantics<parallel>, #tpu.dimension_semantics<parallel>], iteration_bounds = array<i64: 2, 2>, scalar_prefetch = 0 : i64, scratch_operands = 1 : i64, tpu.core_type = #tpu.core_type<tc>, window_params = [{transform_indices = @transform_0, window_bounds = array<i64: 1, 288, 64>}, {pipeline_mode = #tpu.pipeline_mode<synchronous>, transform_indices = @transform_1, window_bounds = array<i64: 64, 32>}, {pipeline_mode = #tpu.pipeline_mode<synchronous>, transform_indices = @transform_2, window_bounds = array<i64: 1, 32>}, {pipeline_mode = #tpu.pipeline_mode<synchronous>, transform_indices = @transform_3, window_bounds = array<i64: 1, 32>}, {pipeline_mode = #tpu.pipeline_mode<synchronous>, transform_indices = @transform_4, window_bounds = array<i64: 64, 32>}, {pipeline_mode = #tpu.pipeline_mode<synchronous>, transform_indices = @transform_5, window_bounds = array<i64: 1, 32>}, {pipeline_mode = #tpu.pipeline_mode<synchronous>, transform_indices = @transform_6, window_bounds = array<i64: 1, 32>}, {pipeline_mode = #tpu.pipeline_mode<synchronous>, transform_indices = @transform_7, window_bounds = array<i64: 32, 32>}, {pipeline_mode = #tpu.pipeline_mode<synchronous>, transform_indices = @transform_8, window_bounds = array<i64: 1, 32>}, {pipeline_mode = #tpu.pipeline_mode<synchronous>, transform_indices = @transform_9, window_bounds = array<i64: 1, 32>}, {pipeline_mode = #tpu.pipeline_mode<synchronous>, transform_indices = @transform_10, window_bounds = array<i64: 9, 32, 32>}, {pipeline_mode = #tpu.pipeline_mode<synchronous>, transform_indices = @transform_11, window_bounds = array<i64: 1, 32>}, {pipeline_mode = #tpu.pipeline_mode<synchronous>, transform_indices = @transform_12, window_bounds = array<i64: 1, 32>}, {pipeline_mode = #tpu.pipeline_mode<synchronous>, transform_indices = @transform_13, window_bounds = array<i64: 32, 64>}, {pipeline_mode = #tpu.pipeline_mode<synchronous>, transform_indices = @transform_14, window_bounds = array<i64: 32, 64>}, {pipeline_mode = #tpu.pipeline_mode<synchronous>, transform_indices = @transform_15, window_bounds = array<i64: 1, 64>}, {pipeline_mode = #tpu.pipeline_mode<synchronous>, transform_indices = @transform_16, window_bounds = array<i64: 1, 64>}, {transform_indices = @transform_17, window_bounds = array<i64: 1, 128, 64>}]} {
    %c128_i32 = arith.constant 128 : i32
    %0 = arith.muli %arg1, %c128_i32 : i32
    %1 = tpu.assume_multiple %0, 128 : i32
    %c0 = arith.constant 0 : index
    %2 = arith.index_cast %1 : i32 to index
    %c0_0 = arith.constant 0 : index
    %3 = vector.load %arg2[%c0, %2, %c0_0] : memref<1x288x64xbf16, #tpu.memory_space<vmem>>, vector<1x160x64xbf16>
    %4 = vector.shape_cast %3 : vector<1x160x64xbf16> to vector<160x64xbf16>
    %c0_1 = arith.constant 0 : index
    %c0_2 = arith.constant 0 : index
    %5 = vector.load %arg3[%c0_1, %c0_2] : memref<64x32xbf16, #tpu.memory_space<vmem>>, vector<64x32xbf16>
    %cst = arith.constant dense<0.000000e+00> : vector<160x32xf32>
    %6 = tpu.matmul %4, %5, %cst {dimension_numbers = #tpu.dot_dimension_numbers<[1], [0], [0], [1], [0, 0, 1, 1], [], []>} : vector<160x64xbf16>, vector<64x32xbf16>, vector<160x32xf32> -> vector<160x32xf32>
    %c0_3 = arith.constant 0 : index
    %c0_4 = arith.constant 0 : index
    %7 = vector.load %arg4[%c0_3, %c0_4] : memref<1x32xf32, #tpu.memory_space<vmem>>, vector<1x32xf32>
    %8 = vector.broadcast %7 : vector<1x32xf32> to vector<160x32xf32>
    %9 = arith.mulf %6, %8 : vector<160x32xf32>
    %c0_5 = arith.constant 0 : index
    %c0_6 = arith.constant 0 : index
    %10 = vector.load %arg5[%c0_5, %c0_6] : memref<1x32xf32, #tpu.memory_space<vmem>>, vector<1x32xf32>
    %11 = vector.broadcast %10 : vector<1x32xf32> to vector<160x32xf32>
    %12 = arith.addf %9, %11 : vector<160x32xf32>
    %cst_7 = arith.constant 1.000000e-01 : f32
    %13 = vector.broadcast %cst_7 : f32 to vector<160x32xf32>
    %14 = arith.mulf %13, %12 : vector<160x32xf32>
    %15 = arith.maximumf %12, %14 : vector<160x32xf32>
    %16 = tpu.iota {dimensions = array<i32: 0>} : vector<160x1xi32>
    %c16_i32 = arith.constant 16 : i32
    %c0_i32 = arith.constant 0 : i32
    %17 = arith.cmpi eq, %c16_i32, %c0_i32 : i32
    %c1_i32 = arith.constant 1 : i32
    %18 = arith.select %17, %c1_i32, %c16_i32 : i32
    %19 = vector.broadcast %18 : i32 to vector<160x1xi32>
    %20 = arith.remsi %16, %19 : vector<160x1xi32>
    %c0_i32_8 = arith.constant 0 : i32
    %21 = vector.broadcast %c0_i32_8 : i32 to vector<160x1xi32>
    %22 = arith.cmpi ne, %20, %21 : vector<160x1xi32>
    %c0_i32_9 = arith.constant 0 : i32
    %23 = vector.broadcast %c0_i32_9 : i32 to vector<160x1xi32>
    %24 = arith.cmpi slt, %20, %23 : vector<160x1xi32>
    %c0_i32_10 = arith.constant 0 : i32
    %25 = arith.cmpi slt, %18, %c0_i32_10 : i32
    %26 = vector.broadcast %25 : i1 to vector<160x1xi1>
    %27 = vector.broadcast %26 : vector<160x1xi1> to vector<160x1xi1>
    %28 = arith.xori %24, %27 : vector<160x1xi1>
    %29 = arith.andi %28, %22 : vector<160x1xi1>
    %30 = vector.broadcast %18 : i32 to vector<160x1xi32>
    %31 = arith.addi %20, %30 : vector<160x1xi32>
    %32 = arith.select %29, %31, %20 : vector<160x1xi1>, vector<160x1xi32>
    %c1_i32_11 = arith.constant 1 : i32
    %33 = vector.broadcast %c1_i32_11 : i32 to vector<160x1xi32>
    %34 = arith.cmpi sge, %32, %33 : vector<160x1xi32>
    %35 = arith.extui %34 : vector<160x1xi1> to vector<160x1xi32>
    %36 = arith.sitofp %35 : vector<160x1xi32> to vector<160x1xf32>
    %c14_i32 = arith.constant 14 : i32
    %37 = vector.broadcast %c14_i32 : i32 to vector<160x1xi32>
    %38 = arith.cmpi sle, %32, %37 : vector<160x1xi32>
    %39 = arith.extui %38 : vector<160x1xi1> to vector<160x1xi32>
    %40 = arith.sitofp %39 : vector<160x1xi32> to vector<160x1xf32>
    %cst_12 = arith.constant 0.000000e+00 : f32
    %41 = vector.broadcast %cst_12 : f32 to vector<24x32xf32>
    %c0_13 = arith.constant 0 : index
    %c0_14 = arith.constant 0 : index
    %42 = vector.load %arg20[%c0_13, %c0_14] : memref<208x32xf32, #tpu.memory_space<vmem>>, vector<24x32xf32>
    tpu.vector_store %arg20[%c0_13, %c0_14], %41 {strides = array<i32>} : memref<208x32xf32, #tpu.memory_space<vmem>>, vector<24x32xf32>,
    %cst_15 = arith.constant 0.000000e+00 : f32
    %43 = vector.broadcast %cst_15 : f32 to vector<24x32xf32>
    %c184 = arith.constant 184 : index
    %c0_16 = arith.constant 0 : index
    %44 = vector.load %arg20[%c184, %c0_16] : memref<208x32xf32, #tpu.memory_space<vmem>>, vector<24x32xf32>
    tpu.vector_store %arg20[%c184, %c0_16], %43 {strides = array<i32>} : memref<208x32xf32, #tpu.memory_space<vmem>>, vector<24x32xf32>,
    %45 = arith.truncf %15 : vector<160x32xf32> to vector<160x32xbf16>
    %c0_17 = arith.constant 0 : index
    %c0_18 = arith.constant 0 : index
    %46 = vector.load %arg9[%c0_17, %c0_18] : memref<32x32xbf16, #tpu.memory_space<vmem>>, vector<32x32xbf16>
    %cst_19 = arith.constant dense<0.000000e+00> : vector<160x32xf32>
    %47 = tpu.matmul %45, %46, %cst_19 {dimension_numbers = #tpu.dot_dimension_numbers<[1], [0], [0], [1], [0, 0, 1, 1], [], []>} : vector<160x32xbf16>, vector<32x32xbf16>, vector<160x32xf32> -> vector<160x32xf32>
    %c0_20 = arith.constant 0 : index
    %c0_21 = arith.constant 0 : index
    %48 = vector.load %arg10[%c0_20, %c0_21] : memref<1x32xf32, #tpu.memory_space<vmem>>, vector<1x32xf32>
    %49 = vector.broadcast %48 : vector<1x32xf32> to vector<160x32xf32>
    %50 = arith.mulf %47, %49 : vector<160x32xf32>
    %c0_22 = arith.constant 0 : index
    %c0_23 = arith.constant 0 : index
    %51 = vector.load %arg11[%c0_22, %c0_23] : memref<1x32xf32, #tpu.memory_space<vmem>>, vector<1x32xf32>
    %52 = vector.broadcast %51 : vector<1x32xf32> to vector<160x32xf32>
    %53 = arith.addf %50, %52 : vector<160x32xf32>
    %cst_24 = arith.constant 1.000000e-01 : f32
    %54 = vector.broadcast %cst_24 : f32 to vector<160x32xf32>
    %55 = arith.mulf %54, %53 : vector<160x32xf32>
    %56 = arith.maximumf %53, %55 : vector<160x32xf32>
    %c24 = arith.constant 24 : index
    %c0_25 = arith.constant 0 : index
    %57 = vector.load %arg20[%c24, %c0_25] : memref<208x32xf32, #tpu.memory_space<vmem>>, vector<160x32xf32>
    tpu.vector_store %arg20[%c24, %c0_25], %56 {strides = array<i32>} : memref<208x32xf32, #tpu.memory_space<vmem>>, vector<160x32xf32>,
    %c0_i32_26 = arith.constant 0 : i32
    %58 = arith.cmpi eq, %arg1, %c0_i32_26 : i32
    %59 = arith.extui %58 : i1 to i32
    %c0_i32_27 = arith.constant 0 : i32
    %60 = arith.cmpi ne, %59, %c0_i32_27 : i32
    scf.if %60 {
      %cst_100 = arith.constant 0.000000e+00 : f32
      %166 = vector.broadcast %cst_100 : f32 to vector<16x32xf32>
      %c24_101 = arith.constant 24 : index
      %c0_102 = arith.constant 0 : index
      %167 = vector.load %arg20[%c24_101, %c0_102] : memref<208x32xf32, #tpu.memory_space<vmem>>, vector<16x32xf32>
      tpu.vector_store %arg20[%c24_101, %c0_102], %166 {strides = array<i32>} : memref<208x32xf32, #tpu.memory_space<vmem>>, vector<16x32xf32>,
    } else {
    }
    %c1_i32_28 = arith.constant 1 : i32
    %61 = arith.cmpi eq, %arg1, %c1_i32_28 : i32
    %62 = arith.extui %61 : i1 to i32
    %c0_i32_29 = arith.constant 0 : i32
    %63 = arith.cmpi ne, %62, %c0_i32_29 : i32
    scf.if %63 {
      %cst_100 = arith.constant 0.000000e+00 : f32
      %166 = vector.broadcast %cst_100 : f32 to vector<16x32xf32>
      %c168 = arith.constant 168 : index
      %c0_101 = arith.constant 0 : index
      %167 = vector.load %arg20[%c168, %c0_101] : memref<208x32xf32, #tpu.memory_space<vmem>>, vector<16x32xf32>
      tpu.vector_store %arg20[%c168, %c0_101], %166 {strides = array<i32>} : memref<208x32xf32, #tpu.memory_space<vmem>>, vector<16x32xf32>,
    } else {
    }
    %c7 = arith.constant 7 : index
    %c0_30 = arith.constant 0 : index
    %64 = vector.load %arg20[%c7, %c0_30] : memref<208x32xf32, #tpu.memory_space<vmem>>, vector<160x32xf32>
    %65 = arith.truncf %64 : vector<160x32xf32> to vector<160x32xbf16>
    %c0_31 = arith.constant 0 : index
    %c0_32 = arith.constant 0 : index
    %c0_33 = arith.constant 0 : index
    %66 = vector.load %arg12[%c0_31, %c0_32, %c0_33] : memref<9x32x32xbf16, #tpu.memory_space<vmem>>, vector<1x32x32xbf16>
    %67 = vector.shape_cast %66 : vector<1x32x32xbf16> to vector<32x32xbf16>
    %cst_34 = arith.constant dense<0.000000e+00> : vector<160x32xf32>
    %68 = tpu.matmul %65, %67, %cst_34 {dimension_numbers = #tpu.dot_dimension_numbers<[1], [0], [0], [1], [0, 0, 1, 1], [], []>} : vector<160x32xbf16>, vector<32x32xbf16>, vector<160x32xf32> -> vector<160x32xf32>
    %c23 = arith.constant 23 : index
    %c0_35 = arith.constant 0 : index
    %69 = vector.load %arg20[%c23, %c0_35] : memref<208x32xf32, #tpu.memory_space<vmem>>, vector<160x32xf32>
    %70 = arith.truncf %69 : vector<160x32xf32> to vector<160x32xbf16>
    %c3 = arith.constant 3 : index
    %c0_36 = arith.constant 0 : index
    %c0_37 = arith.constant 0 : index
    %71 = vector.load %arg12[%c3, %c0_36, %c0_37] : memref<9x32x32xbf16, #tpu.memory_space<vmem>>, vector<1x32x32xbf16>
    %72 = vector.shape_cast %71 : vector<1x32x32xbf16> to vector<32x32xbf16>
    %cst_38 = arith.constant dense<0.000000e+00> : vector<160x32xf32>
    %73 = tpu.matmul %70, %72, %cst_38 {dimension_numbers = #tpu.dot_dimension_numbers<[1], [0], [0], [1], [0, 0, 1, 1], [], []>} : vector<160x32xbf16>, vector<32x32xbf16>, vector<160x32xf32> -> vector<160x32xf32>
    %74 = arith.addf %68, %73 : vector<160x32xf32>
    %c39 = arith.constant 39 : index
    %c0_39 = arith.constant 0 : index
    %75 = vector.load %arg20[%c39, %c0_39] : memref<208x32xf32, #tpu.memory_space<vmem>>, vector<160x32xf32>
    %76 = arith.truncf %75 : vector<160x32xf32> to vector<160x32xbf16>
    %c6 = arith.constant 6 : index
    %c0_40 = arith.constant 0 : index
    %c0_41 = arith.constant 0 : index
    %77 = vector.load %arg12[%c6, %c0_40, %c0_41] : memref<9x32x32xbf16, #tpu.memory_space<vmem>>, vector<1x32x32xbf16>
    %78 = vector.shape_cast %77 : vector<1x32x32xbf16> to vector<32x32xbf16>
    %cst_42 = arith.constant dense<0.000000e+00> : vector<160x32xf32>
    %79 = tpu.matmul %76, %78, %cst_42 {dimension_numbers = #tpu.dot_dimension_numbers<[1], [0], [0], [1], [0, 0, 1, 1], [], []>} : vector<160x32xbf16>, vector<32x32xbf16>, vector<160x32xf32> -> vector<160x32xf32>
    %80 = arith.addf %74, %79 : vector<160x32xf32>
    %c8 = arith.constant 8 : index
    %c0_43 = arith.constant 0 : index
    %81 = vector.load %arg20[%c8, %c0_43] : memref<208x32xf32, #tpu.memory_space<vmem>>, vector<160x32xf32>
    %82 = arith.truncf %81 : vector<160x32xf32> to vector<160x32xbf16>
    %c1 = arith.constant 1 : index
    %c0_44 = arith.constant 0 : index
    %c0_45 = arith.constant 0 : index
    %83 = vector.load %arg12[%c1, %c0_44, %c0_45] : memref<9x32x32xbf16, #tpu.memory_space<vmem>>, vector<1x32x32xbf16>
    %84 = vector.shape_cast %83 : vector<1x32x32xbf16> to vector<32x32xbf16>
    %cst_46 = arith.constant dense<0.000000e+00> : vector<160x32xf32>
    %85 = tpu.matmul %82, %84, %cst_46 {dimension_numbers = #tpu.dot_dimension_numbers<[1], [0], [0], [1], [0, 0, 1, 1], [], []>} : vector<160x32xbf16>, vector<32x32xbf16>, vector<160x32xf32> -> vector<160x32xf32>
    %c24_47 = arith.constant 24 : index
    %c0_48 = arith.constant 0 : index
    %86 = vector.load %arg20[%c24_47, %c0_48] : memref<208x32xf32, #tpu.memory_space<vmem>>, vector<160x32xf32>
    %87 = arith.truncf %86 : vector<160x32xf32> to vector<160x32xbf16>
    %c4 = arith.constant 4 : index
    %c0_49 = arith.constant 0 : index
    %c0_50 = arith.constant 0 : index
    %88 = vector.load %arg12[%c4, %c0_49, %c0_50] : memref<9x32x32xbf16, #tpu.memory_space<vmem>>, vector<1x32x32xbf16>
    %89 = vector.shape_cast %88 : vector<1x32x32xbf16> to vector<32x32xbf16>
    %cst_51 = arith.constant dense<0.000000e+00> : vector<160x32xf32>
    %90 = tpu.matmul %87, %89, %cst_51 {dimension_numbers = #tpu.dot_dimension_numbers<[1], [0], [0], [1], [0, 0, 1, 1], [], []>} : vector<160x32xbf16>, vector<32x32xbf16>, vector<160x32xf32> -> vector<160x32xf32>
    %91 = arith.addf %85, %90 : vector<160x32xf32>
    %c40 = arith.constant 40 : index
    %c0_52 = arith.constant 0 : index
    %92 = vector.load %arg20[%c40, %c0_52] : memref<208x32xf32, #tpu.memory_space<vmem>>, vector<160x32xf32>
    %93 = arith.truncf %92 : vector<160x32xf32> to vector<160x32xbf16>
    %c7_53 = arith.constant 7 : index
    %c0_54 = arith.constant 0 : index
    %c0_55 = arith.constant 0 : index
    %94 = vector.load %arg12[%c7_53, %c0_54, %c0_55] : memref<9x32x32xbf16, #tpu.memory_space<vmem>>, vector<1x32x32xbf16>
    %95 = vector.shape_cast %94 : vector<1x32x32xbf16> to vector<32x32xbf16>
    %cst_56 = arith.constant dense<0.000000e+00> : vector<160x32xf32>
    %96 = tpu.matmul %93, %95, %cst_56 {dimension_numbers = #tpu.dot_dimension_numbers<[1], [0], [0], [1], [0, 0, 1, 1], [], []>} : vector<160x32xbf16>, vector<32x32xbf16>, vector<160x32xf32> -> vector<160x32xf32>
    %97 = arith.addf %91, %96 : vector<160x32xf32>
    %c9 = arith.constant 9 : index
    %c0_57 = arith.constant 0 : index
    %98 = vector.load %arg20[%c9, %c0_57] : memref<208x32xf32, #tpu.memory_space<vmem>>, vector<160x32xf32>
    %99 = arith.truncf %98 : vector<160x32xf32> to vector<160x32xbf16>
    %c2 = arith.constant 2 : index
    %c0_58 = arith.constant 0 : index
    %c0_59 = arith.constant 0 : index
    %100 = vector.load %arg12[%c2, %c0_58, %c0_59] : memref<9x32x32xbf16, #tpu.memory_space<vmem>>, vector<1x32x32xbf16>
    %101 = vector.shape_cast %100 : vector<1x32x32xbf16> to vector<32x32xbf16>
    %cst_60 = arith.constant dense<0.000000e+00> : vector<160x32xf32>
    %102 = tpu.matmul %99, %101, %cst_60 {dimension_numbers = #tpu.dot_dimension_numbers<[1], [0], [0], [1], [0, 0, 1, 1], [], []>} : vector<160x32xbf16>, vector<32x32xbf16>, vector<160x32xf32> -> vector<160x32xf32>
    %c25 = arith.constant 25 : index
    %c0_61 = arith.constant 0 : index
    %103 = vector.load %arg20[%c25, %c0_61] : memref<208x32xf32, #tpu.memory_space<vmem>>, vector<160x32xf32>
    %104 = arith.truncf %103 : vector<160x32xf32> to vector<160x32xbf16>
    %c5 = arith.constant 5 : index
    %c0_62 = arith.constant 0 : index
    %c0_63 = arith.constant 0 : index
    %105 = vector.load %arg12[%c5, %c0_62, %c0_63] : memref<9x32x32xbf16, #tpu.memory_space<vmem>>, vector<1x32x32xbf16>
    %106 = vector.shape_cast %105 : vector<1x32x32xbf16> to vector<32x32xbf16>
    %cst_64 = arith.constant dense<0.000000e+00> : vector<160x32xf32>
    %107 = tpu.matmul %104, %106, %cst_64 {dimension_numbers = #tpu.dot_dimension_numbers<[1], [0], [0], [1], [0, 0, 1, 1], [], []>} : vector<160x32xbf16>, vector<32x32xbf16>, vector<160x32xf32> -> vector<160x32xf32>
    %108 = arith.addf %102, %107 : vector<160x32xf32>
    %c41 = arith.constant 41 : index
    %c0_65 = arith.constant 0 : index
    %109 = vector.load %arg20[%c41, %c0_65] : memref<208x32xf32, #tpu.memory_space<vmem>>, vector<160x32xf32>
    %110 = arith.truncf %109 : vector<160x32xf32> to vector<160x32xbf16>
    %c8_66 = arith.constant 8 : index
    %c0_67 = arith.constant 0 : index
    %c0_68 = arith.constant 0 : index
    %111 = vector.load %arg12[%c8_66, %c0_67, %c0_68] : memref<9x32x32xbf16, #tpu.memory_space<vmem>>, vector<1x32x32xbf16>
    %112 = vector.shape_cast %111 : vector<1x32x32xbf16> to vector<32x32xbf16>
    %cst_69 = arith.constant dense<0.000000e+00> : vector<160x32xf32>
    %113 = tpu.matmul %110, %112, %cst_69 {dimension_numbers = #tpu.dot_dimension_numbers<[1], [0], [0], [1], [0, 0, 1, 1], [], []>} : vector<160x32xbf16>, vector<32x32xbf16>, vector<160x32xf32> -> vector<160x32xf32>
    %114 = arith.addf %108, %113 : vector<160x32xf32>
    %115 = vector.broadcast %36 : vector<160x1xf32> to vector<160x32xf32>
    %116 = arith.mulf %115, %80 : vector<160x32xf32>
    %117 = arith.addf %97, %116 : vector<160x32xf32>
    %118 = vector.broadcast %40 : vector<160x1xf32> to vector<160x32xf32>
    %119 = arith.mulf %118, %114 : vector<160x32xf32>
    %120 = arith.addf %117, %119 : vector<160x32xf32>
    %c0_70 = arith.constant 0 : index
    %c0_71 = arith.constant 0 : index
    %121 = vector.load %arg13[%c0_70, %c0_71] : memref<1x32xf32, #tpu.memory_space<vmem>>, vector<1x32xf32>
    %122 = vector.broadcast %121 : vector<1x32xf32> to vector<160x32xf32>
    %123 = arith.mulf %120, %122 : vector<160x32xf32>
    %c0_72 = arith.constant 0 : index
    %c0_73 = arith.constant 0 : index
    %124 = vector.load %arg14[%c0_72, %c0_73] : memref<1x32xf32, #tpu.memory_space<vmem>>, vector<1x32xf32>
    %125 = vector.broadcast %124 : vector<1x32xf32> to vector<160x32xf32>
    %126 = arith.addf %123, %125 : vector<160x32xf32>
    %cst_74 = arith.constant 1.000000e-01 : f32
    %127 = vector.broadcast %cst_74 : f32 to vector<160x32xf32>
    %128 = arith.mulf %127, %126 : vector<160x32xf32>
    %129 = arith.maximumf %126, %128 : vector<160x32xf32>
    %130 = arith.addf %15, %129 : vector<160x32xf32>
    %131 = vector.extract_strided_slice %130 {offsets = [16, 0], sizes = [128, 32], strides = [1, 1]} : vector<160x32xf32> to vector<128x32xf32>
    %132 = arith.truncf %131 : vector<128x32xf32> to vector<128x32xbf16>
    %c16_i32_75 = arith.constant 16 : i32
    %133 = arith.addi %1, %c16_i32_75 : i32
    %c0_76 = arith.constant 0 : index
    %134 = arith.index_cast %133 : i32 to index
    %c0_77 = arith.constant 0 : index
    %135 = vector.load %arg2[%c0_76, %134, %c0_77] : memref<1x288x64xbf16, #tpu.memory_space<vmem>>, vector<1x128x64xbf16>
    %136 = vector.shape_cast %135 : vector<1x128x64xbf16> to vector<128x64xbf16>
    %c0_78 = arith.constant 0 : index
    %c0_79 = arith.constant 0 : index
    %137 = vector.load %arg6[%c0_78, %c0_79] : memref<64x32xbf16, #tpu.memory_space<vmem>>, vector<64x32xbf16>
    %cst_80 = arith.constant dense<0.000000e+00> : vector<128x32xf32>
    %138 = tpu.matmul %136, %137, %cst_80 {dimension_numbers = #tpu.dot_dimension_numbers<[1], [0], [0], [1], [0, 0, 1, 1], [], []>} : vector<128x64xbf16>, vector<64x32xbf16>, vector<128x32xf32> -> vector<128x32xf32>
    %c0_81 = arith.constant 0 : index
    %c0_82 = arith.constant 0 : index
    %139 = vector.load %arg7[%c0_81, %c0_82] : memref<1x32xf32, #tpu.memory_space<vmem>>, vector<1x32xf32>
    %140 = vector.broadcast %139 : vector<1x32xf32> to vector<128x32xf32>
    %141 = arith.mulf %138, %140 : vector<128x32xf32>
    %c0_83 = arith.constant 0 : index
    %c0_84 = arith.constant 0 : index
    %142 = vector.load %arg8[%c0_83, %c0_84] : memref<1x32xf32, #tpu.memory_space<vmem>>, vector<1x32xf32>
    %143 = vector.broadcast %142 : vector<1x32xf32> to vector<128x32xf32>
    %144 = arith.addf %141, %143 : vector<128x32xf32>
    %cst_85 = arith.constant 1.000000e-01 : f32
    %145 = vector.broadcast %cst_85 : f32 to vector<128x32xf32>
    %146 = arith.mulf %145, %144 : vector<128x32xf32>
    %147 = arith.maximumf %144, %146 : vector<128x32xf32>
    %148 = arith.truncf %147 : vector<128x32xf32> to vector<128x32xbf16>
    %c0_86 = arith.constant 0 : index
    %c0_87 = arith.constant 0 : index
    %149 = vector.load %arg15[%c0_86, %c0_87] : memref<32x64xbf16, #tpu.memory_space<vmem>>, vector<32x64xbf16>
    %cst_88 = arith.constant dense<0.000000e+00> : vector<128x64xf32>
    %150 = tpu.matmul %132, %149, %cst_88 {dimension_numbers = #tpu.dot_dimension_numbers<[1], [0], [0], [1], [0, 0, 1, 1], [], []>} : vector<128x32xbf16>, vector<32x64xbf16>, vector<128x64xf32> -> vector<128x64xf32>
    %c0_89 = arith.constant 0 : index
    %c0_90 = arith.constant 0 : index
    %151 = vector.load %arg16[%c0_89, %c0_90] : memref<32x64xbf16, #tpu.memory_space<vmem>>, vector<32x64xbf16>
    %cst_91 = arith.constant dense<0.000000e+00> : vector<128x64xf32>
    %152 = tpu.matmul %148, %151, %cst_91 {dimension_numbers = #tpu.dot_dimension_numbers<[1], [0], [0], [1], [0, 0, 1, 1], [], []>} : vector<128x32xbf16>, vector<32x64xbf16>, vector<128x64xf32> -> vector<128x64xf32>
    %153 = arith.addf %150, %152 : vector<128x64xf32>
    %c0_92 = arith.constant 0 : index
    %c0_93 = arith.constant 0 : index
    %154 = vector.load %arg17[%c0_92, %c0_93] : memref<1x64xf32, #tpu.memory_space<vmem>>, vector<1x64xf32>
    %155 = vector.broadcast %154 : vector<1x64xf32> to vector<128x64xf32>
    %156 = arith.mulf %153, %155 : vector<128x64xf32>
    %c0_94 = arith.constant 0 : index
    %c0_95 = arith.constant 0 : index
    %157 = vector.load %arg18[%c0_94, %c0_95] : memref<1x64xf32, #tpu.memory_space<vmem>>, vector<1x64xf32>
    %158 = vector.broadcast %157 : vector<1x64xf32> to vector<128x64xf32>
    %159 = arith.addf %156, %158 : vector<128x64xf32>
    %cst_96 = arith.constant 1.000000e-01 : f32
    %160 = vector.broadcast %cst_96 : f32 to vector<128x64xf32>
    %161 = arith.mulf %160, %159 : vector<128x64xf32>
    %162 = arith.maximumf %159, %161 : vector<128x64xf32>
    %c0_97 = arith.constant 0 : index
    %c0_98 = arith.constant 0 : index
    %c0_99 = arith.constant 0 : index
    %163 = vector.load %arg19[%c0_97, %c0_98, %c0_99] : memref<1x128x64xf32, #tpu.memory_space<vmem>>, vector<1x128x64xf32>
    %164 = vector.shape_cast %163 : vector<1x128x64xf32> to vector<128x64xf32>
    %165 = vector.shape_cast %162 : vector<128x64xf32> to vector<1x128x64xf32>
    tpu.vector_store %arg19[%c0_97, %c0_98, %c0_99], %165 {strides = array<i32>} : memref<1x128x64xf32, #tpu.memory_space<vmem>>, vector<1x128x64xf32>,
    return
  }
  func.func @transform_0(%arg0: i32, %arg1: i32) -> (i32, i32, i32) {
    %c0_i32 = arith.constant 0 : i32
    %c0_i32_0 = arith.constant 0 : i32
    %c0_i32_1 = arith.constant 0 : i32
    return %arg0, %c0_i32, %c0_i32_0 : i32, i32, i32
  }
  func.func @transform_1(%arg0: i32, %arg1: i32) -> (i32, i32) {
    %c0_i32 = arith.constant 0 : i32
    %c0_i32_0 = arith.constant 0 : i32
    %c0_i32_1 = arith.constant 0 : i32
    return %c0_i32, %c0_i32_0 : i32, i32
  }
  func.func @transform_2(%arg0: i32, %arg1: i32) -> (i32, i32) {
    %c0_i32 = arith.constant 0 : i32
    %c0_i32_0 = arith.constant 0 : i32
    %c0_i32_1 = arith.constant 0 : i32
    return %c0_i32, %c0_i32_0 : i32, i32
  }
  func.func @transform_3(%arg0: i32, %arg1: i32) -> (i32, i32) {
    %c0_i32 = arith.constant 0 : i32
    %c0_i32_0 = arith.constant 0 : i32
    %c0_i32_1 = arith.constant 0 : i32
    return %c0_i32, %c0_i32_0 : i32, i32
  }
  func.func @transform_4(%arg0: i32, %arg1: i32) -> (i32, i32) {
    %c0_i32 = arith.constant 0 : i32
    %c0_i32_0 = arith.constant 0 : i32
    %c0_i32_1 = arith.constant 0 : i32
    return %c0_i32, %c0_i32_0 : i32, i32
  }
  func.func @transform_5(%arg0: i32, %arg1: i32) -> (i32, i32) {
    %c0_i32 = arith.constant 0 : i32
    %c0_i32_0 = arith.constant 0 : i32
    %c0_i32_1 = arith.constant 0 : i32
    return %c0_i32, %c0_i32_0 : i32, i32
  }
  func.func @transform_6(%arg0: i32, %arg1: i32) -> (i32, i32) {
    %c0_i32 = arith.constant 0 : i32
    %c0_i32_0 = arith.constant 0 : i32
    %c0_i32_1 = arith.constant 0 : i32
    return %c0_i32, %c0_i32_0 : i32, i32
  }
  func.func @transform_7(%arg0: i32, %arg1: i32) -> (i32, i32) {
    %c0_i32 = arith.constant 0 : i32
    %c0_i32_0 = arith.constant 0 : i32
    %c0_i32_1 = arith.constant 0 : i32
    return %c0_i32, %c0_i32_0 : i32, i32
  }
  func.func @transform_8(%arg0: i32, %arg1: i32) -> (i32, i32) {
    %c0_i32 = arith.constant 0 : i32
    %c0_i32_0 = arith.constant 0 : i32
    %c0_i32_1 = arith.constant 0 : i32
    return %c0_i32, %c0_i32_0 : i32, i32
  }
  func.func @transform_9(%arg0: i32, %arg1: i32) -> (i32, i32) {
    %c0_i32 = arith.constant 0 : i32
    %c0_i32_0 = arith.constant 0 : i32
    %c0_i32_1 = arith.constant 0 : i32
    return %c0_i32, %c0_i32_0 : i32, i32
  }
  func.func @transform_10(%arg0: i32, %arg1: i32) -> (i32, i32, i32) {
    %c0_i32 = arith.constant 0 : i32
    %c0_i32_0 = arith.constant 0 : i32
    %c0_i32_1 = arith.constant 0 : i32
    %c0_i32_2 = arith.constant 0 : i32
    return %c0_i32, %c0_i32_0, %c0_i32_1 : i32, i32, i32
  }
  func.func @transform_11(%arg0: i32, %arg1: i32) -> (i32, i32) {
    %c0_i32 = arith.constant 0 : i32
    %c0_i32_0 = arith.constant 0 : i32
    %c0_i32_1 = arith.constant 0 : i32
    return %c0_i32, %c0_i32_0 : i32, i32
  }
  func.func @transform_12(%arg0: i32, %arg1: i32) -> (i32, i32) {
    %c0_i32 = arith.constant 0 : i32
    %c0_i32_0 = arith.constant 0 : i32
    %c0_i32_1 = arith.constant 0 : i32
    return %c0_i32, %c0_i32_0 : i32, i32
  }
  func.func @transform_13(%arg0: i32, %arg1: i32) -> (i32, i32) {
    %c0_i32 = arith.constant 0 : i32
    %c0_i32_0 = arith.constant 0 : i32
    %c0_i32_1 = arith.constant 0 : i32
    return %c0_i32, %c0_i32_0 : i32, i32
  }
  func.func @transform_14(%arg0: i32, %arg1: i32) -> (i32, i32) {
    %c0_i32 = arith.constant 0 : i32
    %c0_i32_0 = arith.constant 0 : i32
    %c0_i32_1 = arith.constant 0 : i32
    return %c0_i32, %c0_i32_0 : i32, i32
  }
  func.func @transform_15(%arg0: i32, %arg1: i32) -> (i32, i32) {
    %c0_i32 = arith.constant 0 : i32
    %c0_i32_0 = arith.constant 0 : i32
    %c0_i32_1 = arith.constant 0 : i32
    return %c0_i32, %c0_i32_0 : i32, i32
  }
  func.func @transform_16(%arg0: i32, %arg1: i32) -> (i32, i32) {
    %c0_i32 = arith.constant 0 : i32
    %c0_i32_0 = arith.constant 0 : i32
    %c0_i32_1 = arith.constant 0 : i32
    return %c0_i32, %c0_i32_0 : i32, i32
  }
  func.func @transform_17(%arg0: i32, %arg1: i32) -> (i32, i32, i32) {
    %c0_i32 = arith.constant 0 : i32
    %c0_i32_0 = arith.constant 0 : i32
    return %arg0, %arg1, %c0_i32 : i32, i32, i32
  }
}

</mosaic_0001>

<llo_original>
// kernel: tpu_custom_call.1
$region0: #{tpu_custom_call.1}
  #allocation0 [shape = 'u32[]', space=smem, size = 0x4, offset = 0x4, fixed_abs, tag = 'smem constant byte address 0x4 - core index']
  #allocation1 [shape = 'u32[72,128]{1,0:T(1,128)}', space=vmem, size = 0x9000, scoped, tag = 'internal scratch']
  #allocation2 [shape = 'f32[208,32]{1,0:T(8,128)}', space=vmem, size = 0x1a000, scoped, tag = 'scratch operand']
  %s0 = inlined_call_operand.vmem [shape: bf16[2,288,64], index: 0, kind: input, shape index: {}]
  %s1 = inlined_call_operand.vmem [shape: bf16[64,32], index: 1, kind: input, shape index: {}]
  %s2 = inlined_call_operand.vmem [shape: f32[1,32], index: 2, kind: input, shape index: {}]
  %s3 = inlined_call_operand.vmem [shape: f32[1,32], index: 3, kind: input, shape index: {}]
  %s4 = inlined_call_operand.vmem [shape: bf16[64,32], index: 4, kind: input, shape index: {}]
  %s5 = inlined_call_operand.vmem [shape: f32[1,32], index: 5, kind: input, shape index: {}]
  %s6 = inlined_call_operand.vmem [shape: f32[1,32], index: 6, kind: input, shape index: {}]
  %s7 = inlined_call_operand.vmem [shape: bf16[32,32], index: 7, kind: input, shape index: {}]
  %s8 = inlined_call_operand.vmem [shape: f32[1,32], index: 8, kind: input, shape index: {}]
  %s9 = inlined_call_operand.vmem [shape: f32[1,32], index: 9, kind: input, shape index: {}]
  %s10 = inlined_call_operand.vmem [shape: bf16[9,32,32], index: 10, kind: input, shape index: {}]
  %s11 = inlined_call_operand.vmem [shape: f32[1,32], index: 11, kind: input, shape index: {}]
  %s12 = inlined_call_operand.vmem [shape: f32[1,32], index: 12, kind: input, shape index: {}]
  %s13 = inlined_call_operand.vmem [shape: bf16[32,64], index: 13, kind: input, shape index: {}]
  %s14 = inlined_call_operand.vmem [shape: bf16[32,64], index: 14, kind: input, shape index: {}]
  %s15 = inlined_call_operand.vmem [shape: f32[1,64], index: 15, kind: input, shape index: {}]
  %s16 = inlined_call_operand.vmem [shape: f32[1,64], index: 16, kind: input, shape index: {}]
  %s17 = inlined_call_operand.vmem [shape: f32[2,256,64], index: 17, kind: output, shape index: {}]
  %s18 = sld [smem:[#allocation0]]
  $region109: #{tpu_custom_call.1} parent=0
    _
  %s20 = ssub.s32 1, %s18
  %s21 = scalar_select 0, %s20, %s18
  loop: start=0, step=1, limit=6
  $region2: #{tpu_custom_call.1} parent=0 // loop_pre_header
    _
  $region3: #{tpu_custom_call.1} parent=0 // loop_header
    %s23 = sphi 0, %s27
    %p24 = scmp.ge.s32.totalorder %s23, 6
    %s30 = sphi 0, %s42
    %s31 = sphi 0, %s38
    %s32 = sphi 0, %s30
    %s33 = sphi 0, %s31
    %s34 = sphi 0, %s32
    %s35 = sphi 0, %s33
    %s45 = sphi 0, %s47
    %s48 = sphi 0, %s45
    %s49 = sphi 0, %s48
    %s65 = sphi 0, %s49
    %s69 = sphi 0, %s69
    %s71 = sphi 0, %s69
    %s72 = sphi 0, %s71
    %s86 = sphi 0, %s72
    %s90 = sphi 0, %s90
    %s92 = sphi 0, %s90
    %s93 = sphi 0, %s92
    %s107 = sphi 0, %s93
    %s111 = sphi 0, %s111
    %s113 = sphi 0, %s111
    %s114 = sphi 0, %s113
    %s128 = sphi 0, %s114
    %s132 = sphi 0, %s132
    %s134 = sphi 0, %s132
    %s135 = sphi 0, %s134
    %s149 = sphi 0, %s135
    %s153 = sphi 0, %s153
    %s155 = sphi 0, %s153
    %s156 = sphi 0, %s155
    %s170 = sphi 0, %s156
    %s174 = sphi 0, %s174
    %s176 = sphi 0, %s174
    %s177 = sphi 0, %s176
    %s191 = sphi 0, %s177
    %s195 = sphi 0, %s195
    %s197 = sphi 0, %s195
    %s198 = sphi 0, %s197
    %s212 = sphi 0, %s198
    %s216 = sphi 0, %s216
    %s218 = sphi 0, %s216
    %s219 = sphi 0, %s218
    %s233 = sphi 0, %s219
    %s237 = sphi 0, %s237
    %s239 = sphi 0, %s237
    %s240 = sphi 0, %s239
    %s254 = sphi 0, %s240
    %s258 = sphi 0, %s258
    %s260 = sphi 0, %s258
    %s261 = sphi 0, %s260
    %s275 = sphi 0, %s261
    %s279 = sphi 0, %s279
    %s281 = sphi 0, %s279
    %s282 = sphi 0, %s281
    %s296 = sphi 0, %s282
    %s300 = sphi 0, %s300
    %s302 = sphi 0, %s300
    %s303 = sphi 0, %s302
    %s317 = sphi 0, %s303
    %s321 = sphi 0, %s321
    %s323 = sphi 0, %s321
    %s324 = sphi 0, %s323
    %s338 = sphi 0, %s324
    %s342 = sphi 0, %s342
    %s344 = sphi 0, %s342
    %s345 = sphi 0, %s344
    %s359 = sphi 0, %s345
    %s363 = sphi 0, %s363
    %s365 = sphi 0, %s363
    %s366 = sphi 0, %s365
    %s380 = sphi 0, %s366
    %s384 = sphi 0, %s384
    %s386 = sphi 0, %s384
    %s387 = sphi 0, %s386
    %s401 = sphi 0, %s387
    %s409 = sphi 0, %s411
    %s412 = sphi 0, %s409
    %s413 = sphi 0, %s412
    %s429 = sphi 0, %s413
  $region4: #{tpu_custom_call.1} parent=0 // loop_header_branch
    %26 = sbr.rel (%p24) target = $region8
  $region5: #{tpu_custom_call.1} parent=0 // loop_body
    %s28 = ssub.s32 %s23, 1
    %s29 = ssub.s32 %s23, 2
    %s36 = sadd.s32 1, %s31
    %p37 = scmp.ge.s32.totalorder %s36, 2
    %s38 = scalar_select %p37, 0, %s36
    %s39 = sadd.s32 1, %s30
    %s40 = scalar_select %p37, %s39, %s30
    %p41 = scmp.ge.s32.totalorder %s40, 2
    %s42 = scalar_select %p41, 0, %s40
    %s43 = ssub.s32 %s30, %s42
    %p44 = scmp.eq.s32.totalorder %s43, 0
    %s46 = sadd.s32 %s45, 1
    %s47 = scalar_select %p44, %s45, %s46
    %p50 = pneg %p44
    %p51 = scmp.eq.s32.totalorder %s23, 3
    %p52 = por %p50, %p51
    %p53 = scmp.ne.s32.totalorder %s45, %s48
    %p54 = scmp.eq.s32.totalorder %s23, 0
    %p55 = por %p53, %p54
    %p56 = scmp.ne.s32.totalorder %s45, %s48
    %p57 = scmp.eq.s32.totalorder %s28, 3
    %p58 = por %p56, %p57
    %p59 = scmp.ne.s32.totalorder %s48, %s49
    %p60 = scmp.eq.s32.totalorder %s28, 0
    %p61 = por %p59, %p60
    %p62 = scmp.ne.s32.totalorder %s48, %s49
    %p63 = scmp.eq.s32.totalorder %s29, 3
    %p64 = por %p62, %p63
    %p66 = scmp.ne.s32.totalorder %s49, %s65
    %p67 = scmp.eq.s32.totalorder %s29, 0
    %p68 = por %p66, %p67
    %s70 = sadd.s32 %s69, 1
    %p73 = scmp.eq.s32.totalorder %s23, 3
    %p74 = scmp.ne.s32.totalorder %s69, %s71
    %p75 = scmp.eq.s32.totalorder %s23, 0
    %p76 = por %p74, %p75
    %p77 = scmp.ne.s32.totalorder %s69, %s71
    %p78 = scmp.eq.s32.totalorder %s28, 3
    %p79 = por %p77, %p78
    %p80 = scmp.ne.s32.totalorder %s71, %s72
    %p81 = scmp.eq.s32.totalorder %s28, 0
    %p82 = por %p80, %p81
    %p83 = scmp.ne.s32.totalorder %s71, %s72
    %p84 = scmp.eq.s32.totalorder %s29, 3
    %p85 = por %p83, %p84
    %p87 = scmp.ne.s32.totalorder %s72, %s86
    %p88 = scmp.eq.s32.totalorder %s29, 0
    %p89 = por %p87, %p88
    %s91 = sadd.s32 %s90, 1
    %p94 = scmp.eq.s32.totalorder %s23, 3
    %p95 = scmp.ne.s32.totalorder %s90, %s92
    %p96 = scmp.eq.s32.totalorder %s23, 0
    %p97 = por %p95, %p96
    %p98 = scmp.ne.s32.totalorder %s90, %s92
    %p99 = scmp.eq.s32.totalorder %s28, 3
    %p100 = por %p98, %p99
    %p101 = scmp.ne.s32.totalorder %s92, %s93
    %p102 = scmp.eq.s32.totalorder %s28, 0
    %p103 = por %p101, %p102
    %p104 = scmp.ne.s32.totalorder %s92, %s93
    %p105 = scmp.eq.s32.totalorder %s29, 3
    %p106 = por %p104, %p105
    %p108 = scmp.ne.s32.totalorder %s93, %s107
    %p109 = scmp.eq.s32.totalorder %s29, 0
    %p110 = por %p108, %p109
    %s112 = sadd.s32 %s111, 1
    %p115 = scmp.eq.s32.totalorder %s23, 3
    %p116 = scmp.ne.s32.totalorder %s111, %s113
    %p117 = scmp.eq.s32.totalorder %s23, 0
    %p118 = por %p116, %p117
    %p119 = scmp.ne.s32.totalorder %s111, %s113
    %p120 = scmp.eq.s32.totalorder %s28, 3
    %p121 = por %p119, %p120
    %p122 = scmp.ne.s32.totalorder %s113, %s114
    %p123 = scmp.eq.s32.totalorder %s28, 0
    %p124 = por %p122, %p123
    %p125 = scmp.ne.s32.totalorder %s113, %s114
    %p126 = scmp.eq.s32.totalorder %s29, 3
    %p127 = por %p125, %p126
    %p129 = scmp.ne.s32.totalorder %s114, %s128
    %p130 = scmp.eq.s32.totalorder %s29, 0
    %p131 = por %p129, %p130
    %s133 = sadd.s32 %s132, 1
    %p136 = scmp.eq.s32.totalorder %s23, 3
    %p137 = scmp.ne.s32.totalorder %s132, %s134
    %p138 = scmp.eq.s32.totalorder %s23, 0
    %p139 = por %p137, %p138
    %p140 = scmp.ne.s32.totalorder %s132, %s134
    %p141 = scmp.eq.s32.totalorder %s28, 3
    %p142 = por %p140, %p141
    %p143 = scmp.ne.s32.totalorder %s134, %s135
    %p144 = scmp.eq.s32.totalorder %s28, 0
    %p145 = por %p143, %p144
    %p146 = scmp.ne.s32.totalorder %s134, %s135
    %p147 = scmp.eq.s32.totalorder %s29, 3
    %p148 = por %p146, %p147
    %p150 = scmp.ne.s32.totalorder %s135, %s149
    %p151 = scmp.eq.s32.totalorder %s29, 0
    %p152 = por %p150, %p151
    %s154 = sadd.s32 %s153, 1
    %p157 = scmp.eq.s32.totalorder %s23, 3
    %p158 = scmp.ne.s32.totalorder %s153, %s155
    %p159 = scmp.eq.s32.totalorder %s23, 0
    %p160 = por %p158, %p159
    %p161 = scmp.ne.s32.totalorder %s153, %s155
    %p162 = scmp.eq.s32.totalorder %s28, 3
    %p163 = por %p161, %p162
    %p164 = scmp.ne.s32.totalorder %s155, %s156
    %p165 = scmp.eq.s32.totalorder %s28, 0
    %p166 = por %p164, %p165
    %p167 = scmp.ne.s32.totalorder %s155, %s156
    %p168 = scmp.eq.s32.totalorder %s29, 3
    %p169 = por %p167, %p168
    %p171 = scmp.ne.s32.totalorder %s156, %s170
    %p172 = scmp.eq.s32.totalorder %s29, 0
    %p173 = por %p171, %p172
    %s175 = sadd.s32 %s174, 1
    %p178 = scmp.eq.s32.totalorder %s23, 3
    %p179 = scmp.ne.s32.totalorder %s174, %s176
    %p180 = scmp.eq.s32.totalorder %s23, 0
    %p181 = por %p179, %p180
    %p182 = scmp.ne.s32.totalorder %s174, %s176
    %p183 = scmp.eq.s32.totalorder %s28, 3
    %p184 = por %p182, %p183
    %p185 = scmp.ne.s32.totalorder %s176, %s177
    %p186 = scmp.eq.s32.totalorder %s28, 0
    %p187 = por %p185, %p186
    %p188 = scmp.ne.s32.totalorder %s176, %s177
    %p189 = scmp.eq.s32.totalorder %s29, 3
    %p190 = por %p188, %p189
    %p192 = scmp.ne.s32.totalorder %s177, %s191
    %p193 = scmp.eq.s32.totalorder %s29, 0
    %p194 = por %p192, %p193
    %s196 = sadd.s32 %s195, 1
    %p199 = scmp.eq.s32.totalorder %s23, 3
    %p200 = scmp.ne.s32.totalorder %s195, %s197
    %p201 = scmp.eq.s32.totalorder %s23, 0
    %p202 = por %p200, %p201
    %p203 = scmp.ne.s32.totalorder %s195, %s197
    %p204 = scmp.eq.s32.totalorder %s28, 3
    %p205 = por %p203, %p204
    %p206 = scmp.ne.s32.totalorder %s197, %s198
    %p207 = scmp.eq.s32.totalorder %s28, 0
    %p208 = por %p206, %p207
    %p209 = scmp.ne.s32.totalorder %s197, %s198
    %p210 = scmp.eq.s32.totalorder %s29, 3
    %p211 = por %p209, %p210
    %p213 = scmp.ne.s32.totalorder %s198, %s212
    %p214 = scmp.eq.s32.totalorder %s29, 0
    %p215 = por %p213, %p214
    %s217 = sadd.s32 %s216, 1
    %p220 = scmp.eq.s32.totalorder %s23, 3
    %p221 = scmp.ne.s32.totalorder %s216, %s218
    %p222 = scmp.eq.s32.totalorder %s23, 0
    %p223 = por %p221, %p222
    %p224 = scmp.ne.s32.totalorder %s216, %s218
    %p225 = scmp.eq.s32.totalorder %s28, 3
    %p226 = por %p224, %p225
    %p227 = scmp.ne.s32.totalorder %s218, %s219
    %p228 = scmp.eq.s32.totalorder %s28, 0
    %p229 = por %p227, %p228
    %p230 = scmp.ne.s32.totalorder %s218, %s219
    %p231 = scmp.eq.s32.totalorder %s29, 3
    %p232 = por %p230, %p231
    %p234 = scmp.ne.s32.totalorder %s219, %s233
    %p235 = scmp.eq.s32.totalorder %s29, 0
    %p236 = por %p234, %p235
    %s238 = sadd.s32 %s237, 1
    %p241 = scmp.eq.s32.totalorder %s23, 3
    %p242 = scmp.ne.s32.totalorder %s237, %s239
    %p243 = scmp.eq.s32.totalorder %s23, 0
    %p244 = por %p242, %p243
    %p245 = scmp.ne.s32.totalorder %s237, %s239
    %p246 = scmp.eq.s32.totalorder %s28, 3
    %p247 = por %p245, %p246
    %p248 = scmp.ne.s32.totalorder %s239, %s240
    %p249 = scmp.eq.s32.totalorder %s28, 0
    %p250 = por %p248, %p249
    %p251 = scmp.ne.s32.totalorder %s239, %s240
    %p252 = scmp.eq.s32.totalorder %s29, 3
    %p253 = por %p251, %p252
    %p255 = scmp.ne.s32.totalorder %s240, %s254
    %p256 = scmp.eq.s32.totalorder %s29, 0
    %p257 = por %p255, %p256
    %s259 = sadd.s32 %s258, 1
    %p262 = scmp.eq.s32.totalorder %s23, 3
    %p263 = scmp.ne.s32.totalorder %s258, %s260
    %p264 = scmp.eq.s32.totalorder %s23, 0
    %p265 = por %p263, %p264
    %p266 = scmp.ne.s32.totalorder %s258, %s260
    %p267 = scmp.eq.s32.totalorder %s28, 3
    %p268 = por %p266, %p267
    %p269 = scmp.ne.s32.totalorder %s260, %s261
    %p270 = scmp.eq.s32.totalorder %s28, 0
    %p271 = por %p269, %p270
    %p272 = scmp.ne.s32.totalorder %s260, %s261
    %p273 = scmp.eq.s32.totalorder %s29, 3
    %p274 = por %p272, %p273
    %p276 = scmp.ne.s32.totalorder %s261, %s275
    %p277 = scmp.eq.s32.totalorder %s29, 0
    %p278 = por %p276, %p277
    %s280 = sadd.s32 %s279, 1
    %p283 = scmp.eq.s32.totalorder %s23, 3
    %p284 = scmp.ne.s32.totalorder %s279, %s281
    %p285 = scmp.eq.s32.totalorder %s23, 0
    %p286 = por %p284, %p285
    %p287 = scmp.ne.s32.totalorder %s279, %s281
    %p288 = scmp.eq.s32.totalorder %s28, 3
    %p289 = por %p287, %p288
    %p290 = scmp.ne.s32.totalorder %s281, %s282
    %p291 = scmp.eq.s32.totalorder %s28, 0
    %p292 = por %p290, %p291
    %p293 = scmp.ne.s32.totalorder %s281, %s282
    %p294 = scmp.eq.s32.totalorder %s29, 3
    %p295 = por %p293, %p294
    %p297 = scmp.ne.s32.totalorder %s282, %s296
    %p298 = scmp.eq.s32.totalorder %s29, 0
    %p299 = por %p297, %p298
    %s301 = sadd.s32 %s300, 1
    %p304 = scmp.eq.s32.totalorder %s23, 3
    %p305 = scmp.ne.s32.totalorder %s300, %s302
    %p306 = scmp.eq.s32.totalorder %s23, 0
    %p307 = por %p305, %p306
    %p308 = scmp.ne.s32.totalorder %s300, %s302
    %p309 = scmp.eq.s32.totalorder %s28, 3
    %p310 = por %p308, %p309
    %p311 = scmp.ne.s32.totalorder %s302, %s303
    %p312 = scmp.eq.s32.totalorder %s28, 0
    %p313 = por %p311, %p312
    %p314 = scmp.ne.s32.totalorder %s302, %s303
    %p315 = scmp.eq.s32.totalorder %s29, 3
    %p316 = por %p314, %p315
    %p318 = scmp.ne.s32.totalorder %s303, %s317
    %p319 = scmp.eq.s32.totalorder %s29, 0
    %p320 = por %p318, %p319
    %s322 = sadd.s32 %s321, 1
    %p325 = scmp.eq.s32.totalorder %s23, 3
    %p326 = scmp.ne.s32.totalorder %s321, %s323
    %p327 = scmp.eq.s32.totalorder %s23, 0
    %p328 = por %p326, %p327
    %p329 = scmp.ne.s32.totalorder %s321, %s323
    %p330 = scmp.eq.s32.totalorder %s28, 3
    %p331 = por %p329, %p330
    %p332 = scmp.ne.s32.totalorder %s323, %s324
    %p333 = scmp.eq.s32.totalorder %s28, 0
    %p334 = por %p332, %p333
    %p335 = scmp.ne.s32.totalorder %s323, %s324
    %p336 = scmp.eq.s32.totalorder %s29, 3
    %p337 = por %p335, %p336
    %p339 = scmp.ne.s32.totalorder %s324, %s338
    %p340 = scmp.eq.s32.totalorder %s29, 0
    %p341 = por %p339, %p340
    %s343 = sadd.s32 %s342, 1
    %p346 = scmp.eq.s32.totalorder %s23, 3
    %p347 = scmp.ne.s32.totalorder %s342, %s344
    %p348 = scmp.eq.s32.totalorder %s23, 0
    %p349 = por %p347, %p348
    %p350 = scmp.ne.s32.totalorder %s342, %s344
    %p351 = scmp.eq.s32.totalorder %s28, 3
    %p352 = por %p350, %p351
    %p353 = scmp.ne.s32.totalorder %s344, %s345
    %p354 = scmp.eq.s32.totalorder %s28, 0
    %p355 = por %p353, %p354
    %p356 = scmp.ne.s32.totalorder %s344, %s345
    %p357 = scmp.eq.s32.totalorder %s29, 3
    %p358 = por %p356, %p357
    %p360 = scmp.ne.s32.totalorder %s345, %s359
    %p361 = scmp.eq.s32.totalorder %s29, 0
    %p362 = por %p360, %p361
    %s364 = sadd.s32 %s363, 1
    %p367 = scmp.eq.s32.totalorder %s23, 3
    %p368 = scmp.ne.s32.totalorder %s363, %s365
    %p369 = scmp.eq.s32.totalorder %s23, 0
    %p370 = por %p368, %p369
    %p371 = scmp.ne.s32.totalorder %s363, %s365
    %p372 = scmp.eq.s32.totalorder %s28, 3
    %p373 = por %p371, %p372
    %p374 = scmp.ne.s32.totalorder %s365, %s366
    %p375 = scmp.eq.s32.totalorder %s28, 0
    %p376 = por %p374, %p375
    %p377 = scmp.ne.s32.totalorder %s365, %s366
    %p378 = scmp.eq.s32.totalorder %s29, 3
    %p379 = por %p377, %p378
    %p381 = scmp.ne.s32.totalorder %s366, %s380
    %p382 = scmp.eq.s32.totalorder %s29, 0
    %p383 = por %p381, %p382
    %s385 = sadd.s32 %s384, 1
    %p388 = scmp.eq.s32.totalorder %s23, 3
    %p389 = scmp.ne.s32.totalorder %s384, %s386
    %p390 = scmp.eq.s32.totalorder %s23, 0
    %p391 = por %p389, %p390
    %p392 = scmp.ne.s32.totalorder %s384, %s386
    %p393 = scmp.eq.s32.totalorder %s28, 3
    %p394 = por %p392, %p393
    %p395 = scmp.ne.s32.totalorder %s386, %s387
    %p396 = scmp.eq.s32.totalorder %s28, 0
    %p397 = por %p395, %p396
    %p398 = scmp.ne.s32.totalorder %s386, %s387
    %p399 = scmp.eq.s32.totalorder %s29, 3
    %p400 = por %p398, %p399
    %p402 = scmp.ne.s32.totalorder %s387, %s401
    %p403 = scmp.eq.s32.totalorder %s29, 0
    %p404 = por %p402, %p403
    %s405 = ssub.s32 %s30, %s42
    %s406 = ssub.s32 %s31, %s38
    %s407 = sor.u32 %s405, %s406
    %p408 = scmp.eq.s32.totalorder %s407, 0
    %s410 = sadd.s32 %s409, 1
    %s411 = scalar_select %p408, %s409, %s410
    %p414 = pneg %p408
    %p415 = scmp.eq.s32.totalorder %s23, 3
    %p416 = por %p414, %p415
    %p417 = scmp.ne.s32.totalorder %s409, %s412
    %p418 = scmp.eq.s32.totalorder %s23, 0
    %p419 = por %p417, %p418
    %p420 = scmp.ne.s32.totalorder %s409, %s412
    %p421 = scmp.eq.s32.totalorder %s28, 3
    %p422 = por %p420, %p421
    %p423 = scmp.ne.s32.totalorder %s412, %s413
    %p424 = scmp.eq.s32.totalorder %s28, 0
    %p425 = por %p423, %p424
    %p426 = scmp.ne.s32.totalorder %s412, %s413
    %p427 = scmp.eq.s32.totalorder %s29, 3
    %p428 = por %p426, %p427
    %p430 = scmp.ne.s32.totalorder %s413, %s429
    %p431 = scmp.eq.s32.totalorder %s29, 0
    %p432 = por %p430, %p431
    %p433 = scmp.le.s32.totalorder 1, %s23
    %p434 = scmp.lt.s32.totalorder %s23, 5
    %p435 = pnand %p433, %p434
    %p436 = pneg %p435
    // Predicated region
    $region9: #{tpu_custom_call.1} parent=5 // pred_check
      _
    $region10: #{tpu_custom_call.1} parent=5 // pred_check_branch
      %438 = sbr.rel (%p435) target = $region12
    $region11: #{tpu_custom_call.1} parent=5 // pred_region
      %s439 = ssub.s32 %s23, 1
      // Predicated region
      $region13: #{tpu_custom_call.1} parent=11 // pred_check
        %p440 = pneg %p82
      $region14: #{tpu_custom_call.1} parent=11 // pred_check_branch
        %442 = sbr.rel (%p440) target = $region16
      $region15: #{tpu_custom_call.1} parent=11 // pred_region
        _
      $region16: #{tpu_custom_call.1} parent=11 // pred_fallthru
        _
      // Predicated region
      $region17: #{tpu_custom_call.1} parent=11 // pred_check
        %p443 = pneg %p103
      $region18: #{tpu_custom_call.1} parent=11 // pred_check_branch
        %445 = sbr.rel (%p443) target = $region20
      $region19: #{tpu_custom_call.1} parent=11 // pred_region
        _
      $region20: #{tpu_custom_call.1} parent=11 // pred_fallthru
        _
      // Predicated region
      $region21: #{tpu_custom_call.1} parent=11 // pred_check
        %p446 = pneg %p124
      $region22: #{tpu_custom_call.1} parent=11 // pred_check_branch
        %448 = sbr.rel (%p446) target = $region24
      $region23: #{tpu_custom_call.1} parent=11 // pred_region
        _
      $region24: #{tpu_custom_call.1} parent=11 // pred_fallthru
        _
      // Predicated region
      $region25: #{tpu_custom_call.1} parent=11 // pred_check
        %p449 = pneg %p145
      $region26: #{tpu_custom_call.1} parent=11 // pred_check_branch
        %451 = sbr.rel (%p449) target = $region28
      $region27: #{tpu_custom_call.1} parent=11 // pred_region
        _
      $region28: #{tpu_custom_call.1} parent=11 // pred_fallthru
        _
      // Predicated region
      $region29: #{tpu_custom_call.1} parent=11 // pred_check
        %p452 = pneg %p166
      $region30: #{tpu_custom_call.1} parent=11 // pred_check_branch
        %454 = sbr.rel (%p452) target = $region32
      $region31: #{tpu_custom_call.1} parent=11 // pred_region
        _
      $region32: #{tpu_custom_call.1} parent=11 // pred_fallthru
        _
      // Predicated region
      $region33: #{tpu_custom_call.1} parent=11 // pred_check
        %p455 = pneg %p187
      $region34: #{tpu_custom_call.1} parent=11 // pred_check_branch
        %457 = sbr.rel (%p455) target = $region36
      $region35: #{tpu_custom_call.1} parent=11 // pred_region
        _
      $region36: #{tpu_custom_call.1} parent=11 // pred_fallthru
        _
      // Predicated region
      $region37: #{tpu_custom_call.1} parent=11 // pred_check
        %p458 = pneg %p208
      $region38: #{tpu_custom_call.1} parent=11 // pred_check_branch
        %460 = sbr.rel (%p458) target = $region40
      $region39: #{tpu_custom_call.1} parent=11 // pred_region
        _
      $region40: #{tpu_custom_call.1} parent=11 // pred_fallthru
        _
      // Predicated region
      $region41: #{tpu_custom_call.1} parent=11 // pred_check
        %p461 = pneg %p229
      $region42: #{tpu_custom_call.1} parent=11 // pred_check_branch
        %463 = sbr.rel (%p461) target = $region44
      $region43: #{tpu_custom_call.1} parent=11 // pred_region
        _
      $region44: #{tpu_custom_call.1} parent=11 // pred_fallthru
        _
      // Predicated region
      $region45: #{tpu_custom_call.1} parent=11 // pred_check
        %p464 = pneg %p250
      $region46: #{tpu_custom_call.1} parent=11 // pred_check_branch
        %466 = sbr.rel (%p464) target = $region48
      $region47: #{tpu_custom_call.1} parent=11 // pred_region
        _
      $region48: #{tpu_custom_call.1} parent=11 // pred_fallthru
        _
      // Predicated region
      $region49: #{tpu_custom_call.1} parent=11 // pred_check
        %p467 = pneg %p271
      $region50: #{tpu_custom_call.1} parent=11 // pred_check_branch
        %469 = sbr.rel (%p467) target = $region52
      $region51: #{tpu_custom_call.1} parent=11 // pred_region
        _
      $region52: #{tpu_custom_call.1} parent=11 // pred_fallthru
        _
      // Predicated region
      $region53: #{tpu_custom_call.1} parent=11 // pred_check
        %p470 = pneg %p292
      $region54: #{tpu_custom_call.1} parent=11 // pred_check_branch
        %472 = sbr.rel (%p470) target = $region56
      $region55: #{tpu_custom_call.1} parent=11 // pred_region
        _
      $region56: #{tpu_custom_call.1} parent=11 // pred_fallthru
        _
      // Predicated region
      $region57: #{tpu_custom_call.1} parent=11 // pred_check
        %p473 = pneg %p313
      $region58: #{tpu_custom_call.1} parent=11 // pred_check_branch
        %475 = sbr.rel (%p473) target = $region60
      $region59: #{tpu_custom_call.1} parent=11 // pred_region
        _
      $region60: #{tpu_custom_call.1} parent=11 // pred_fallthru
        _
      // Predicated region
      $region61: #{tpu_custom_call.1} parent=11 // pred_check
        %p476 = pneg %p334
      $region62: #{tpu_custom_call.1} parent=11 // pred_check_branch
        %478 = sbr.rel (%p476) target = $region64
      $region63: #{tpu_custom_call.1} parent=11 // pred_region
        _
      $region64: #{tpu_custom_call.1} parent=11 // pred_fallthru
        _
      // Predicated region
      $region65: #{tpu_custom_call.1} parent=11 // pred_check
        %p479 = pneg %p355
      $region66: #{tpu_custom_call.1} parent=11 // pred_check_branch
        %481 = sbr.rel (%p479) target = $region68
      $region67: #{tpu_custom_call.1} parent=11 // pred_region
        _
      $region68: #{tpu_custom_call.1} parent=11 // pred_fallthru
        _
      // Predicated region
      $region69: #{tpu_custom_call.1} parent=11 // pred_check
        %p482 = pneg %p376
      $region70: #{tpu_custom_call.1} parent=11 // pred_check_branch
        %484 = sbr.rel (%p482) target = $region72
      $region71: #{tpu_custom_call.1} parent=11 // pred_region
        _
      $region72: #{tpu_custom_call.1} parent=11 // pred_fallthru
        _
      // Predicated region
      $region73: #{tpu_custom_call.1} parent=11 // pred_check
        %p485 = pneg %p397
      $region74: #{tpu_custom_call.1} parent=11 // pred_check_branch
        %487 = sbr.rel (%p485) target = $region76
      $region75: #{tpu_custom_call.1} parent=11 // pred_region
        _
      $region76: #{tpu_custom_call.1} parent=11 // pred_fallthru
        _
    $region12: #{tpu_custom_call.1} parent=5 // pred_fallthru
      _
    %p488 = scmp.lt.s32.totalorder %s23, 4
    // Predicated region
    $region77: #{tpu_custom_call.1} parent=5 // pred_check
      %p489 = pneg %p488
    $region78: #{tpu_custom_call.1} parent=5 // pred_check_branch
      %491 = sbr.rel (%p489) target = $region80
    $region79: #{tpu_custom_call.1} parent=5 // pred_region
      // Predicated region
      $region81: #{tpu_custom_call.1} parent=79 // pred_check
        %p492 = pneg %p55
      $region82: #{tpu_custom_call.1} parent=79 // pred_check_branch
        %494 = sbr.rel (%p492) target = $region84
      $region83: #{tpu_custom_call.1} parent=79 // pred_region
        %p495 = scmp.lt.s32.totalorder %s30, 1
        %s496 = scalar_select %p495, %s30, 1
        %s497 = smul.addr %s496, 36
        %s498 = smul.addr %s497, 4
        %s499 = scalar_lea.vmem %s0, %s498
      $region84: #{tpu_custom_call.1} parent=79 // pred_fallthru
        _
    $region80: #{tpu_custom_call.1} parent=5 // pred_fallthru
      _
    %p500 = scmp.le.s32.totalorder 1, %s23
    %p501 = scmp.lt.s32.totalorder %s23, 5
    %p502 = pnand %p500, %p501
    %p503 = pneg %p502
    // Predicated region
    $region85: #{tpu_custom_call.1} parent=5 // pred_check
      _
    $region86: #{tpu_custom_call.1} parent=5 // pred_check_branch
      %505 = sbr.rel (%p502) target = $region88
    $region87: #{tpu_custom_call.1} parent=5 // pred_region
      %s506 = ssub.s32 %s23, 1
      %p507 = scmp.lt.s32.totalorder %s32, 1
      %s508 = scalar_select %p507, %s32, 1
      %s509 = smul.addr %s508, 36
      %s510 = smul.addr %s509, 4
      %s511 = scalar_lea.vmem %s0, %s510
      %p512 = pneg %p61
      %p513 = pneg %p58
      %p514 = pneg %p82
      %p515 = pneg %p79
      %p516 = pneg %p103
      %p517 = pneg %p100
      %p518 = pneg %p124
      %p519 = pneg %p121
      %p520 = pneg %p145
      %p521 = pneg %p142
      %p522 = pneg %p166
      %p523 = pneg %p163
      %p524 = pneg %p187
      %p525 = pneg %p184
      %p526 = pneg %p208
      %p527 = pneg %p205
      %p528 = pneg %p229
      %p529 = pneg %p226
      %p530 = pneg %p250
      %p531 = pneg %p247
      %p532 = pneg %p271
      %p533 = pneg %p268
      %p534 = pneg %p292
      %p535 = pneg %p289
      %p536 = pneg %p313
      %p537 = pneg %p310
      %p538 = pneg %p334
      %p539 = pneg %p331
      %p540 = pneg %p355
      %p541 = pneg %p352
      %p542 = pneg %p376
      %p543 = pneg %p373
      %p544 = pneg %p397
      %p545 = pneg %p394
      %p546 = pneg %p425
      %p547 = pneg %p422
      %s548 = smul.u32 16, %s33
      %p549 = scmp.lt.s32.totalorder %s32, 1
      %s550 = scalar_select %p549, %s32, 1
      %p551 = scmp.lt.s32.totalorder %s548, 31
      %s552 = scalar_select %p551, %s548, 31
      %s553 = smul.addr %s550, 32
      %s554 = sadd.s32 %s552, %s553
      %s555 = smul.addr %s554, 8
      %s556 = scalar_lea.vmem %s17, %s555
      %p557 = scmp.lt.s32.totalorder %s32, 1
      %s558 = scalar_select %p557, %s32, 1
      %s559 = smul.addr %s558, 36
      %s560 = smul.addr %s559, 4
      %s561 = scalar_lea.vmem %s0, %s560
      %s562 = smul.u32 16, %s33
      %p563 = scmp.lt.s32.totalorder %s32, 1
      %s564 = scalar_select %p563, %s32, 1
      %p565 = scmp.lt.s32.totalorder %s562, 31
      %s566 = scalar_select %p565, %s562, 31
      %s567 = smul.addr %s564, 32
      %s568 = sadd.s32 %s566, %s567
      %s569 = smul.addr %s568, 8
      %s570 = scalar_lea.vmem %s17, %s569
      %s571 = smul.u32 16, %s33
      %s573 = smul.u32 %s33, 128
      %s574 = sshra.s32 %s573, 3
      %s575 = sand.u32 %s573, 7
      %s576 = smul.addr %s574, 4
      %s577 = scalar_lea.vmem %s561, %s576
      %v578 = vld [vmem:[%s577] sm:$0xf]
      %v579 = vld [vmem:[%s577 + $0x4] sm:$0xf]
      %v580 = vld [vmem:[%s577 + $0x8] sm:$0xf]
      %v581 = vld [vmem:[%s577 + $0xc] sm:$0xf]
      %v582 = vld [vmem:[%s577 + $0x10] sm:$0xf]
      %v583 = vld [vmem:[%s577 + $0x14] sm:$0xf]
      %v584 = vld [vmem:[%s577 + $0x18] sm:$0xf]
      %v585 = vld [vmem:[%s577 + $0x1c] sm:$0xf]
      %v586 = vld [vmem:[%s577 + $0x20] sm:$0xf]
      %v587 = vld [vmem:[%s577 + $0x24] sm:$0xf]
      %v588 = vld [vmem:[%s577 + $0x28] sm:$0xf]
      %v589 = vld [vmem:[%s577 + $0x2c] sm:$0xf]
      %v590 = vld [vmem:[%s577 + $0x30] sm:$0xf]
      %v591 = vld [vmem:[%s577 + $0x34] sm:$0xf]
      %v592 = vld [vmem:[%s577 + $0x38] sm:$0xf]
      %v593 = vld [vmem:[%s577 + $0x3c] sm:$0xf]
      %v594 = vld [vmem:[%s577 + $0x40] sm:$0xf]
      %v595 = vld [vmem:[%s577 + $0x44] sm:$0xf]
      %v596 = vld [vmem:[%s577 + $0x48] sm:$0xf]
      %v597 = vld [vmem:[%s577 + $0x4c] sm:$0xf]
      %v598 = vld [vmem:[%s1] sm:$0xf]
      %v599 = vld [vmem:[%s1 + $0x4] sm:$0xf]
      %v600 = vld [vmem:[%s1 + $0x8] sm:$0xf]
      %v601 = vld [vmem:[%s1 + $0xc] sm:$0xf]
      %v602 = vld [vmem:[%s1 + $0x10] sm:$0xf]
      %v603 = vld [vmem:[%s1 + $0x14] sm:$0xf]
      %v604 = vld [vmem:[%s1 + $0x18] sm:$0xf]
      %v605 = vld [vmem:[%s1 + $0x1c] sm:$0xf]
      %v626 = vunpack.c.l.b16 %v578
      %v627 = vunpack.c.l.b16 %v579
      %v628 = vunpack.c.l.b16 %v580
      %v629 = vunpack.c.l.b16 %v581
      %v630 = vunpack.c.l.b16 %v582
      %v631 = vunpack.c.l.b16 %v583
      %v632 = vunpack.c.l.b16 %v584
      %v633 = vunpack.c.l.b16 %v585
      %v634 = vunpack.c.l.b16 %v586
      %v635 = vunpack.c.l.b16 %v587
      %v636 = vunpack.c.l.b16 %v588
      %v637 = vunpack.c.l.b16 %v589
      %v638 = vunpack.c.l.b16 %v590
      %v639 = vunpack.c.l.b16 %v591
      %v640 = vunpack.c.l.b16 %v592
      %v641 = vunpack.c.l.b16 %v593
      %v642 = vunpack.c.l.b16 %v594
      %v643 = vunpack.c.l.b16 %v595
      %v644 = vunpack.c.l.b16 %v596
      %v645 = vunpack.c.l.b16 %v597
      %v646 = vpack.c.b16 %v627, %v626
      %v647 = vpack.c.b16 %v629, %v628
      %v648 = vpack.c.b16 %v631, %v630
      %v649 = vpack.c.b16 %v633, %v632
      %v650 = vpack.c.b16 %v635, %v634
      %v651 = vpack.c.b16 %v637, %v636
      %v652 = vpack.c.b16 %v639, %v638
      %v653 = vpack.c.b16 %v641, %v640
      %v654 = vpack.c.b16 %v643, %v642
      %v655 = vpack.c.b16 %v645, %v644
      %v664 = vunpack.c.l.b16 %v598
      %v665 = vunpack.c.l.b16 %v599
      %v666 = vunpack.c.l.b16 %v600
      %v667 = vunpack.c.l.b16 %v601
      %v668 = vunpack.c.l.b16 %v602
      %v669 = vunpack.c.l.b16 %v603
      %v670 = vunpack.c.l.b16 %v604
      %v671 = vunpack.c.l.b16 %v605
      %v672 = vpack.c.b16 %v665, %v664
      %v673 = vpack.c.b16 %v667, %v666
      %v674 = vpack.c.b16 %v669, %v668
      %v675 = vpack.c.b16 %v671, %v670
      %vm680 = vcmask 523264
      %v682 = vsel %vm680, %v646, 0
      %v685 = vsel %vm680, %v647, 0
      %v688 = vsel %vm680, %v648, 0
      %v691 = vsel %vm680, %v649, 0
      %v694 = vsel %vm680, %v650, 0
      %v697 = vsel %vm680, %v651, 0
      %v700 = vsel %vm680, %v652, 0
      %v703 = vsel %vm680, %v653, 0
      %v706 = vsel %vm680, %v654, 0
      %v709 = vsel %vm680, %v655, 0
      %711 = vmatpush.bf16.msra.mxu0 0
      %712 = vmatpush.bf16.msra.mxu0 0
      %713 = vmatpush.bf16.msra.mxu0 0
      %714 = vmatpush.bf16.msra.mxu0 0
      %715 = vmatpush.bf16.msra.mxu0 %v675
      %716 = vmatpush.bf16.msra.mxu0 %v674
      %717 = vmatpush.bf16.msra.mxu0 %v673
      %718 = vmatpush.bf16.msra.mxu0 %v672
      %719 = vmatmul.bf16.gmra.mxu0 %v682
      %v720 = vpop.f32.mrf.mxu0
      %v721 = vadd.f32 0.0, %v720
      %v722 = vpop.f32.mrf.mxu0
      %v723 = vadd.f32 0.0, %v722
      %724 = vmatmul.bf16.gmra.mxu0 %v685
      %v725 = vpop.f32.mrf.mxu0
      %v726 = vadd.f32 0.0, %v725
      %v727 = vpop.f32.mrf.mxu0
      %v728 = vadd.f32 0.0, %v727
      %729 = vmatmul.bf16.gmra.mxu0 %v688
      %v730 = vpop.f32.mrf.mxu0
      %v731 = vadd.f32 0.0, %v730
      %v732 = vpop.f32.mrf.mxu0
      %v733 = vadd.f32 0.0, %v732
      %734 = vmatmul.bf16.gmra.mxu0 %v691
      %v735 = vpop.f32.mrf.mxu0
      %v736 = vadd.f32 0.0, %v735
      %v737 = vpop.f32.mrf.mxu0
      %v738 = vadd.f32 0.0, %v737
      %739 = vmatmul.bf16.gmra.mxu0 %v694
      %v740 = vpop.f32.mrf.mxu0
      %v741 = vadd.f32 0.0, %v740
      %v742 = vpop.f32.mrf.mxu0
      %v743 = vadd.f32 0.0, %v742
      %744 = vmatmul.bf16.gmra.mxu0 %v697
      %v745 = vpop.f32.mrf.mxu0
      %v746 = vadd.f32 0.0, %v745
      %v747 = vpop.f32.mrf.mxu0
      %v748 = vadd.f32 0.0, %v747
      %749 = vmatmul.bf16.gmra.mxu0 %v700
      %v750 = vpop.f32.mrf.mxu0
      %v751 = vadd.f32 0.0, %v750
      %v752 = vpop.f32.mrf.mxu0
      %v753 = vadd.f32 0.0, %v752
      %754 = vmatmul.bf16.gmra.mxu0 %v703
      %v755 = vpop.f32.mrf.mxu0
      %v756 = vadd.f32 0.0, %v755
      %v757 = vpop.f32.mrf.mxu0
      %v758 = vadd.f32 0.0, %v757
      %759 = vmatmul.bf16.gmra.mxu0 %v706
      %v760 = vpop.f32.mrf.mxu0
      %v761 = vadd.f32 0.0, %v760
      %v762 = vpop.f32.mrf.mxu0
      %v763 = vadd.f32 0.0, %v762
      %764 = vmatmul.bf16.gmra.mxu0 %v709
      %v765 = vpop.f32.mrf.mxu0
      %v766 = vadd.f32 0.0, %v765
      %v767 = vpop.f32.mrf.mxu0
      %v768 = vadd.f32 0.0, %v767
      %769 = vdwg.mxu0
      %v770 = vld [vmem:[%s2] sm:$0x1]
      %v772 = vperm.slane %v770, 0
      %v774 = vmul.f32 %v721, %v772
      %v775 = vmul.f32 %v723, %v772
      %v776 = vmul.f32 %v726, %v772
      %v777 = vmul.f32 %v728, %v772
      %v778 = vmul.f32 %v731, %v772
      %v779 = vmul.f32 %v733, %v772
      %v780 = vmul.f32 %v736, %v772
      %v781 = vmul.f32 %v738, %v772
      %v782 = vmul.f32 %v741, %v772
      %v783 = vmul.f32 %v743, %v772
      %v784 = vmul.f32 %v746, %v772
      %v785 = vmul.f32 %v748, %v772
      %v786 = vmul.f32 %v751, %v772
      %v787 = vmul.f32 %v753, %v772
      %v788 = vmul.f32 %v756, %v772
      %v789 = vmul.f32 %v758, %v772
      %v790 = vmul.f32 %v761, %v772
      %v791 = vmul.f32 %v763, %v772
      %v792 = vmul.f32 %v766, %v772
      %v793 = vmul.f32 %v768, %v772
      %v794 = vld [vmem:[%s3] sm:$0x1]
      %v796 = vperm.slane %v794, 0
      %v798 = vadd.f32 %v774, %v796
      %v799 = vadd.f32 %v775, %v796
      %v800 = vadd.f32 %v776, %v796
      %v801 = vadd.f32 %v777, %v796
      %v802 = vadd.f32 %v778, %v796
      %v803 = vadd.f32 %v779, %v796
      %v804 = vadd.f32 %v780, %v796
      %v805 = vadd.f32 %v781, %v796
      %v806 = vadd.f32 %v782, %v796
      %v807 = vadd.f32 %v783, %v796
      %v808 = vadd.f32 %v784, %v796
      %v809 = vadd.f32 %v785, %v796
      %v810 = vadd.f32 %v786, %v796
      %v811 = vadd.f32 %v787, %v796
      %v812 = vadd.f32 %v788, %v796
      %v813 = vadd.f32 %v789, %v796
      %v814 = vadd.f32 %v790, %v796
      %v815 = vadd.f32 %v791, %v796
      %v816 = vadd.f32 %v792, %v796
      %v817 = vadd.f32 %v793, %v796
      %v818 = vmul.f32 %v798, 0.1
      %v819 = vmul.f32 %v799, 0.1
      %v820 = vmul.f32 %v800, 0.1
      %v821 = vmul.f32 %v801, 0.1
      %v822 = vmul.f32 %v802, 0.1
      %v823 = vmul.f32 %v803, 0.1
      %v824 = vmul.f32 %v804, 0.1
      %v825 = vmul.f32 %v805, 0.1
      %v826 = vmul.f32 %v806, 0.1
      %v827 = vmul.f32 %v807, 0.1
      %v828 = vmul.f32 %v808, 0.1
      %v829 = vmul.f32 %v809, 0.1
      %v830 = vmul.f32 %v810, 0.1
      %v831 = vmul.f32 %v811, 0.1
      %v832 = vmul.f32 %v812, 0.1
      %v833 = vmul.f32 %v813, 0.1
      %v834 = vmul.f32 %v814, 0.1
      %v835 = vmul.f32 %v815, 0.1
      %v836 = vmul.f32 %v816, 0.1
      %v837 = vmul.f32 %v817, 0.1
      %v838 = vmax.f32 %v798, %v818
      %v839 = vmax.f32 %v799, %v819
      %v840 = vmax.f32 %v800, %v820
      %v841 = vmax.f32 %v801, %v821
      %v842 = vmax.f32 %v802, %v822
      %v843 = vmax.f32 %v803, %v823
      %v844 = vmax.f32 %v804, %v824
      %v845 = vmax.f32 %v805, %v825
      %v846 = vmax.f32 %v806, %v826
      %v847 = vmax.f32 %v807, %v827
      %v848 = vmax.f32 %v808, %v828
      %v849 = vmax.f32 %v809, %v829
      %v850 = vmax.f32 %v810, %v830
      %v851 = vmax.f32 %v811, %v831
      %v852 = vmax.f32 %v812, %v832
      %v853 = vmax.f32 %v813, %v833
      %v854 = vmax.f32 %v814, %v834
      %v855 = vmax.f32 %v815, %v835
      %v856 = vmax.f32 %v816, %v836
      %v857 = vmax.f32 %v817, %v837
      %v858 = vlaneseq
      %v859 = vshrl.u32 %v858, 7
      %v860 = vadd.s32 %v859, 16
      %v861 = vadd.s32 %v859, 24
      %v862 = vadd.s32 %v859, 32
      %v863 = vadd.s32 %v859, 40
      %v864 = vadd.s32 %v859, 48
      %v865 = vadd.s32 %v859, 56
      %v866 = vadd.s32 %v859, 64
      %v867 = vadd.s32 %v859, 72
      %v868 = vadd.s32 %v859, 80
      %v869 = vadd.s32 %v859, 88
      %v870 = vadd.s32 %v859, 96
      %v871 = vadd.s32 %v859, 104
      %v872 = vadd.s32 %v859, 112
      %v873 = vadd.s32 %v859, 120
      %v874 = vadd.s32 %v859, 128
      %v875 = vadd.s32 %v859, 136
      %vm876 = vcmp.lt.s32.totalorder %v860, 0
      %v877 = vsub.s32 0, %v860
      %v878 = vsel %vm876, %v877, %v860
      %v879 = vshrl.u32 %v878, 4
      %v880 = vand.u32 %v878, 15
      %v881 = vsub.s32 0, %v880
      %v882 = vsel %vm876, %v881, %v880
      %vm883 = vcmp.lt.s32.totalorder %v861, 0
      %v884 = vsub.s32 0, %v861
      %v885 = vsel %vm883, %v884, %v861
      %v886 = vshrl.u32 %v885, 4
      %v887 = vand.u32 %v885, 15
      %v888 = vsub.s32 0, %v887
      %v889 = vsel %vm883, %v888, %v887
      %vm890 = vcmp.lt.s32.totalorder %v862, 0
      %v891 = vsub.s32 0, %v862
      %v892 = vsel %vm890, %v891, %v862
      %v893 = vshrl.u32 %v892, 4
      %v894 = vand.u32 %v892, 15
      %v895 = vsub.s32 0, %v894
      %v896 = vsel %vm890, %v895, %v894
      %vm897 = vcmp.lt.s32.totalorder %v863, 0
      %v898 = vsub.s32 0, %v863
      %v899 = vsel %vm897, %v898, %v863
      %v900 = vshrl.u32 %v899, 4
      %v901 = vand.u32 %v899, 15
      %v902 = vsub.s32 0, %v901
      %v903 = vsel %vm897, %v902, %v901
      %vm904 = vcmp.lt.s32.totalorder %v864, 0
      %v905 = vsub.s32 0, %v864
      %v906 = vsel %vm904, %v905, %v864
      %v907 = vshrl.u32 %v906, 4
      %v908 = vand.u32 %v906, 15
      %v909 = vsub.s32 0, %v908
      %v910 = vsel %vm904, %v909, %v908
      %vm911 = vcmp.lt.s32.totalorder %v865, 0
      %v912 = vsub.s32 0, %v865
      %v913 = vsel %vm911, %v912, %v865
      %v914 = vshrl.u32 %v913, 4
      %v915 = vand.u32 %v913, 15
      %v916 = vsub.s32 0, %v915
      %v917 = vsel %vm911, %v916, %v915
      %vm918 = vcmp.lt.s32.totalorder %v866, 0
      %v919 = vsub.s32 0, %v866
      %v920 = vsel %vm918, %v919, %v866
      %v921 = vshrl.u32 %v920, 4
      %v922 = vand.u32 %v920, 15
      %v923 = vsub.s32 0, %v922
      %v924 = vsel %vm918, %v923, %v922
      %vm925 = vcmp.lt.s32.totalorder %v867, 0
      %v926 = vsub.s32 0, %v867
      %v927 = vsel %vm925, %v926, %v867
      %v928 = vshrl.u32 %v927, 4
      %v929 = vand.u32 %v927, 15
      %v930 = vsub.s32 0, %v929
      %v931 = vsel %vm925, %v930, %v929
      %vm932 = vcmp.lt.s32.totalorder %v868, 0
      %v933 = vsub.s32 0, %v868
      %v934 = vsel %vm932, %v933, %v868
      %v935 = vshrl.u32 %v934, 4
      %v936 = vand.u32 %v934, 15
      %v937 = vsub.s32 0, %v936
      %v938 = vsel %vm932, %v937, %v936
      %vm939 = vcmp.lt.s32.totalorder %v869, 0
      %v940 = vsub.s32 0, %v869
      %v941 = vsel %vm939, %v940, %v869
      %v942 = vshrl.u32 %v941, 4
      %v943 = vand.u32 %v941, 15
      %v944 = vsub.s32 0, %v943
      %v945 = vsel %vm939, %v944, %v943
      %vm946 = vcmp.lt.s32.totalorder %v870, 0
      %v947 = vsub.s32 0, %v870
      %v948 = vsel %vm946, %v947, %v870
      %v949 = vshrl.u32 %v948, 4
      %v950 = vand.u32 %v948, 15
      %v951 = vsub.s32 0, %v950
      %v952 = vsel %vm946, %v951, %v950
      %vm953 = vcmp.lt.s32.totalorder %v871, 0
      %v954 = vsub.s32 0, %v871
      %v955 = vsel %vm953, %v954, %v871
      %v956 = vshrl.u32 %v955, 4
      %v957 = vand.u32 %v955, 15
      %v958 = vsub.s32 0, %v957
      %v959 = vsel %vm953, %v958, %v957
      %vm960 = vcmp.lt.s32.totalorder %v872, 0
      %v961 = vsub.s32 0, %v872
      %v962 = vsel %vm960, %v961, %v872
      %v963 = vshrl.u32 %v962, 4
      %v964 = vand.u32 %v962, 15
      %v965 = vsub.s32 0, %v964
      %v966 = vsel %vm960, %v965, %v964
      %vm967 = vcmp.lt.s32.totalorder %v873, 0
      %v968 = vsub.s32 0, %v873
      %v969 = vsel %vm967, %v968, %v873
      %v970 = vshrl.u32 %v969, 4
      %v971 = vand.u32 %v969, 15
      %v972 = vsub.s32 0, %v971
      %v973 = vsel %vm967, %v972, %v971
      %vm974 = vcmp.lt.s32.totalorder %v874, 0
      %v975 = vsub.s32 0, %v874
      %v976 = vsel %vm974, %v975, %v874
      %v977 = vshrl.u32 %v976, 4
      %v978 = vand.u32 %v976, 15
      %v979 = vsub.s32 0, %v978
      %v980 = vsel %vm974, %v979, %v978
      %vm981 = vcmp.lt.s32.totalorder %v875, 0
      %v982 = vsub.s32 0, %v875
      %v983 = vsel %vm981, %v982, %v875
      %v984 = vshrl.u32 %v983, 4
      %v985 = vand.u32 %v983, 15
      %v986 = vsub.s32 0, %v985
      %v987 = vsel %vm981, %v986, %v985
      %vm988 = vcmp.ne.s32.totalorder %v882, 0
      %vm989 = vcmp.ne.s32.totalorder %v889, 0
      %vm990 = vcmp.ne.s32.totalorder %v896, 0
      %vm991 = vcmp.ne.s32.totalorder %v903, 0
      %vm992 = vcmp.ne.s32.totalorder %v910, 0
      %vm993 = vcmp.ne.s32.totalorder %v917, 0
      %vm994 = vcmp.ne.s32.totalorder %v924, 0
      %vm995 = vcmp.ne.s32.totalorder %v931, 0
      %vm996 = vcmp.ne.s32.totalorder %v938, 0
      %vm997 = vcmp.ne.s32.totalorder %v945, 0
      %vm998 = vcmp.ne.s32.totalorder %v952, 0
      %vm999 = vcmp.ne.s32.totalorder %v959, 0
      %vm1000 = vcmp.ne.s32.totalorder %v966, 0
      %vm1001 = vcmp.ne.s32.totalorder %v973, 0
      %vm1002 = vcmp.ne.s32.totalorder %v980, 0
      %vm1003 = vcmp.ne.s32.totalorder %v987, 0
      %vm1004 = vcmp.lt.s32.totalorder %v882, 0
      %vm1005 = vcmp.lt.s32.totalorder %v889, 0
      %vm1006 = vcmp.lt.s32.totalorder %v896, 0
      %vm1007 = vcmp.lt.s32.totalorder %v903, 0
      %vm1008 = vcmp.lt.s32.totalorder %v910, 0
      %vm1009 = vcmp.lt.s32.totalorder %v917, 0
      %vm1010 = vcmp.lt.s32.totalorder %v924, 0
      %vm1011 = vcmp.lt.s32.totalorder %v931, 0
      %vm1012 = vcmp.lt.s32.totalorder %v938, 0
      %vm1013 = vcmp.lt.s32.totalorder %v945, 0
      %vm1014 = vcmp.lt.s32.totalorder %v952, 0
      %vm1015 = vcmp.lt.s32.totalorder %v959, 0
      %vm1016 = vcmp.lt.s32.totalorder %v966, 0
      %vm1017 = vcmp.lt.s32.totalorder %v973, 0
      %vm1018 = vcmp.lt.s32.totalorder %v980, 0
      %vm1019 = vcmp.lt.s32.totalorder %v987, 0
      %vm1020 = vmand %vm1004, %vm988
      %vm1021 = vmand %vm1005, %vm989
      %vm1022 = vmand %vm1006, %vm990
      %vm1023 = vmand %vm1007, %vm991
      %vm1024 = vmand %vm1008, %vm992
      %vm1025 = vmand %vm1009, %vm993
      %vm1026 = vmand %vm1010, %vm994
      %vm1027 = vmand %vm1011, %vm995
      %vm1028 = vmand %vm1012, %vm996
      %vm1029 = vmand %vm1013, %vm997
      %vm1030 = vmand %vm1014, %vm998
      %vm1031 = vmand %vm1015, %vm999
      %vm1032 = vmand %vm1016, %vm1000
      %vm1033 = vmand %vm1017, %vm1001
      %vm1034 = vmand %vm1018, %vm1002
      %vm1035 = vmand %vm1019, %vm1003
      %v1036 = vadd.s32 %v882, 16
      %v1037 = vadd.s32 %v889, 16
      %v1038 = vadd.s32 %v896, 16
      %v1039 = vadd.s32 %v903, 16
      %v1040 = vadd.s32 %v910, 16
      %v1041 = vadd.s32 %v917, 16
      %v1042 = vadd.s32 %v924, 16
      %v1043 = vadd.s32 %v931, 16
      %v1044 = vadd.s32 %v938, 16
      %v1045 = vadd.s32 %v945, 16
      %v1046 = vadd.s32 %v952, 16
      %v1047 = vadd.s32 %v959, 16
      %v1048 = vadd.s32 %v966, 16
      %v1049 = vadd.s32 %v973, 16
      %v1050 = vadd.s32 %v980, 16
      %v1051 = vadd.s32 %v987, 16
      %v1052 = vsel %vm1020, %v1036, %v882
      %v1053 = vsel %vm1021, %v1037, %v889
      %v1054 = vsel %vm1022, %v1038, %v896
      %v1055 = vsel %vm1023, %v1039, %v903
      %v1056 = vsel %vm1024, %v1040, %v910
      %v1057 = vsel %vm1025, %v1041, %v917
      %v1058 = vsel %vm1026, %v1042, %v924
      %v1059 = vsel %vm1027, %v1043, %v931
      %v1060 = vsel %vm1028, %v1044, %v938
      %v1061 = vsel %vm1029, %v1045, %v945
      %v1062 = vsel %vm1030, %v1046, %v952
      %v1063 = vsel %vm1031, %v1047, %v959
      %v1064 = vsel %vm1032, %v1048, %v966
      %v1065 = vsel %vm1033, %v1049, %v973
      %v1066 = vsel %vm1034, %v1050, %v980
      %v1067 = vsel %vm1035, %v1051, %v987
      %vm1068 = vcmp.ge.s32.totalorder %v1052, 1
      %vm1069 = vcmp.ge.s32.totalorder %v1053, 1
      %vm1070 = vcmp.ge.s32.totalorder %v1054, 1
      %vm1071 = vcmp.ge.s32.totalorder %v1055, 1
      %vm1072 = vcmp.ge.s32.totalorder %v1056, 1
      %vm1073 = vcmp.ge.s32.totalorder %v1057, 1
      %vm1074 = vcmp.ge.s32.totalorder %v1058, 1
      %vm1075 = vcmp.ge.s32.totalorder %v1059, 1
      %vm1076 = vcmp.ge.s32.totalorder %v1060, 1
      %vm1077 = vcmp.ge.s32.totalorder %v1061, 1
      %vm1078 = vcmp.ge.s32.totalorder %v1062, 1
      %vm1079 = vcmp.ge.s32.totalorder %v1063, 1
      %vm1080 = vcmp.ge.s32.totalorder %v1064, 1
      %vm1081 = vcmp.ge.s32.totalorder %v1065, 1
      %vm1082 = vcmp.ge.s32.totalorder %v1066, 1
      %vm1083 = vcmp.ge.s32.totalorder %v1067, 1
      %v1084 = vsel %vm1068, 1, 0
      %v1085 = vsel %vm1069, 1, 0
      %v1086 = vsel %vm1070, 1, 0
      %v1087 = vsel %vm1071, 1, 0
      %v1088 = vsel %vm1072, 1, 0
      %v1089 = vsel %vm1073, 1, 0
      %v1090 = vsel %vm1074, 1, 0
      %v1091 = vsel %vm1075, 1, 0
      %v1092 = vsel %vm1076, 1, 0
      %v1093 = vsel %vm1077, 1, 0
      %v1094 = vsel %vm1078, 1, 0
      %v1095 = vsel %vm1079, 1, 0
      %v1096 = vsel %vm1080, 1, 0
      %v1097 = vsel %vm1081, 1, 0
      %v1098 = vsel %vm1082, 1, 0
      %v1099 = vsel %vm1083, 1, 0
      %v1100 = vcvt.s32.f32 %v1084
      %v1101 = vcvt.s32.f32 %v1085
      %v1102 = vcvt.s32.f32 %v1086
      %v1103 = vcvt.s32.f32 %v1087
      %v1104 = vcvt.s32.f32 %v1088
      %v1105 = vcvt.s32.f32 %v1089
      %v1106 = vcvt.s32.f32 %v1090
      %v1107 = vcvt.s32.f32 %v1091
      %v1108 = vcvt.s32.f32 %v1092
      %v1109 = vcvt.s32.f32 %v1093
      %v1110 = vcvt.s32.f32 %v1094
      %v1111 = vcvt.s32.f32 %v1095
      %v1112 = vcvt.s32.f32 %v1096
      %v1113 = vcvt.s32.f32 %v1097
      %v1114 = vcvt.s32.f32 %v1098
      %v1115 = vcvt.s32.f32 %v1099
      %vm1116 = vcmp.le.s32.totalorder %v1052, 14
      %vm1117 = vcmp.le.s32.totalorder %v1053, 14
      %vm1118 = vcmp.le.s32.totalorder %v1054, 14
      %vm1119 = vcmp.le.s32.totalorder %v1055, 14
      %vm1120 = vcmp.le.s32.totalorder %v1056, 14
      %vm1121 = vcmp.le.s32.totalorder %v1057, 14
      %vm1122 = vcmp.le.s32.totalorder %v1058, 14
      %vm1123 = vcmp.le.s32.totalorder %v1059, 14
      %vm1124 = vcmp.le.s32.totalorder %v1060, 14
      %vm1125 = vcmp.le.s32.totalorder %v1061, 14
      %vm1126 = vcmp.le.s32.totalorder %v1062, 14
      %vm1127 = vcmp.le.s32.totalorder %v1063, 14
      %vm1128 = vcmp.le.s32.totalorder %v1064, 14
      %vm1129 = vcmp.le.s32.totalorder %v1065, 14
      %vm1130 = vcmp.le.s32.totalorder %v1066, 14
      %vm1131 = vcmp.le.s32.totalorder %v1067, 14
      %v1132 = vsel %vm1116, 1, 0
      %v1133 = vsel %vm1117, 1, 0
      %v1134 = vsel %vm1118, 1, 0
      %v1135 = vsel %vm1119, 1, 0
      %v1136 = vsel %vm1120, 1, 0
      %v1137 = vsel %vm1121, 1, 0
      %v1138 = vsel %vm1122, 1, 0
      %v1139 = vsel %vm1123, 1, 0
      %v1140 = vsel %vm1124, 1, 0
      %v1141 = vsel %vm1125, 1, 0
      %v1142 = vsel %vm1126, 1, 0
      %v1143 = vsel %vm1127, 1, 0
      %v1144 = vsel %vm1128, 1, 0
      %v1145 = vsel %vm1129, 1, 0
      %v1146 = vsel %vm1130, 1, 0
      %v1147 = vsel %vm1131, 1, 0
      %v1148 = vcvt.s32.f32 %v1132
      %v1149 = vcvt.s32.f32 %v1133
      %v1150 = vcvt.s32.f32 %v1134
      %v1151 = vcvt.s32.f32 %v1135
      %v1152 = vcvt.s32.f32 %v1136
      %v1153 = vcvt.s32.f32 %v1137
      %v1154 = vcvt.s32.f32 %v1138
      %v1155 = vcvt.s32.f32 %v1139
      %v1156 = vcvt.s32.f32 %v1140
      %v1157 = vcvt.s32.f32 %v1141
      %v1158 = vcvt.s32.f32 %v1142
      %v1159 = vcvt.s32.f32 %v1143
      %v1160 = vcvt.s32.f32 %v1144
      %v1161 = vcvt.s32.f32 %v1145
      %v1162 = vcvt.s32.f32 %v1146
      %v1163 = vcvt.s32.f32 %v1147
      %vm1164 = vcmask 261120
      %1165 = vst.msk [vmem:[#allocation2] sm:$0xff] %vm1164, 0.0
      %1166 = vst.msk [vmem:[#allocation2 + $0x8] sm:$0xff] %vm1164, 0.0
      %1167 = vst.msk [vmem:[#allocation2 + $0x10] sm:$0xff] %vm1164, 0.0
      %1168 = vst.msk [vmem:[#allocation2 + $0xb8] sm:$0xff] %vm1164, 0.0
      %1169 = vst.msk [vmem:[#allocation2 + $0xc0] sm:$0xff] %vm1164, 0.0
      %1170 = vst.msk [vmem:[#allocation2 + $0xc8] sm:$0xff] %vm1164, 0.0
      %v1171 = vpack.c.bf16 %v839, %v838
      %v1172 = vpack.c.bf16 %v841, %v840
      %v1173 = vpack.c.bf16 %v843, %v842
      %v1174 = vpack.c.bf16 %v845, %v844
      %v1175 = vpack.c.bf16 %v847, %v846
      %v1176 = vpack.c.bf16 %v849, %v848
      %v1177 = vpack.c.bf16 %v851, %v850
      %v1178 = vpack.c.bf16 %v853, %v852
      %v1179 = vpack.c.bf16 %v855, %v854
      %v1180 = vpack.c.bf16 %v857, %v856
      %v1181 = vld [vmem:[%s7] sm:$0xf]
      %v1182 = vld [vmem:[%s7 + $0x4] sm:$0xf]
      %v1183 = vld [vmem:[%s7 + $0x8] sm:$0xf]
      %v1184 = vld [vmem:[%s7 + $0xc] sm:$0xf]
      %v1189 = vunpack.c.l.b16 %v1181
      %v1190 = vunpack.c.l.b16 %v1182
      %v1191 = vunpack.c.l.b16 %v1183
      %v1192 = vunpack.c.l.b16 %v1184
      %v1193 = vpack.c.b16 %v1190, %v1189
      %v1194 = vpack.c.b16 %v1192, %v1191
      %v1198 = vsel %vm1164, %v1171, 0
      %v1201 = vsel %vm1164, %v1172, 0
      %v1204 = vsel %vm1164, %v1173, 0
      %v1207 = vsel %vm1164, %v1174, 0
      %v1210 = vsel %vm1164, %v1175, 0
      %v1213 = vsel %vm1164, %v1176, 0
      %v1216 = vsel %vm1164, %v1177, 0
      %v1219 = vsel %vm1164, %v1178, 0
      %v1222 = vsel %vm1164, %v1179, 0
      %v1225 = vsel %vm1164, %v1180, 0
      %1227 = vmatpush.bf16.msra.mxu0 0
      %1228 = vmatpush.bf16.msra.mxu0 0
      %1229 = vmatpush.bf16.msra.mxu0 0
      %1230 = vmatpush.bf16.msra.mxu0 0
      %1231 = vmatpush.bf16.msra.mxu0 0
      %1232 = vmatpush.bf16.msra.mxu0 0
      %1233 = vmatpush.bf16.msra.mxu0 %v1194
      %1234 = vmatpush.bf16.msra.mxu0 %v1193
      %1235 = vmatmul.bf16.gmra.mxu0 %v1198
      %v1236 = vpop.f32.mrf.mxu0
      %v1237 = vadd.f32 0.0, %v1236
      %v1238 = vpop.f32.mrf.mxu0
      %v1239 = vadd.f32 0.0, %v1238
      %1240 = vmatmul.bf16.gmra.mxu0 %v1201
      %v1241 = vpop.f32.mrf.mxu0
      %v1242 = vadd.f32 0.0, %v1241
      %v1243 = vpop.f32.mrf.mxu0
      %v1244 = vadd.f32 0.0, %v1243
      %1245 = vmatmul.bf16.gmra.mxu0 %v1204
      %v1246 = vpop.f32.mrf.mxu0
      %v1247 = vadd.f32 0.0, %v1246
      %v1248 = vpop.f32.mrf.mxu0
      %v1249 = vadd.f32 0.0, %v1248
      %1250 = vmatmul.bf16.gmra.mxu0 %v1207
      %v1251 = vpop.f32.mrf.mxu0
      %v1252 = vadd.f32 0.0, %v1251
      %v1253 = vpop.f32.mrf.mxu0
      %v1254 = vadd.f32 0.0, %v1253
      %1255 = vmatmul.bf16.gmra.mxu0 %v1210
      %v1256 = vpop.f32.mrf.mxu0
      %v1257 = vadd.f32 0.0, %v1256
      %v1258 = vpop.f32.mrf.mxu0
      %v1259 = vadd.f32 0.0, %v1258
      %1260 = vmatmul.bf16.gmra.mxu0 %v1213
      %v1261 = vpop.f32.mrf.mxu0
      %v1262 = vadd.f32 0.0, %v1261
      %v1263 = vpop.f32.mrf.mxu0
      %v1264 = vadd.f32 0.0, %v1263
      %1265 = vmatmul.bf16.gmra.mxu0 %v1216
      %v1266 = vpop.f32.mrf.mxu0
      %v1267 = vadd.f32 0.0, %v1266
      %v1268 = vpop.f32.mrf.mxu0
      %v1269 = vadd.f32 0.0, %v1268
      %1270 = vmatmul.bf16.gmra.mxu0 %v1219
      %v1271 = vpop.f32.mrf.mxu0
      %v1272 = vadd.f32 0.0, %v1271
      %v1273 = vpop.f32.mrf.mxu0
      %v1274 = vadd.f32 0.0, %v1273
      %1275 = vmatmul.bf16.gmra.mxu0 %v1222
      %v1276 = vpop.f32.mrf.mxu0
      %v1277 = vadd.f32 0.0, %v1276
      %v1278 = vpop.f32.mrf.mxu0
      %v1279 = vadd.f32 0.0, %v1278
      %1280 = vmatmul.bf16.gmra.mxu0 %v1225
      %v1281 = vpop.f32.mrf.mxu0
      %v1282 = vadd.f32 0.0, %v1281
      %v1283 = vpop.f32.mrf.mxu0
      %v1284 = vadd.f32 0.0, %v1283
      %1285 = vdwg.mxu0
      %v1286 = vld [vmem:[%s8] sm:$0x1]
      %v1288 = vperm.slane %v1286, 0
      %v1290 = vmul.f32 %v1237, %v1288
      %v1291 = vmul.f32 %v1239, %v1288
      %v1292 = vmul.f32 %v1242, %v1288
      %v1293 = vmul.f32 %v1244, %v1288
      %v1294 = vmul.f32 %v1247, %v1288
      %v1295 = vmul.f32 %v1249, %v1288
      %v1296 = vmul.f32 %v1252, %v1288
      %v1297 = vmul.f32 %v1254, %v1288
      %v1298 = vmul.f32 %v1257, %v1288
      %v1299 = vmul.f32 %v1259, %v1288
      %v1300 = vmul.f32 %v1262, %v1288
      %v1301 = vmul.f32 %v1264, %v1288
      %v1302 = vmul.f32 %v1267, %v1288
      %v1303 = vmul.f32 %v1269, %v1288
      %v1304 = vmul.f32 %v1272, %v1288
      %v1305 = vmul.f32 %v1274, %v1288
      %v1306 = vmul.f32 %v1277, %v1288
      %v1307 = vmul.f32 %v1279, %v1288
      %v1308 = vmul.f32 %v1282, %v1288
      %v1309 = vmul.f32 %v1284, %v1288
      %v1310 = vld [vmem:[%s9] sm:$0x1]
      %v1312 = vperm.slane %v1310, 0
      %v1314 = vadd.f32 %v1290, %v1312
      %v1315 = vadd.f32 %v1291, %v1312
      %v1316 = vadd.f32 %v1292, %v1312
      %v1317 = vadd.f32 %v1293, %v1312
      %v1318 = vadd.f32 %v1294, %v1312
      %v1319 = vadd.f32 %v1295, %v1312
      %v1320 = vadd.f32 %v1296, %v1312
      %v1321 = vadd.f32 %v1297, %v1312
      %v1322 = vadd.f32 %v1298, %v1312
      %v1323 = vadd.f32 %v1299, %v1312
      %v1324 = vadd.f32 %v1300, %v1312
      %v1325 = vadd.f32 %v1301, %v1312
      %v1326 = vadd.f32 %v1302, %v1312
      %v1327 = vadd.f32 %v1303, %v1312
      %v1328 = vadd.f32 %v1304, %v1312
      %v1329 = vadd.f32 %v1305, %v1312
      %v1330 = vadd.f32 %v1306, %v1312
      %v1331 = vadd.f32 %v1307, %v1312
      %v1332 = vadd.f32 %v1308, %v1312
      %v1333 = vadd.f32 %v1309, %v1312
      %v1334 = vmul.f32 %v1314, 0.1
      %v1335 = vmul.f32 %v1315, 0.1
      %v1336 = vmul.f32 %v1316, 0.1
      %v1337 = vmul.f32 %v1317, 0.1
      %v1338 = vmul.f32 %v1318, 0.1
      %v1339 = vmul.f32 %v1319, 0.1
      %v1340 = vmul.f32 %v1320, 0.1
      %v1341 = vmul.f32 %v1321, 0.1
      %v1342 = vmul.f32 %v1322, 0.1
      %v1343 = vmul.f32 %v1323, 0.1
      %v1344 = vmul.f32 %v1324, 0.1
      %v1345 = vmul.f32 %v1325, 0.1
      %v1346 = vmul.f32 %v1326, 0.1
      %v1347 = vmul.f32 %v1327, 0.1
      %v1348 = vmul.f32 %v1328, 0.1
      %v1349 = vmul.f32 %v1329, 0.1
      %v1350 = vmul.f32 %v1330, 0.1
      %v1351 = vmul.f32 %v1331, 0.1
      %v1352 = vmul.f32 %v1332, 0.1
      %v1353 = vmul.f32 %v1333, 0.1
      %v1354 = vmax.f32 %v1314, %v1334
      %v1355 = vmax.f32 %v1315, %v1335
      %v1356 = vmax.f32 %v1316, %v1336
      %v1357 = vmax.f32 %v1317, %v1337
      %v1358 = vmax.f32 %v1318, %v1338
      %v1359 = vmax.f32 %v1319, %v1339
      %v1360 = vmax.f32 %v1320, %v1340
      %v1361 = vmax.f32 %v1321, %v1341
      %v1362 = vmax.f32 %v1322, %v1342
      %v1363 = vmax.f32 %v1323, %v1343
      %v1364 = vmax.f32 %v1324, %v1344
      %v1365 = vmax.f32 %v1325, %v1345
      %v1366 = vmax.f32 %v1326, %v1346
      %v1367 = vmax.f32 %v1327, %v1347
      %v1368 = vmax.f32 %v1328, %v1348
      %v1369 = vmax.f32 %v1329, %v1349
      %v1370 = vmax.f32 %v1330, %v1350
      %v1371 = vmax.f32 %v1331, %v1351
      %v1372 = vmax.f32 %v1332, %v1352
      %v1373 = vmax.f32 %v1333, %v1353
      %1374 = vst.msk [vmem:[#allocation2 + $0x18] sm:$0xff] %vm1164, %v1354
      %1375 = vst.msk [vmem:[#allocation2 + $0x20] sm:$0xff] %vm1164, %v1355
      %1376 = vst.msk [vmem:[#allocation2 + $0x28] sm:$0xff] %vm1164, %v1356
      %1377 = vst.msk [vmem:[#allocation2 + $0x30] sm:$0xff] %vm1164, %v1357
      %1378 = vst.msk [vmem:[#allocation2 + $0x38] sm:$0xff] %vm1164, %v1358
      %1379 = vst.msk [vmem:[#allocation2 + $0x40] sm:$0xff] %vm1164, %v1359
      %1380 = vst.msk [vmem:[#allocation2 + $0x48] sm:$0xff] %vm1164, %v1360
      %1381 = vst.msk [vmem:[#allocation2 + $0x50] sm:$0xff] %vm1164, %v1361
      %1382 = vst.msk [vmem:[#allocation2 + $0x58] sm:$0xff] %vm1164, %v1362
      %1383 = vst.msk [vmem:[#allocation2 + $0x60] sm:$0xff] %vm1164, %v1363
      %1384 = vst.msk [vmem:[#allocation2 + $0x68] sm:$0xff] %vm1164, %v1364
      %1385 = vst.msk [vmem:[#allocation2 + $0x70] sm:$0xff] %vm1164, %v1365
      %1386 = vst.msk [vmem:[#allocation2 + $0x78] sm:$0xff] %vm1164, %v1366
      %1387 = vst.msk [vmem:[#allocation2 + $0x80] sm:$0xff] %vm1164, %v1367
      %1388 = vst.msk [vmem:[#allocation2 + $0x88] sm:$0xff] %vm1164, %v1368
      %1389 = vst.msk [vmem:[#allocation2 + $0x90] sm:$0xff] %vm1164, %v1369
      %1390 = vst.msk [vmem:[#allocation2 + $0x98] sm:$0xff] %vm1164, %v1370
      %1391 = vst.msk [vmem:[#allocation2 + $0xa0] sm:$0xff] %vm1164, %v1371
      %1392 = vst.msk [vmem:[#allocation2 + $0xa8] sm:$0xff] %vm1164, %v1372
      %1393 = vst.msk [vmem:[#allocation2 + $0xb0] sm:$0xff] %vm1164, %v1373
      %p1394 = scmp.eq.s32.totalorder %s33, 0
      // Predicated region
      $region89: #{tpu_custom_call.1} parent=87 // pred_check
        %p1395 = pneg %p1394
      $region90: #{tpu_custom_call.1} parent=87 // pred_check_branch
        %1397 = sbr.rel (%p1395) target = $region92
      $region91: #{tpu_custom_call.1} parent=87 // pred_region
        %1398 = vst.msk [vmem:[#allocation2 + $0x18] sm:$0xff] %vm1164, 0.0
        %1399 = vst.msk [vmem:[#allocation2 + $0x20] sm:$0xff] %vm1164, 0.0
      $region92: #{tpu_custom_call.1} parent=87 // pred_fallthru
        _
      %p1400 = scmp.eq.s32.totalorder %s33, 1
      // Predicated region
      $region93: #{tpu_custom_call.1} parent=87 // pred_check
        %p1401 = pneg %p1400
      $region94: #{tpu_custom_call.1} parent=87 // pred_check_branch
        %1403 = sbr.rel (%p1401) target = $region96
      $region95: #{tpu_custom_call.1} parent=87 // pred_region
        %1404 = vst.msk [vmem:[#allocation2 + $0xa8] sm:$0xff] %vm1164, 0.0
        %1405 = vst.msk [vmem:[#allocation2 + $0xb0] sm:$0xff] %vm1164, 0.0
      $region96: #{tpu_custom_call.1} parent=87 // pred_fallthru
        _
      %v1406 = vld [vmem:[#allocation2 + $0x7] sm:$0xff]
      %v1407 = vld [vmem:[#allocation2 + $0xf] sm:$0xff]
      %v1408 = vld [vmem:[#allocation2 + $0x17] sm:$0xff]
      %v1409 = vld [vmem:[#allocation2 + $0x1f] sm:$0xff]
      %v1410 = vld [vmem:[#allocation2 + $0x27] sm:$0xff]
      %v1411 = vld [vmem:[#allocation2 + $0x2f] sm:$0xff]
      %v1412 = vld [vmem:[#allocation2 + $0x37] sm:$0xff]
      %v1413 = vld [vmem:[#allocation2 + $0x3f] sm:$0xff]
      %v1414 = vld [vmem:[#allocation2 + $0x47] sm:$0xff]
      %v1415 = vld [vmem:[#allocation2 + $0x4f] sm:$0xff]
      %v1416 = vld [vmem:[#allocation2 + $0x57] sm:$0xff]
      %v1417 = vld [vmem:[#allocation2 + $0x5f] sm:$0xff]
      %v1418 = vld [vmem:[#allocation2 + $0x67] sm:$0xff]
      %v1419 = vld [vmem:[#allocation2 + $0x6f] sm:$0xff]
      %v1420 = vld [vmem:[#allocation2 + $0x77] sm:$0xff]
      %v1421 = vld [vmem:[#allocation2 + $0x7f] sm:$0xff]
      %v1422 = vld [vmem:[#allocation2 + $0x87] sm:$0xff]
      %v1423 = vld [vmem:[#allocation2 + $0x8f] sm:$0xff]
      %v1424 = vld [vmem:[#allocation2 + $0x97] sm:$0xff]
      %v1425 = vld [vmem:[#allocation2 + $0x9f] sm:$0xff]
      %v1426 = vpack.c.bf16 %v1407, %v1406
      %v1427 = vpack.c.bf16 %v1409, %v1408
      %v1428 = vpack.c.bf16 %v1411, %v1410
      %v1429 = vpack.c.bf16 %v1413, %v1412
      %v1430 = vpack.c.bf16 %v1415, %v1414
      %v1431 = vpack.c.bf16 %v1417, %v1416
      %v1432 = vpack.c.bf16 %v1419, %v1418
      %v1433 = vpack.c.bf16 %v1421, %v1420
      %v1434 = vpack.c.bf16 %v1423, %v1422
      %v1435 = vpack.c.bf16 %v1425, %v1424
      %v1436 = vld [vmem:[%s10] sm:$0xf]
      %v1437 = vld [vmem:[%s10 + $0x4] sm:$0xf]
      %v1438 = vld [vmem:[%s10 + $0x8] sm:$0xf]
      %v1439 = vld [vmem:[%s10 + $0xc] sm:$0xf]
      %v1440 = vld [vmem:[#allocation2 + $0xa7] sm:$0xff]
      %v1441 = vld [vmem:[#allocation2 + $0xaf] sm:$0xff]
      %v1442 = vpack.c.bf16 %v1441, %v1440
      %s1443 = scalar_lea.vmem %s10, 48
      %v1444 = vld [vmem:[%s1443] sm:$0xf]
      %v1445 = vld [vmem:[%s1443 + $0x4] sm:$0xf]
      %v1446 = vld [vmem:[%s1443 + $0x8] sm:$0xf]
      %v1447 = vld [vmem:[%s1443 + $0xc] sm:$0xf]
      %v1452 = vunpack.c.l.b16 %v1444
      %v1453 = vunpack.c.l.b16 %v1445
      %v1454 = vunpack.c.l.b16 %v1446
      %v1455 = vunpack.c.l.b16 %v1447
      %v1456 = vpack.c.b16 %v1453, %v1452
      %v1457 = vpack.c.b16 %v1455, %v1454
      %v1461 = vsel %vm1164, %v1427, 0
      %v1464 = vsel %vm1164, %v1428, 0
      %v1467 = vsel %vm1164, %v1429, 0
      %v1470 = vsel %vm1164, %v1430, 0
      %v1473 = vsel %vm1164, %v1431, 0
      %v1476 = vsel %vm1164, %v1432, 0
      %v1479 = vsel %vm1164, %v1433, 0
      %v1482 = vsel %vm1164, %v1434, 0
      %v1485 = vsel %vm1164, %v1435, 0
      %v1488 = vsel %vm1164, %v1442, 0
      %1490 = vmatpush.bf16.msra.mxu0 0
      %1491 = vmatpush.bf16.msra.mxu0 0
      %1492 = vmatpush.bf16.msra.mxu0 0
      %1493 = vmatpush.bf16.msra.mxu0 0
      %1494 = vmatpush.bf16.msra.mxu0 0
      %1495 = vmatpush.bf16.msra.mxu0 0
      %1496 = vmatpush.bf16.msra.mxu0 %v1457
      %1497 = vmatpush.bf16.msra.mxu0 %v1456
      %1498 = vmatmul.bf16.gmra.mxu0 %v1461
      %v1499 = vpop.f32.mrf.mxu0
      %v1500 = vpop.f32.mrf.mxu0
      %1501 = vmatmul.bf16.gmra.mxu0 %v1464
      %v1502 = vpop.f32.mrf.mxu0
      %v1503 = vadd.f32 0.0, %v1502
      %v1504 = vpop.f32.mrf.mxu0
      %v1505 = vadd.f32 0.0, %v1504
      %1506 = vmatmul.bf16.gmra.mxu0 %v1467
      %v1507 = vpop.f32.mrf.mxu0
      %v1508 = vadd.f32 0.0, %v1507
      %v1509 = vpop.f32.mrf.mxu0
      %v1510 = vadd.f32 0.0, %v1509
      %1511 = vmatmul.bf16.gmra.mxu0 %v1470
      %v1512 = vpop.f32.mrf.mxu0
      %v1513 = vadd.f32 0.0, %v1512
      %v1514 = vpop.f32.mrf.mxu0
      %v1515 = vadd.f32 0.0, %v1514
      %1516 = vmatmul.bf16.gmra.mxu0 %v1473
      %v1517 = vpop.f32.mrf.mxu0
      %v1518 = vadd.f32 0.0, %v1517
      %v1519 = vpop.f32.mrf.mxu0
      %v1520 = vadd.f32 0.0, %v1519
      %1521 = vmatmul.bf16.gmra.mxu0 %v1476
      %v1522 = vpop.f32.mrf.mxu0
      %v1523 = vadd.f32 0.0, %v1522
      %v1524 = vpop.f32.mrf.mxu0
      %v1525 = vadd.f32 0.0, %v1524
      %1526 = vmatmul.bf16.gmra.mxu0 %v1479
      %v1527 = vpop.f32.mrf.mxu0
      %v1528 = vadd.f32 0.0, %v1527
      %v1529 = vpop.f32.mrf.mxu0
      %v1530 = vadd.f32 0.0, %v1529
      %1531 = vmatmul.bf16.gmra.mxu0 %v1482
      %v1532 = vpop.f32.mrf.mxu0
      %v1533 = vadd.f32 0.0, %v1532
      %v1534 = vpop.f32.mrf.mxu0
      %v1535 = vadd.f32 0.0, %v1534
      %1536 = vmatmul.bf16.gmra.mxu0 %v1485
      %v1537 = vpop.f32.mrf.mxu0
      %v1538 = vadd.f32 0.0, %v1537
      %v1539 = vpop.f32.mrf.mxu0
      %v1540 = vadd.f32 0.0, %v1539
      %1541 = vmatmul.bf16.gmra.mxu0 %v1488
      %v1542 = vpop.f32.mrf.mxu0
      %v1543 = vpop.f32.mrf.mxu0
      %1544 = vdwg.mxu0
      %v1549 = vunpack.c.l.b16 %v1436
      %v1550 = vunpack.c.l.b16 %v1437
      %v1551 = vunpack.c.l.b16 %v1438
      %v1552 = vunpack.c.l.b16 %v1439
      %v1553 = vpack.c.b16 %v1550, %v1549
      %v1554 = vpack.c.b16 %v1552, %v1551
      %v1558 = vsel %vm1164, %v1426, 0
      %1560 = vmatpush.bf16.msra.mxu0 0
      %1561 = vmatpush.bf16.msra.mxu0 0
      %1562 = vmatpush.bf16.msra.mxu0 0
      %1563 = vmatpush.bf16.msra.mxu0 0
      %1564 = vmatpush.bf16.msra.mxu0 0
      %1565 = vmatpush.bf16.msra.mxu0 0
      %1566 = vmatpush.bf16.msra.mxu0 %v1554
      %1567 = vmatpush.bf16.msra.mxu0 %v1553
      %1568 = vmatmul.bf16.gmra.mxu0 %v1558
      %v1569 = vpop.f32.mrf.mxu0
      %v1570 = vpop.f32.mrf.mxu0
      %1571 = vmatmul.bf16.gmra.mxu0 %v1461
      %v1572 = vpop.f32.mrf.mxu0
      %v1573 = vadd.f32 %v1503, %v1572
      %v1574 = vpop.f32.mrf.mxu0
      %v1575 = vadd.f32 %v1505, %v1574
      %1576 = vmatmul.bf16.gmra.mxu0 %v1464
      %v1577 = vpop.f32.mrf.mxu0
      %v1578 = vadd.f32 %v1508, %v1577
      %v1579 = vpop.f32.mrf.mxu0
      %v1580 = vadd.f32 %v1510, %v1579
      %1581 = vmatmul.bf16.gmra.mxu0 %v1467
      %v1582 = vpop.f32.mrf.mxu0
      %v1583 = vadd.f32 %v1513, %v1582
      %v1584 = vpop.f32.mrf.mxu0
      %v1585 = vadd.f32 %v1515, %v1584
      %1586 = vmatmul.bf16.gmra.mxu0 %v1470
      %v1587 = vpop.f32.mrf.mxu0
      %v1588 = vadd.f32 %v1518, %v1587
      %v1589 = vpop.f32.mrf.mxu0
      %v1590 = vadd.f32 %v1520, %v1589
      %1591 = vmatmul.bf16.gmra.mxu0 %v1473
      %v1592 = vpop.f32.mrf.mxu0
      %v1593 = vadd.f32 %v1523, %v1592
      %v1594 = vpop.f32.mrf.mxu0
      %v1595 = vadd.f32 %v1525, %v1594
      %1596 = vmatmul.bf16.gmra.mxu0 %v1476
      %v1597 = vpop.f32.mrf.mxu0
      %v1598 = vadd.f32 %v1528, %v1597
      %v1599 = vpop.f32.mrf.mxu0
      %v1600 = vadd.f32 %v1530, %v1599
      %1601 = vmatmul.bf16.gmra.mxu0 %v1479
      %v1602 = vpop.f32.mrf.mxu0
      %v1603 = vadd.f32 %v1533, %v1602
      %v1604 = vpop.f32.mrf.mxu0
      %v1605 = vadd.f32 %v1535, %v1604
      %1606 = vmatmul.bf16.gmra.mxu0 %v1482
      %v1607 = vpop.f32.mrf.mxu0
      %v1608 = vadd.f32 %v1538, %v1607
      %v1609 = vpop.f32.mrf.mxu0
      %v1610 = vadd.f32 %v1540, %v1609
      %1611 = vmatmul.bf16.gmra.mxu0 %v1485
      %v1612 = vpop.f32.mrf.mxu0
      %v1613 = vpop.f32.mrf.mxu0
      %1614 = vdwg.mxu0
      %v1615 = vld [vmem:[#allocation2 + $0x27] sm:$0xff]
      %v1616 = vld [vmem:[#allocation2 + $0x2f] sm:$0xff]
      %v1617 = vld [vmem:[#allocation2 + $0x37] sm:$0xff]
      %v1618 = vld [vmem:[#allocation2 + $0x3f] sm:$0xff]
      %v1619 = vld [vmem:[#allocation2 + $0x47] sm:$0xff]
      %v1620 = vld [vmem:[#allocation2 + $0x4f] sm:$0xff]
      %v1621 = vld [vmem:[#allocation2 + $0x57] sm:$0xff]
      %v1622 = vld [vmem:[#allocation2 + $0x5f] sm:$0xff]
      %v1623 = vld [vmem:[#allocation2 + $0x67] sm:$0xff]
      %v1624 = vld [vmem:[#allocation2 + $0x6f] sm:$0xff]
      %v1625 = vld [vmem:[#allocation2 + $0x77] sm:$0xff]
      %v1626 = vld [vmem:[#allocation2 + $0x7f] sm:$0xff]
      %v1627 = vld [vmem:[#allocation2 + $0x87] sm:$0xff]
      %v1628 = vld [vmem:[#allocation2 + $0x8f] sm:$0xff]
      %v1629 = vld [vmem:[#allocation2 + $0x97] sm:$0xff]
      %v1630 = vld [vmem:[#allocation2 + $0x9f] sm:$0xff]
      %v1631 = vld [vmem:[#allocation2 + $0xa7] sm:$0xff]
      %v1632 = vld [vmem:[#allocation2 + $0xaf] sm:$0xff]
      %v1633 = vld [vmem:[#allocation2 + $0xb7] sm:$0xff]
      %v1634 = vld [vmem:[#allocation2 + $0xbf] sm:$0xff]
      %v1635 = vpack.c.bf16 %v1616, %v1615
      %v1636 = vpack.c.bf16 %v1618, %v1617
      %v1637 = vpack.c.bf16 %v1620, %v1619
      %v1638 = vpack.c.bf16 %v1622, %v1621
      %v1639 = vpack.c.bf16 %v1624, %v1623
      %v1640 = vpack.c.bf16 %v1626, %v1625
      %v1641 = vpack.c.bf16 %v1628, %v1627
      %v1642 = vpack.c.bf16 %v1630, %v1629
      %v1643 = vpack.c.bf16 %v1632, %v1631
      %v1644 = vpack.c.bf16 %v1634, %v1633
      %s1645 = scalar_lea.vmem %s10, 96
      %v1646 = vld [vmem:[%s1645] sm:$0xf]
      %v1647 = vld [vmem:[%s1645 + $0x4] sm:$0xf]
      %v1648 = vld [vmem:[%s1645 + $0x8] sm:$0xf]
      %v1649 = vld [vmem:[%s1645 + $0xc] sm:$0xf]
      %v1654 = vunpack.c.l.b16 %v1646
      %v1655 = vunpack.c.l.b16 %v1647
      %v1656 = vunpack.c.l.b16 %v1648
      %v1657 = vunpack.c.l.b16 %v1649
      %v1658 = vpack.c.b16 %v1655, %v1654
      %v1659 = vpack.c.b16 %v1657, %v1656
      %v1663 = vsel %vm1164, %v1635, 0
      %v1666 = vsel %vm1164, %v1636, 0
      %v1669 = vsel %vm1164, %v1637, 0
      %v1672 = vsel %vm1164, %v1638, 0
      %v1675 = vsel %vm1164, %v1639, 0
      %v1678 = vsel %vm1164, %v1640, 0
      %v1681 = vsel %vm1164, %v1641, 0
      %v1684 = vsel %vm1164, %v1642, 0
      %v1687 = vsel %vm1164, %v1643, 0
      %v1690 = vsel %vm1164, %v1644, 0
      %1692 = vmatpush.bf16.msra.mxu0 0
      %1693 = vmatpush.bf16.msra.mxu0 0
      %1694 = vmatpush.bf16.msra.mxu0 0
      %1695 = vmatpush.bf16.msra.mxu0 0
      %1696 = vmatpush.bf16.msra.mxu0 0
      %1697 = vmatpush.bf16.msra.mxu0 0
      %1698 = vmatpush.bf16.msra.mxu0 %v1659
      %1699 = vmatpush.bf16.msra.mxu0 %v1658
      %1700 = vmatmul.bf16.gmra.mxu0 %v1663
      %v1701 = vpop.f32.mrf.mxu0
      %v1702 = vpop.f32.mrf.mxu0
      %1703 = vmatmul.bf16.gmra.mxu0 %v1666
      %v1704 = vpop.f32.mrf.mxu0
      %v1705 = vadd.f32 0.0, %v1704
      %v1706 = vpop.f32.mrf.mxu0
      %v1707 = vadd.f32 0.0, %v1706
      %1708 = vmatmul.bf16.gmra.mxu0 %v1669
      %v1709 = vpop.f32.mrf.mxu0
      %v1710 = vadd.f32 0.0, %v1709
      %v1711 = vpop.f32.mrf.mxu0
      %v1712 = vadd.f32 0.0, %v1711
      %1713 = vmatmul.bf16.gmra.mxu0 %v1672
      %v1714 = vpop.f32.mrf.mxu0
      %v1715 = vadd.f32 0.0, %v1714
      %v1716 = vpop.f32.mrf.mxu0
      %v1717 = vadd.f32 0.0, %v1716
      %1718 = vmatmul.bf16.gmra.mxu0 %v1675
      %v1719 = vpop.f32.mrf.mxu0
      %v1720 = vadd.f32 0.0, %v1719
      %v1721 = vpop.f32.mrf.mxu0
      %v1722 = vadd.f32 0.0, %v1721
      %1723 = vmatmul.bf16.gmra.mxu0 %v1678
      %v1724 = vpop.f32.mrf.mxu0
      %v1725 = vadd.f32 0.0, %v1724
      %v1726 = vpop.f32.mrf.mxu0
      %v1727 = vadd.f32 0.0, %v1726
      %1728 = vmatmul.bf16.gmra.mxu0 %v1681
      %v1729 = vpop.f32.mrf.mxu0
      %v1730 = vadd.f32 0.0, %v1729
      %v1731 = vpop.f32.mrf.mxu0
      %v1732 = vadd.f32 0.0, %v1731
      %1733 = vmatmul.bf16.gmra.mxu0 %v1684
      %v1734 = vpop.f32.mrf.mxu0
      %v1735 = vadd.f32 0.0, %v1734
      %v1736 = vpop.f32.mrf.mxu0
      %v1737 = vadd.f32 0.0, %v1736
      %1738 = vmatmul.bf16.gmra.mxu0 %v1687
      %v1739 = vpop.f32.mrf.mxu0
      %v1740 = vadd.f32 0.0, %v1739
      %v1741 = vpop.f32.mrf.mxu0
      %v1742 = vadd.f32 0.0, %v1741
      %1743 = vmatmul.bf16.gmra.mxu0 %v1690
      %v1744 = vpop.f32.mrf.mxu0
      %v1745 = vpop.f32.mrf.mxu0
      %1746 = vdwg.mxu0
      %v1747 = vadd.f32 %v1573, %v1705
      %v1748 = vadd.f32 %v1575, %v1707
      %v1749 = vadd.f32 %v1578, %v1710
      %v1750 = vadd.f32 %v1580, %v1712
      %v1751 = vadd.f32 %v1583, %v1715
      %v1752 = vadd.f32 %v1585, %v1717
      %v1753 = vadd.f32 %v1588, %v1720
      %v1754 = vadd.f32 %v1590, %v1722
      %v1755 = vadd.f32 %v1593, %v1725
      %v1756 = vadd.f32 %v1595, %v1727
      %v1757 = vadd.f32 %v1598, %v1730
      %v1758 = vadd.f32 %v1600, %v1732
      %v1759 = vadd.f32 %v1603, %v1735
      %v1760 = vadd.f32 %v1605, %v1737
      %v1761 = vadd.f32 %v1608, %v1740
      %v1762 = vadd.f32 %v1610, %v1742
      %v1763 = vld [vmem:[#allocation2 + $0x8] sm:$0xff]
      %v1764 = vld [vmem:[#allocation2 + $0x10] sm:$0xff]
      %v1765 = vld [vmem:[#allocation2 + $0x18] sm:$0xff]
      %v1766 = vld [vmem:[#allocation2 + $0x20] sm:$0xff]
      %v1767 = vld [vmem:[#allocation2 + $0x28] sm:$0xff]
      %v1768 = vld [vmem:[#allocation2 + $0x30] sm:$0xff]
      %v1769 = vld [vmem:[#allocation2 + $0x38] sm:$0xff]
      %v1770 = vld [vmem:[#allocation2 + $0x40] sm:$0xff]
      %v1771 = vld [vmem:[#allocation2 + $0x48] sm:$0xff]
      %v1772 = vld [vmem:[#allocation2 + $0x50] sm:$0xff]
      %v1773 = vld [vmem:[#allocation2 + $0x58] sm:$0xff]
      %v1774 = vld [vmem:[#allocation2 + $0x60] sm:$0xff]
      %v1775 = vld [vmem:[#allocation2 + $0x68] sm:$0xff]
      %v1776 = vld [vmem:[#allocation2 + $0x70] sm:$0xff]
      %v1777 = vld [vmem:[#allocation2 + $0x78] sm:$0xff]
      %v1778 = vld [vmem:[#allocation2 + $0x80] sm:$0xff]
      %v1779 = vld [vmem:[#allocation2 + $0x88] sm:$0xff]
      %v1780 = vld [vmem:[#allocation2 + $0x90] sm:$0xff]
      %v1781 = vld [vmem:[#allocation2 + $0x98] sm:$0xff]
      %v1782 = vld [vmem:[#allocation2 + $0xa0] sm:$0xff]
      %v1783 = vpack.c.bf16 %v1764, %v1763
      %v1784 = vpack.c.bf16 %v1766, %v1765
      %v1785 = vpack.c.bf16 %v1768, %v1767
      %v1786 = vpack.c.bf16 %v1770, %v1769
      %v1787 = vpack.c.bf16 %v1772, %v1771
      %v1788 = vpack.c.bf16 %v1774, %v1773
      %v1789 = vpack.c.bf16 %v1776, %v1775
      %v1790 = vpack.c.bf16 %v1778, %v1777
      %v1791 = vpack.c.bf16 %v1780, %v1779
      %v1792 = vpack.c.bf16 %v1782, %v1781
      %s1793 = scalar_lea.vmem %s10, 16
      %v1794 = vld [vmem:[%s1793] sm:$0xf]
      %v1795 = vld [vmem:[%s1793 + $0x4] sm:$0xf]
      %v1796 = vld [vmem:[%s1793 + $0x8] sm:$0xf]
      %v1797 = vld [vmem:[%s1793 + $0xc] sm:$0xf]
      %v1798 = vld [vmem:[#allocation2 + $0xa8] sm:$0xff]
      %v1799 = vld [vmem:[#allocation2 + $0xb0] sm:$0xff]
      %v1800 = vpack.c.bf16 %v1799, %v1798
      %s1801 = scalar_lea.vmem %s10, 64
      %v1802 = vld [vmem:[%s1801] sm:$0xf]
      %v1803 = vld [vmem:[%s1801 + $0x4] sm:$0xf]
      %v1804 = vld [vmem:[%s1801 + $0x8] sm:$0xf]
      %v1805 = vld [vmem:[%s1801 + $0xc] sm:$0xf]
      %v1810 = vunpack.c.l.b16 %v1802
      %v1811 = vunpack.c.l.b16 %v1803
      %v1812 = vunpack.c.l.b16 %v1804
      %v1813 = vunpack.c.l.b16 %v1805
      %v1814 = vpack.c.b16 %v1811, %v1810
      %v1815 = vpack.c.b16 %v1813, %v1812
      %v1819 = vsel %vm1164, %v1784, 0
      %v1822 = vsel %vm1164, %v1785, 0
      %v1825 = vsel %vm1164, %v1786, 0
      %v1828 = vsel %vm1164, %v1787, 0
      %v1831 = vsel %vm1164, %v1788, 0
      %v1834 = vsel %vm1164, %v1789, 0
      %v1837 = vsel %vm1164, %v1790, 0
      %v1840 = vsel %vm1164, %v1791, 0
      %v1843 = vsel %vm1164, %v1792, 0
      %v1846 = vsel %vm1164, %v1800, 0
      %1848 = vmatpush.bf16.msra.mxu0 0
      %1849 = vmatpush.bf16.msra.mxu0 0
      %1850 = vmatpush.bf16.msra.mxu0 0
      %1851 = vmatpush.bf16.msra.mxu0 0
      %1852 = vmatpush.bf16.msra.mxu0 0
      %1853 = vmatpush.bf16.msra.mxu0 0
      %1854 = vmatpush.bf16.msra.mxu0 %v1815
      %1855 = vmatpush.bf16.msra.mxu0 %v1814
      %1856 = vmatmul.bf16.gmra.mxu0 %v1819
      %v1857 = vpop.f32.mrf.mxu0
      %v1858 = vpop.f32.mrf.mxu0
      %1859 = vmatmul.bf16.gmra.mxu0 %v1822
      %v1860 = vpop.f32.mrf.mxu0
      %v1861 = vadd.f32 0.0, %v1860
      %v1862 = vpop.f32.mrf.mxu0
      %v1863 = vadd.f32 0.0, %v1862
      %1864 = vmatmul.bf16.gmra.mxu0 %v1825
      %v1865 = vpop.f32.mrf.mxu0
      %v1866 = vadd.f32 0.0, %v1865
      %v1867 = vpop.f32.mrf.mxu0
      %v1868 = vadd.f32 0.0, %v1867
      %1869 = vmatmul.bf16.gmra.mxu0 %v1828
      %v1870 = vpop.f32.mrf.mxu0
      %v1871 = vadd.f32 0.0, %v1870
      %v1872 = vpop.f32.mrf.mxu0
      %v1873 = vadd.f32 0.0, %v1872
      %1874 = vmatmul.bf16.gmra.mxu0 %v1831
      %v1875 = vpop.f32.mrf.mxu0
      %v1876 = vadd.f32 0.0, %v1875
      %v1877 = vpop.f32.mrf.mxu0
      %v1878 = vadd.f32 0.0, %v1877
      %1879 = vmatmul.bf16.gmra.mxu0 %v1834
      %v1880 = vpop.f32.mrf.mxu0
      %v1881 = vadd.f32 0.0, %v1880
      %v1882 = vpop.f32.mrf.mxu0
      %v1883 = vadd.f32 0.0, %v1882
      %1884 = vmatmul.bf16.gmra.mxu0 %v1837
      %v1885 = vpop.f32.mrf.mxu0
      %v1886 = vadd.f32 0.0, %v1885
      %v1887 = vpop.f32.mrf.mxu0
      %v1888 = vadd.f32 0.0, %v1887
      %1889 = vmatmul.bf16.gmra.mxu0 %v1840
      %v1890 = vpop.f32.mrf.mxu0
      %v1891 = vadd.f32 0.0, %v1890
      %v1892 = vpop.f32.mrf.mxu0
      %v1893 = vadd.f32 0.0, %v1892
      %1894 = vmatmul.bf16.gmra.mxu0 %v1843
      %v1895 = vpop.f32.mrf.mxu0
      %v1896 = vadd.f32 0.0, %v1895
      %v1897 = vpop.f32.mrf.mxu0
      %v1898 = vadd.f32 0.0, %v1897
      %1899 = vmatmul.bf16.gmra.mxu0 %v1846
      %v1900 = vpop.f32.mrf.mxu0
      %v1901 = vpop.f32.mrf.mxu0
      %1902 = vdwg.mxu0
      %v1907 = vunpack.c.l.b16 %v1794
      %v1908 = vunpack.c.l.b16 %v1795
      %v1909 = vunpack.c.l.b16 %v1796
      %v1910 = vunpack.c.l.b16 %v1797
      %v1911 = vpack.c.b16 %v1908, %v1907
      %v1912 = vpack.c.b16 %v1910, %v1909
      %v1916 = vsel %vm1164, %v1783, 0
      %1918 = vmatpush.bf16.msra.mxu0 0
      %1919 = vmatpush.bf16.msra.mxu0 0
      %1920 = vmatpush.bf16.msra.mxu0 0
      %1921 = vmatpush.bf16.msra.mxu0 0
      %1922 = vmatpush.bf16.msra.mxu0 0
      %1923 = vmatpush.bf16.msra.mxu0 0
      %1924 = vmatpush.bf16.msra.mxu0 %v1912
      %1925 = vmatpush.bf16.msra.mxu0 %v1911
      %1926 = vmatmul.bf16.gmra.mxu0 %v1916
      %v1927 = vpop.f32.mrf.mxu0
      %v1928 = vpop.f32.mrf.mxu0
      %1929 = vmatmul.bf16.gmra.mxu0 %v1819
      %v1930 = vpop.f32.mrf.mxu0
      %v1931 = vadd.f32 %v1861, %v1930
      %v1932 = vpop.f32.mrf.mxu0
      %v1933 = vadd.f32 %v1863, %v1932
      %1934 = vmatmul.bf16.gmra.mxu0 %v1822
      %v1935 = vpop.f32.mrf.mxu0
      %v1936 = vadd.f32 %v1866, %v1935
      %v1937 = vpop.f32.mrf.mxu0
      %v1938 = vadd.f32 %v1868, %v1937
      %1939 = vmatmul.bf16.gmra.mxu0 %v1825
      %v1940 = vpop.f32.mrf.mxu0
      %v1941 = vadd.f32 %v1871, %v1940
      %v1942 = vpop.f32.mrf.mxu0
      %v1943 = vadd.f32 %v1873, %v1942
      %1944 = vmatmul.bf16.gmra.mxu0 %v1828
      %v1945 = vpop.f32.mrf.mxu0
      %v1946 = vadd.f32 %v1876, %v1945
      %v1947 = vpop.f32.mrf.mxu0
      %v1948 = vadd.f32 %v1878, %v1947
      %1949 = vmatmul.bf16.gmra.mxu0 %v1831
      %v1950 = vpop.f32.mrf.mxu0
      %v1951 = vadd.f32 %v1881, %v1950
      %v1952 = vpop.f32.mrf.mxu0
      %v1953 = vadd.f32 %v1883, %v1952
      %1954 = vmatmul.bf16.gmra.mxu0 %v1834
      %v1955 = vpop.f32.mrf.mxu0
      %v1956 = vadd.f32 %v1886, %v1955
      %v1957 = vpop.f32.mrf.mxu0
      %v1958 = vadd.f32 %v1888, %v1957
      %1959 = vmatmul.bf16.gmra.mxu0 %v1837
      %v1960 = vpop.f32.mrf.mxu0
      %v1961 = vadd.f32 %v1891, %v1960
      %v1962 = vpop.f32.mrf.mxu0
      %v1963 = vadd.f32 %v1893, %v1962
      %1964 = vmatmul.bf16.gmra.mxu0 %v1840
      %v1965 = vpop.f32.mrf.mxu0
      %v1966 = vadd.f32 %v1896, %v1965
      %v1967 = vpop.f32.mrf.mxu0
      %v1968 = vadd.f32 %v1898, %v1967
      %1969 = vmatmul.bf16.gmra.mxu0 %v1843
      %v1970 = vpop.f32.mrf.mxu0
      %v1971 = vpop.f32.mrf.mxu0
      %1972 = vdwg.mxu0
      %v1973 = vld [vmem:[#allocation2 + $0x28] sm:$0xff]
      %v1974 = vld [vmem:[#allocation2 + $0x30] sm:$0xff]
      %v1975 = vld [vmem:[#allocation2 + $0x38] sm:$0xff]
      %v1976 = vld [vmem:[#allocation2 + $0x40] sm:$0xff]
      %v1977 = vld [vmem:[#allocation2 + $0x48] sm:$0xff]
      %v1978 = vld [vmem:[#allocation2 + $0x50] sm:$0xff]
      %v1979 = vld [vmem:[#allocation2 + $0x58] sm:$0xff]
      %v1980 = vld [vmem:[#allocation2 + $0x60] sm:$0xff]
      %v1981 = vld [vmem:[#allocation2 + $0x68] sm:$0xff]
      %v1982 = vld [vmem:[#allocation2 + $0x70] sm:$0xff]
      %v1983 = vld [vmem:[#allocation2 + $0x78] sm:$0xff]
      %v1984 = vld [vmem:[#allocation2 + $0x80] sm:$0xff]
      %v1985 = vld [vmem:[#allocation2 + $0x88] sm:$0xff]
      %v1986 = vld [vmem:[#allocation2 + $0x90] sm:$0xff]
      %v1987 = vld [vmem:[#allocation2 + $0x98] sm:$0xff]
      %v1988 = vld [vmem:[#allocation2 + $0xa0] sm:$0xff]
      %v1989 = vld [vmem:[#allocation2 + $0xa8] sm:$0xff]
      %v1990 = vld [vmem:[#allocation2 + $0xb0] sm:$0xff]
      %v1991 = vld [vmem:[#allocation2 + $0xb8] sm:$0xff]
      %v1992 = vld [vmem:[#allocation2 + $0xc0] sm:$0xff]
      %v1993 = vpack.c.bf16 %v1974, %v1973
      %v1994 = vpack.c.bf16 %v1976, %v1975
      %v1995 = vpack.c.bf16 %v1978, %v1977
      %v1996 = vpack.c.bf16 %v1980, %v1979
      %v1997 = vpack.c.bf16 %v1982, %v1981
      %v1998 = vpack.c.bf16 %v1984, %v1983
      %v1999 = vpack.c.bf16 %v1986, %v1985
      %v2000 = vpack.c.bf16 %v1988, %v1987
      %v2001 = vpack.c.bf16 %v1990, %v1989
      %v2002 = vpack.c.bf16 %v1992, %v1991
      %s2003 = scalar_lea.vmem %s10, 112
      %v2004 = vld [vmem:[%s2003] sm:$0xf]
      %v2005 = vld [vmem:[%s2003 + $0x4] sm:$0xf]
      %v2006 = vld [vmem:[%s2003 + $0x8] sm:$0xf]
      %v2007 = vld [vmem:[%s2003 + $0xc] sm:$0xf]
      %v2012 = vunpack.c.l.b16 %v2004
      %v2013 = vunpack.c.l.b16 %v2005
      %v2014 = vunpack.c.l.b16 %v2006
      %v2015 = vunpack.c.l.b16 %v2007
      %v2016 = vpack.c.b16 %v2013, %v2012
      %v2017 = vpack.c.b16 %v2015, %v2014
      %v2021 = vsel %vm1164, %v1993, 0
      %v2024 = vsel %vm1164, %v1994, 0
      %v2027 = vsel %vm1164, %v1995, 0
      %v2030 = vsel %vm1164, %v1996, 0
      %v2033 = vsel %vm1164, %v1997, 0
      %v2036 = vsel %vm1164, %v1998, 0
      %v2039 = vsel %vm1164, %v1999, 0
      %v2042 = vsel %vm1164, %v2000, 0
      %v2045 = vsel %vm1164, %v2001, 0
      %v2048 = vsel %vm1164, %v2002, 0
      %2050 = vmatpush.bf16.msra.mxu0 0
      %2051 = vmatpush.bf16.msra.mxu0 0
      %2052 = vmatpush.bf16.msra.mxu0 0
      %2053 = vmatpush.bf16.msra.mxu0 0
      %2054 = vmatpush.bf16.msra.mxu0 0
      %2055 = vmatpush.bf16.msra.mxu0 0
      %2056 = vmatpush.bf16.msra.mxu0 %v2017
      %2057 = vmatpush.bf16.msra.mxu0 %v2016
      %2058 = vmatmul.bf16.gmra.mxu0 %v2021
      %v2059 = vpop.f32.mrf.mxu0
      %v2060 = vpop.f32.mrf.mxu0
      %2061 = vmatmul.bf16.gmra.mxu0 %v2024
      %v2062 = vpop.f32.mrf.mxu0
      %v2063 = vadd.f32 0.0, %v2062
      %v2064 = vpop.f32.mrf.mxu0
      %v2065 = vadd.f32 0.0, %v2064
      %2066 = vmatmul.bf16.gmra.mxu0 %v2027
      %v2067 = vpop.f32.mrf.mxu0
      %v2068 = vadd.f32 0.0, %v2067
      %v2069 = vpop.f32.mrf.mxu0
      %v2070 = vadd.f32 0.0, %v2069
      %2071 = vmatmul.bf16.gmra.mxu0 %v2030
      %v2072 = vpop.f32.mrf.mxu0
      %v2073 = vadd.f32 0.0, %v2072
      %v2074 = vpop.f32.mrf.mxu0
      %v2075 = vadd.f32 0.0, %v2074
      %2076 = vmatmul.bf16.gmra.mxu0 %v2033
      %v2077 = vpop.f32.mrf.mxu0
      %v2078 = vadd.f32 0.0, %v2077
      %v2079 = vpop.f32.mrf.mxu0
      %v2080 = vadd.f32 0.0, %v2079
      %2081 = vmatmul.bf16.gmra.mxu0 %v2036
      %v2082 = vpop.f32.mrf.mxu0
      %v2083 = vadd.f32 0.0, %v2082
      %v2084 = vpop.f32.mrf.mxu0
      %v2085 = vadd.f32 0.0, %v2084
      %2086 = vmatmul.bf16.gmra.mxu0 %v2039
      %v2087 = vpop.f32.mrf.mxu0
      %v2088 = vadd.f32 0.0, %v2087
      %v2089 = vpop.f32.mrf.mxu0
      %v2090 = vadd.f32 0.0, %v2089
      %2091 = vmatmul.bf16.gmra.mxu0 %v2042
      %v2092 = vpop.f32.mrf.mxu0
      %v2093 = vadd.f32 0.0, %v2092
      %v2094 = vpop.f32.mrf.mxu0
      %v2095 = vadd.f32 0.0, %v2094
      %2096 = vmatmul.bf16.gmra.mxu0 %v2045
      %v2097 = vpop.f32.mrf.mxu0
      %v2098 = vadd.f32 0.0, %v2097
      %v2099 = vpop.f32.mrf.mxu0
      %v2100 = vadd.f32 0.0, %v2099
      %2101 = vmatmul.bf16.gmra.mxu0 %v2048
      %v2102 = vpop.f32.mrf.mxu0
      %v2103 = vpop.f32.mrf.mxu0
      %2104 = vdwg.mxu0
      %v2105 = vadd.f32 %v1931, %v2063
      %v2106 = vadd.f32 %v1933, %v2065
      %v2107 = vadd.f32 %v1936, %v2068
      %v2108 = vadd.f32 %v1938, %v2070
      %v2109 = vadd.f32 %v1941, %v2073
      %v2110 = vadd.f32 %v1943, %v2075
      %v2111 = vadd.f32 %v1946, %v2078
      %v2112 = vadd.f32 %v1948, %v2080
      %v2113 = vadd.f32 %v1951, %v2083
      %v2114 = vadd.f32 %v1953, %v2085
      %v2115 = vadd.f32 %v1956, %v2088
      %v2116 = vadd.f32 %v1958, %v2090
      %v2117 = vadd.f32 %v1961, %v2093
      %v2118 = vadd.f32 %v1963, %v2095
      %v2119 = vadd.f32 %v1966, %v2098
      %v2120 = vadd.f32 %v1968, %v2100
      %v2121 = vld [vmem:[#allocation2 + $0x9] sm:$0xff]
      %v2122 = vld [vmem:[#allocation2 + $0x11] sm:$0xff]
      %v2123 = vld [vmem:[#allocation2 + $0x19] sm:$0xff]
      %v2124 = vld [vmem:[#allocation2 + $0x21] sm:$0xff]
      %v2125 = vld [vmem:[#allocation2 + $0x29] sm:$0xff]
      %v2126 = vld [vmem:[#allocation2 + $0x31] sm:$0xff]
      %v2127 = vld [vmem:[#allocation2 + $0x39] sm:$0xff]
      %v2128 = vld [vmem:[#allocation2 + $0x41] sm:$0xff]
      %v2129 = vld [vmem:[#allocation2 + $0x49] sm:$0xff]
      %v2130 = vld [vmem:[#allocation2 + $0x51] sm:$0xff]
      %v2131 = vld [vmem:[#allocation2 + $0x59] sm:$0xff]
      %v2132 = vld [vmem:[#allocation2 + $0x61] sm:$0xff]
      %v2133 = vld [vmem:[#allocation2 + $0x69] sm:$0xff]
      %v2134 = vld [vmem:[#allocation2 + $0x71] sm:$0xff]
      %v2135 = vld [vmem:[#allocation2 + $0x79] sm:$0xff]
      %v2136 = vld [vmem:[#allocation2 + $0x81] sm:$0xff]
      %v2137 = vld [vmem:[#allocation2 + $0x89] sm:$0xff]
      %v2138 = vld [vmem:[#allocation2 + $0x91] sm:$0xff]
      %v2139 = vld [vmem:[#allocation2 + $0x99] sm:$0xff]
      %v2140 = vld [vmem:[#allocation2 + $0xa1] sm:$0xff]
      %v2141 = vpack.c.bf16 %v2122, %v2121
      %v2142 = vpack.c.bf16 %v2124, %v2123
      %v2143 = vpack.c.bf16 %v2126, %v2125
      %v2144 = vpack.c.bf16 %v2128, %v2127
      %v2145 = vpack.c.bf16 %v2130, %v2129
      %v2146 = vpack.c.bf16 %v2132, %v2131
      %v2147 = vpack.c.bf16 %v2134, %v2133
      %v2148 = vpack.c.bf16 %v2136, %v2135
      %v2149 = vpack.c.bf16 %v2138, %v2137
      %v2150 = vpack.c.bf16 %v2140, %v2139
      %s2151 = scalar_lea.vmem %s10, 32
      %v2152 = vld [vmem:[%s2151] sm:$0xf]
      %v2153 = vld [vmem:[%s2151 + $0x4] sm:$0xf]
      %v2154 = vld [vmem:[%s2151 + $0x8] sm:$0xf]
      %v2155 = vld [vmem:[%s2151 + $0xc] sm:$0xf]
      %v2156 = vld [vmem:[#allocation2 + $0xa9] sm:$0xff]
      %v2157 = vld [vmem:[#allocation2 + $0xb1] sm:$0xff]
      %v2158 = vpack.c.bf16 %v2157, %v2156
      %s2159 = scalar_lea.vmem %s10, 80
      %v2160 = vld [vmem:[%s2159] sm:$0xf]
      %v2161 = vld [vmem:[%s2159 + $0x4] sm:$0xf]
      %v2162 = vld [vmem:[%s2159 + $0x8] sm:$0xf]
      %v2163 = vld [vmem:[%s2159 + $0xc] sm:$0xf]
      %v2168 = vunpack.c.l.b16 %v2160
      %v2169 = vunpack.c.l.b16 %v2161
      %v2170 = vunpack.c.l.b16 %v2162
      %v2171 = vunpack.c.l.b16 %v2163
      %v2172 = vpack.c.b16 %v2169, %v2168
      %v2173 = vpack.c.b16 %v2171, %v2170
      %v2177 = vsel %vm1164, %v2142, 0
      %v2180 = vsel %vm1164, %v2143, 0
      %v2183 = vsel %vm1164, %v2144, 0
      %v2186 = vsel %vm1164, %v2145, 0
      %v2189 = vsel %vm1164, %v2146, 0
      %v2192 = vsel %vm1164, %v2147, 0
      %v2195 = vsel %vm1164, %v2148, 0
      %v2198 = vsel %vm1164, %v2149, 0
      %v2201 = vsel %vm1164, %v2150, 0
      %v2204 = vsel %vm1164, %v2158, 0
      %2206 = vmatpush.bf16.msra.mxu0 0
      %2207 = vmatpush.bf16.msra.mxu0 0
      %2208 = vmatpush.bf16.msra.mxu0 0
      %2209 = vmatpush.bf16.msra.mxu0 0
      %2210 = vmatpush.bf16.msra.mxu0 0
      %2211 = vmatpush.bf16.msra.mxu0 0
      %2212 = vmatpush.bf16.msra.mxu0 %v2173
      %2213 = vmatpush.bf16.msra.mxu0 %v2172
      %2214 = vmatmul.bf16.gmra.mxu0 %v2177
      %v2215 = vpop.f32.mrf.mxu0
      %v2216 = vpop.f32.mrf.mxu0
      %2217 = vmatmul.bf16.gmra.mxu0 %v2180
      %v2218 = vpop.f32.mrf.mxu0
      %v2219 = vadd.f32 0.0, %v2218
      %v2220 = vpop.f32.mrf.mxu0
      %v2221 = vadd.f32 0.0, %v2220
      %2222 = vmatmul.bf16.gmra.mxu0 %v2183
      %v2223 = vpop.f32.mrf.mxu0
      %v2224 = vadd.f32 0.0, %v2223
      %v2225 = vpop.f32.mrf.mxu0
      %v2226 = vadd.f32 0.0, %v2225
      %2227 = vmatmul.bf16.gmra.mxu0 %v2186
      %v2228 = vpop.f32.mrf.mxu0
      %v2229 = vadd.f32 0.0, %v2228
      %v2230 = vpop.f32.mrf.mxu0
      %v2231 = vadd.f32 0.0, %v2230
      %2232 = vmatmul.bf16.gmra.mxu0 %v2189
      %v2233 = vpop.f32.mrf.mxu0
      %v2234 = vadd.f32 0.0, %v2233
      %v2235 = vpop.f32.mrf.mxu0
      %v2236 = vadd.f32 0.0, %v2235
      %2237 = vmatmul.bf16.gmra.mxu0 %v2192
      %v2238 = vpop.f32.mrf.mxu0
      %v2239 = vadd.f32 0.0, %v2238
      %v2240 = vpop.f32.mrf.mxu0
      %v2241 = vadd.f32 0.0, %v2240
      %2242 = vmatmul.bf16.gmra.mxu0 %v2195
      %v2243 = vpop.f32.mrf.mxu0
      %v2244 = vadd.f32 0.0, %v2243
      %v2245 = vpop.f32.mrf.mxu0
      %v2246 = vadd.f32 0.0, %v2245
      %2247 = vmatmul.bf16.gmra.mxu0 %v2198
      %v2248 = vpop.f32.mrf.mxu0
      %v2249 = vadd.f32 0.0, %v2248
      %v2250 = vpop.f32.mrf.mxu0
      %v2251 = vadd.f32 0.0, %v2250
      %2252 = vmatmul.bf16.gmra.mxu0 %v2201
      %v2253 = vpop.f32.mrf.mxu0
      %v2254 = vadd.f32 0.0, %v2253
      %v2255 = vpop.f32.mrf.mxu0
      %v2256 = vadd.f32 0.0, %v2255
      %2257 = vmatmul.bf16.gmra.mxu0 %v2204
      %v2258 = vpop.f32.mrf.mxu0
      %v2259 = vpop.f32.mrf.mxu0
      %2260 = vdwg.mxu0
      %v2265 = vunpack.c.l.b16 %v2152
      %v2266 = vunpack.c.l.b16 %v2153
      %v2267 = vunpack.c.l.b16 %v2154
      %v2268 = vunpack.c.l.b16 %v2155
      %v2269 = vpack.c.b16 %v2266, %v2265
      %v2270 = vpack.c.b16 %v2268, %v2267
      %v2274 = vsel %vm1164, %v2141, 0
      %2276 = vmatpush.bf16.msra.mxu0 0
      %2277 = vmatpush.bf16.msra.mxu0 0
      %2278 = vmatpush.bf16.msra.mxu0 0
      %2279 = vmatpush.bf16.msra.mxu0 0
      %2280 = vmatpush.bf16.msra.mxu0 0
      %2281 = vmatpush.bf16.msra.mxu0 0
      %2282 = vmatpush.bf16.msra.mxu0 %v2270
      %2283 = vmatpush.bf16.msra.mxu0 %v2269
      %2284 = vmatmul.bf16.gmra.mxu0 %v2274
      %v2285 = vpop.f32.mrf.mxu0
      %v2286 = vpop.f32.mrf.mxu0
      %2287 = vmatmul.bf16.gmra.mxu0 %v2177
      %v2288 = vpop.f32.mrf.mxu0
      %v2289 = vadd.f32 %v2219, %v2288
      %v2290 = vpop.f32.mrf.mxu0
      %v2291 = vadd.f32 %v2221, %v2290
      %2292 = vmatmul.bf16.gmra.mxu0 %v2180
      %v2293 = vpop.f32.mrf.mxu0
      %v2294 = vadd.f32 %v2224, %v2293
      %v2295 = vpop.f32.mrf.mxu0
      %v2296 = vadd.f32 %v2226, %v2295
      %2297 = vmatmul.bf16.gmra.mxu0 %v2183
      %v2298 = vpop.f32.mrf.mxu0
      %v2299 = vadd.f32 %v2229, %v2298
      %v2300 = vpop.f32.mrf.mxu0
      %v2301 = vadd.f32 %v2231, %v2300
      %2302 = vmatmul.bf16.gmra.mxu0 %v2186
      %v2303 = vpop.f32.mrf.mxu0
      %v2304 = vadd.f32 %v2234, %v2303
      %v2305 = vpop.f32.mrf.mxu0
      %v2306 = vadd.f32 %v2236, %v2305
      %2307 = vmatmul.bf16.gmra.mxu0 %v2189
      %v2308 = vpop.f32.mrf.mxu0
      %v2309 = vadd.f32 %v2239, %v2308
      %v2310 = vpop.f32.mrf.mxu0
      %v2311 = vadd.f32 %v2241, %v2310
      %2312 = vmatmul.bf16.gmra.mxu0 %v2192
      %v2313 = vpop.f32.mrf.mxu0
      %v2314 = vadd.f32 %v2244, %v2313
      %v2315 = vpop.f32.mrf.mxu0
      %v2316 = vadd.f32 %v2246, %v2315
      %2317 = vmatmul.bf16.gmra.mxu0 %v2195
      %v2318 = vpop.f32.mrf.mxu0
      %v2319 = vadd.f32 %v2249, %v2318
      %v2320 = vpop.f32.mrf.mxu0
      %v2321 = vadd.f32 %v2251, %v2320
      %2322 = vmatmul.bf16.gmra.mxu0 %v2198
      %v2323 = vpop.f32.mrf.mxu0
      %v2324 = vadd.f32 %v2254, %v2323
      %v2325 = vpop.f32.mrf.mxu0
      %v2326 = vadd.f32 %v2256, %v2325
      %2327 = vmatmul.bf16.gmra.mxu0 %v2201
      %v2328 = vpop.f32.mrf.mxu0
      %v2329 = vpop.f32.mrf.mxu0
      %2330 = vdwg.mxu0
      %v2331 = vld [vmem:[#allocation2 + $0x29] sm:$0xff]
      %v2332 = vld [vmem:[#allocation2 + $0x31] sm:$0xff]
      %v2333 = vld [vmem:[#allocation2 + $0x39] sm:$0xff]
      %v2334 = vld [vmem:[#allocation2 + $0x41] sm:$0xff]
      %v2335 = vld [vmem:[#allocation2 + $0x49] sm:$0xff]
      %v2336 = vld [vmem:[#allocation2 + $0x51] sm:$0xff]
      %v2337 = vld [vmem:[#allocation2 + $0x59] sm:$0xff]
      %v2338 = vld [vmem:[#allocation2 + $0x61] sm:$0xff]
      %v2339 = vld [vmem:[#allocation2 + $0x69] sm:$0xff]
      %v2340 = vld [vmem:[#allocation2 + $0x71] sm:$0xff]
      %v2341 = vld [vmem:[#allocation2 + $0x79] sm:$0xff]
      %v2342 = vld [vmem:[#allocation2 + $0x81] sm:$0xff]
      %v2343 = vld [vmem:[#allocation2 + $0x89] sm:$0xff]
      %v2344 = vld [vmem:[#allocation2 + $0x91] sm:$0xff]
      %v2345 = vld [vmem:[#allocation2 + $0x99] sm:$0xff]
      %v2346 = vld [vmem:[#allocation2 + $0xa1] sm:$0xff]
      %v2347 = vld [vmem:[#allocation2 + $0xa9] sm:$0xff]
      %v2348 = vld [vmem:[#allocation2 + $0xb1] sm:$0xff]
      %v2349 = vld [vmem:[#allocation2 + $0xb9] sm:$0xff]
      %v2350 = vld [vmem:[#allocation2 + $0xc1] sm:$0xff]
      %v2351 = vpack.c.bf16 %v2332, %v2331
      %v2352 = vpack.c.bf16 %v2334, %v2333
      %v2353 = vpack.c.bf16 %v2336, %v2335
      %v2354 = vpack.c.bf16 %v2338, %v2337
      %v2355 = vpack.c.bf16 %v2340, %v2339
      %v2356 = vpack.c.bf16 %v2342, %v2341
      %v2357 = vpack.c.bf16 %v2344, %v2343
      %v2358 = vpack.c.bf16 %v2346, %v2345
      %v2359 = vpack.c.bf16 %v2348, %v2347
      %v2360 = vpack.c.bf16 %v2350, %v2349
      %s2361 = scalar_lea.vmem %s10, 128
      %v2362 = vld [vmem:[%s2361] sm:$0xf]
      %v2363 = vld [vmem:[%s2361 + $0x4] sm:$0xf]
      %v2364 = vld [vmem:[%s2361 + $0x8] sm:$0xf]
      %v2365 = vld [vmem:[%s2361 + $0xc] sm:$0xf]
      %v2370 = vunpack.c.l.b16 %v2362
      %v2371 = vunpack.c.l.b16 %v2363
      %v2372 = vunpack.c.l.b16 %v2364
      %v2373 = vunpack.c.l.b16 %v2365
      %v2374 = vpack.c.b16 %v2371, %v2370
      %v2375 = vpack.c.b16 %v2373, %v2372
      %v2379 = vsel %vm1164, %v2351, 0
      %v2382 = vsel %vm1164, %v2352, 0
      %v2385 = vsel %vm1164, %v2353, 0
      %v2388 = vsel %vm1164, %v2354, 0
      %v2391 = vsel %vm1164, %v2355, 0
      %v2394 = vsel %vm1164, %v2356, 0
      %v2397 = vsel %vm1164, %v2357, 0
      %v2400 = vsel %vm1164, %v2358, 0
      %v2403 = vsel %vm1164, %v2359, 0
      %v2406 = vsel %vm1164, %v2360, 0
      %2408 = vmatpush.bf16.msra.mxu0 0
      %2409 = vmatpush.bf16.msra.mxu0 0
      %2410 = vmatpush.bf16.msra.mxu0 0
      %2411 = vmatpush.bf16.msra.mxu0 0
      %2412 = vmatpush.bf16.msra.mxu0 0
      %2413 = vmatpush.bf16.msra.mxu0 0
      %2414 = vmatpush.bf16.msra.mxu0 %v2375
      %2415 = vmatpush.bf16.msra.mxu0 %v2374
      %2416 = vmatmul.bf16.gmra.mxu0 %v2379
      %v2417 = vpop.f32.mrf.mxu0
      %v2418 = vpop.f32.mrf.mxu0
      %2419 = vmatmul.bf16.gmra.mxu0 %v2382
      %v2420 = vpop.f32.mrf.mxu0
      %v2421 = vadd.f32 0.0, %v2420
      %v2422 = vpop.f32.mrf.mxu0
      %v2423 = vadd.f32 0.0, %v2422
      %2424 = vmatmul.bf16.gmra.mxu0 %v2385
      %v2425 = vpop.f32.mrf.mxu0
      %v2426 = vadd.f32 0.0, %v2425
      %v2427 = vpop.f32.mrf.mxu0
      %v2428 = vadd.f32 0.0, %v2427
      %2429 = vmatmul.bf16.gmra.mxu0 %v2388
      %v2430 = vpop.f32.mrf.mxu0
      %v2431 = vadd.f32 0.0, %v2430
      %v2432 = vpop.f32.mrf.mxu0
      %v2433 = vadd.f32 0.0, %v2432
      %2434 = vmatmul.bf16.gmra.mxu0 %v2391
      %v2435 = vpop.f32.mrf.mxu0
      %v2436 = vadd.f32 0.0, %v2435
      %v2437 = vpop.f32.mrf.mxu0
      %v2438 = vadd.f32 0.0, %v2437
      %2439 = vmatmul.bf16.gmra.mxu0 %v2394
      %v2440 = vpop.f32.mrf.mxu0
      %v2441 = vadd.f32 0.0, %v2440
      %v2442 = vpop.f32.mrf.mxu0
      %v2443 = vadd.f32 0.0, %v2442
      %2444 = vmatmul.bf16.gmra.mxu0 %v2397
      %v2445 = vpop.f32.mrf.mxu0
      %v2446 = vadd.f32 0.0, %v2445
      %v2447 = vpop.f32.mrf.mxu0
      %v2448 = vadd.f32 0.0, %v2447
      %2449 = vmatmul.bf16.gmra.mxu0 %v2400
      %v2450 = vpop.f32.mrf.mxu0
      %v2451 = vadd.f32 0.0, %v2450
      %v2452 = vpop.f32.mrf.mxu0
      %v2453 = vadd.f32 0.0, %v2452
      %2454 = vmatmul.bf16.gmra.mxu0 %v2403
      %v2455 = vpop.f32.mrf.mxu0
      %v2456 = vadd.f32 0.0, %v2455
      %v2457 = vpop.f32.mrf.mxu0
      %v2458 = vadd.f32 0.0, %v2457
      %2459 = vmatmul.bf16.gmra.mxu0 %v2406
      %v2460 = vpop.f32.mrf.mxu0
      %v2461 = vpop.f32.mrf.mxu0
      %2462 = vdwg.mxu0
      %v2463 = vadd.f32 %v2289, %v2421
      %v2464 = vadd.f32 %v2291, %v2423
      %v2465 = vadd.f32 %v2294, %v2426
      %v2466 = vadd.f32 %v2296, %v2428
      %v2467 = vadd.f32 %v2299, %v2431
      %v2468 = vadd.f32 %v2301, %v2433
      %v2469 = vadd.f32 %v2304, %v2436
      %v2470 = vadd.f32 %v2306, %v2438
      %v2471 = vadd.f32 %v2309, %v2441
      %v2472 = vadd.f32 %v2311, %v2443
      %v2473 = vadd.f32 %v2314, %v2446
      %v2474 = vadd.f32 %v2316, %v2448
      %v2475 = vadd.f32 %v2319, %v2451
      %v2476 = vadd.f32 %v2321, %v2453
      %v2477 = vadd.f32 %v2324, %v2456
      %v2478 = vadd.f32 %v2326, %v2458
      %v2479 = vmul.f32 %v1100, %v1747
      %v2480 = vmul.f32 %v1101, %v1748
      %v2481 = vmul.f32 %v1102, %v1749
      %v2482 = vmul.f32 %v1103, %v1750
      %v2483 = vmul.f32 %v1104, %v1751
      %v2484 = vmul.f32 %v1105, %v1752
      %v2485 = vmul.f32 %v1106, %v1753
      %v2486 = vmul.f32 %v1107, %v1754
      %v2487 = vmul.f32 %v1108, %v1755
      %v2488 = vmul.f32 %v1109, %v1756
      %v2489 = vmul.f32 %v1110, %v1757
      %v2490 = vmul.f32 %v1111, %v1758
      %v2491 = vmul.f32 %v1112, %v1759
      %v2492 = vmul.f32 %v1113, %v1760
      %v2493 = vmul.f32 %v1114, %v1761
      %v2494 = vmul.f32 %v1115, %v1762
      %v2495 = vadd.f32 %v2105, %v2479
      %v2496 = vadd.f32 %v2106, %v2480
      %v2497 = vadd.f32 %v2107, %v2481
      %v2498 = vadd.f32 %v2108, %v2482
      %v2499 = vadd.f32 %v2109, %v2483
      %v2500 = vadd.f32 %v2110, %v2484
      %v2501 = vadd.f32 %v2111, %v2485
      %v2502 = vadd.f32 %v2112, %v2486
      %v2503 = vadd.f32 %v2113, %v2487
      %v2504 = vadd.f32 %v2114, %v2488
      %v2505 = vadd.f32 %v2115, %v2489
      %v2506 = vadd.f32 %v2116, %v2490
      %v2507 = vadd.f32 %v2117, %v2491
      %v2508 = vadd.f32 %v2118, %v2492
      %v2509 = vadd.f32 %v2119, %v2493
      %v2510 = vadd.f32 %v2120, %v2494
      %v2511 = vmul.f32 %v1148, %v2463
      %v2512 = vmul.f32 %v1149, %v2464
      %v2513 = vmul.f32 %v1150, %v2465
      %v2514 = vmul.f32 %v1151, %v2466
      %v2515 = vmul.f32 %v1152, %v2467
      %v2516 = vmul.f32 %v1153, %v2468
      %v2517 = vmul.f32 %v1154, %v2469
      %v2518 = vmul.f32 %v1155, %v2470
      %v2519 = vmul.f32 %v1156, %v2471
      %v2520 = vmul.f32 %v1157, %v2472
      %v2521 = vmul.f32 %v1158, %v2473
      %v2522 = vmul.f32 %v1159, %v2474
      %v2523 = vmul.f32 %v1160, %v2475
      %v2524 = vmul.f32 %v1161, %v2476
      %v2525 = vmul.f32 %v1162, %v2477
      %v2526 = vmul.f32 %v1163, %v2478
      %v2527 = vadd.f32 %v2495, %v2511
      %v2528 = vadd.f32 %v2496, %v2512
      %v2529 = vadd.f32 %v2497, %v2513
      %v2530 = vadd.f32 %v2498, %v2514
      %v2531 = vadd.f32 %v2499, %v2515
      %v2532 = vadd.f32 %v2500, %v2516
      %v2533 = vadd.f32 %v2501, %v2517
      %v2534 = vadd.f32 %v2502, %v2518
      %v2535 = vadd.f32 %v2503, %v2519
      %v2536 = vadd.f32 %v2504, %v2520
      %v2537 = vadd.f32 %v2505, %v2521
      %v2538 = vadd.f32 %v2506, %v2522
      %v2539 = vadd.f32 %v2507, %v2523
      %v2540 = vadd.f32 %v2508, %v2524
      %v2541 = vadd.f32 %v2509, %v2525
      %v2542 = vadd.f32 %v2510, %v2526
      %v2543 = vld [vmem:[%s11] sm:$0x1]
      %v2545 = vperm.slane %v2543, 0
      %v2547 = vmul.f32 %v2527, %v2545
      %v2548 = vmul.f32 %v2528, %v2545
      %v2549 = vmul.f32 %v2529, %v2545
      %v2550 = vmul.f32 %v2530, %v2545
      %v2551 = vmul.f32 %v2531, %v2545
      %v2552 = vmul.f32 %v2532, %v2545
      %v2553 = vmul.f32 %v2533, %v2545
      %v2554 = vmul.f32 %v2534, %v2545
      %v2555 = vmul.f32 %v2535, %v2545
      %v2556 = vmul.f32 %v2536, %v2545
      %v2557 = vmul.f32 %v2537, %v2545
      %v2558 = vmul.f32 %v2538, %v2545
      %v2559 = vmul.f32 %v2539, %v2545
      %v2560 = vmul.f32 %v2540, %v2545
      %v2561 = vmul.f32 %v2541, %v2545
      %v2562 = vmul.f32 %v2542, %v2545
      %v2563 = vld [vmem:[%s12] sm:$0x1]
      %v2565 = vperm.slane %v2563, 0
      %v2567 = vadd.f32 %v2547, %v2565
      %v2568 = vadd.f32 %v2548, %v2565
      %v2569 = vadd.f32 %v2549, %v2565
      %v2570 = vadd.f32 %v2550, %v2565
      %v2571 = vadd.f32 %v2551, %v2565
      %v2572 = vadd.f32 %v2552, %v2565
      %v2573 = vadd.f32 %v2553, %v2565
      %v2574 = vadd.f32 %v2554, %v2565
      %v2575 = vadd.f32 %v2555, %v2565
      %v2576 = vadd.f32 %v2556, %v2565
      %v2577 = vadd.f32 %v2557, %v2565
      %v2578 = vadd.f32 %v2558, %v2565
      %v2579 = vadd.f32 %v2559, %v2565
      %v2580 = vadd.f32 %v2560, %v2565
      %v2581 = vadd.f32 %v2561, %v2565
      %v2582 = vadd.f32 %v2562, %v2565
      %v2583 = vmul.f32 %v2567, 0.1
      %v2584 = vmul.f32 %v2568, 0.1
      %v2585 = vmul.f32 %v2569, 0.1
      %v2586 = vmul.f32 %v2570, 0.1
      %v2587 = vmul.f32 %v2571, 0.1
      %v2588 = vmul.f32 %v2572, 0.1
      %v2589 = vmul.f32 %v2573, 0.1
      %v2590 = vmul.f32 %v2574, 0.1
      %v2591 = vmul.f32 %v2575, 0.1
      %v2592 = vmul.f32 %v2576, 0.1
      %v2593 = vmul.f32 %v2577, 0.1
      %v2594 = vmul.f32 %v2578, 0.1
      %v2595 = vmul.f32 %v2579, 0.1
      %v2596 = vmul.f32 %v2580, 0.1
      %v2597 = vmul.f32 %v2581, 0.1
      %v2598 = vmul.f32 %v2582, 0.1
      %v2599 = vmax.f32 %v2567, %v2583
      %v2600 = vmax.f32 %v2568, %v2584
      %v2601 = vmax.f32 %v2569, %v2585
      %v2602 = vmax.f32 %v2570, %v2586
      %v2603 = vmax.f32 %v2571, %v2587
      %v2604 = vmax.f32 %v2572, %v2588
      %v2605 = vmax.f32 %v2573, %v2589
      %v2606 = vmax.f32 %v2574, %v2590
      %v2607 = vmax.f32 %v2575, %v2591
      %v2608 = vmax.f32 %v2576, %v2592
      %v2609 = vmax.f32 %v2577, %v2593
      %v2610 = vmax.f32 %v2578, %v2594
      %v2611 = vmax.f32 %v2579, %v2595
      %v2612 = vmax.f32 %v2580, %v2596
      %v2613 = vmax.f32 %v2581, %v2597
      %v2614 = vmax.f32 %v2582, %v2598
      %v2615 = vadd.f32 %v840, %v2599
      %v2616 = vadd.f32 %v841, %v2600
      %v2617 = vadd.f32 %v842, %v2601
      %v2618 = vadd.f32 %v843, %v2602
      %v2619 = vadd.f32 %v844, %v2603
      %v2620 = vadd.f32 %v845, %v2604
      %v2621 = vadd.f32 %v846, %v2605
      %v2622 = vadd.f32 %v847, %v2606
      %v2623 = vadd.f32 %v848, %v2607
      %v2624 = vadd.f32 %v849, %v2608
      %v2625 = vadd.f32 %v850, %v2609
      %v2626 = vadd.f32 %v851, %v2610
      %v2627 = vadd.f32 %v852, %v2611
      %v2628 = vadd.f32 %v853, %v2612
      %v2629 = vadd.f32 %v854, %v2613
      %v2630 = vadd.f32 %v855, %v2614
      %v2631 = vpack.c.bf16 %v2616, %v2615
      %v2632 = vpack.c.bf16 %v2618, %v2617
      %v2633 = vpack.c.bf16 %v2620, %v2619
      %v2634 = vpack.c.bf16 %v2622, %v2621
      %v2635 = vpack.c.bf16 %v2624, %v2623
      %v2636 = vpack.c.bf16 %v2626, %v2625
      %v2637 = vpack.c.bf16 %v2628, %v2627
      %v2638 = vpack.c.bf16 %v2630, %v2629
      %s2639 = sadd.s32 %s573, 16
      %s2640 = sshra.s32 %s2639, 3
      %s2641 = sand.u32 %s2639, 7
      %s2642 = smul.addr %s2640, 4
      %s2643 = scalar_lea.vmem %s561, %s2642
      %v2644 = vld [vmem:[%s2643] sm:$0xf]
      %v2645 = vld [vmem:[%s2643 + $0x4] sm:$0xf]
      %v2646 = vld [vmem:[%s2643 + $0x8] sm:$0xf]
      %v2647 = vld [vmem:[%s2643 + $0xc] sm:$0xf]
      %v2648 = vld [vmem:[%s2643 + $0x10] sm:$0xf]
      %v2649 = vld [vmem:[%s2643 + $0x14] sm:$0xf]
      %v2650 = vld [vmem:[%s2643 + $0x18] sm:$0xf]
      %v2651 = vld [vmem:[%s2643 + $0x1c] sm:$0xf]
      %v2652 = vld [vmem:[%s2643 + $0x20] sm:$0xf]
      %v2653 = vld [vmem:[%s2643 + $0x24] sm:$0xf]
      %v2654 = vld [vmem:[%s2643 + $0x28] sm:$0xf]
      %v2655 = vld [vmem:[%s2643 + $0x2c] sm:$0xf]
      %v2656 = vld [vmem:[%s2643 + $0x30] sm:$0xf]
      %v2657 = vld [vmem:[%s2643 + $0x34] sm:$0xf]
      %v2658 = vld [vmem:[%s2643 + $0x38] sm:$0xf]
      %v2659 = vld [vmem:[%s2643 + $0x3c] sm:$0xf]
      %v2660 = vld [vmem:[%s4] sm:$0xf]
      %v2661 = vld [vmem:[%s4 + $0x4] sm:$0xf]
      %v2662 = vld [vmem:[%s4 + $0x8] sm:$0xf]
      %v2663 = vld [vmem:[%s4 + $0xc] sm:$0xf]
      %v2664 = vld [vmem:[%s4 + $0x10] sm:$0xf]
      %v2665 = vld [vmem:[%s4 + $0x14] sm:$0xf]
      %v2666 = vld [vmem:[%s4 + $0x18] sm:$0xf]
      %v2667 = vld [vmem:[%s4 + $0x1c] sm:$0xf]
      %v2684 = vunpack.c.l.b16 %v2644
      %v2685 = vunpack.c.l.b16 %v2645
      %v2686 = vunpack.c.l.b16 %v2646
      %v2687 = vunpack.c.l.b16 %v2647
      %v2688 = vunpack.c.l.b16 %v2648
      %v2689 = vunpack.c.l.b16 %v2649
      %v2690 = vunpack.c.l.b16 %v2650
      %v2691 = vunpack.c.l.b16 %v2651
      %v2692 = vunpack.c.l.b16 %v2652
      %v2693 = vunpack.c.l.b16 %v2653
      %v2694 = vunpack.c.l.b16 %v2654
      %v2695 = vunpack.c.l.b16 %v2655
      %v2696 = vunpack.c.l.b16 %v2656
      %v2697 = vunpack.c.l.b16 %v2657
      %v2698 = vunpack.c.l.b16 %v2658
      %v2699 = vunpack.c.l.b16 %v2659
      %v2700 = vpack.c.b16 %v2685, %v2684
      %v2701 = vpack.c.b16 %v2687, %v2686
      %v2702 = vpack.c.b16 %v2689, %v2688
      %v2703 = vpack.c.b16 %v2691, %v2690
      %v2704 = vpack.c.b16 %v2693, %v2692
      %v2705 = vpack.c.b16 %v2695, %v2694
      %v2706 = vpack.c.b16 %v2697, %v2696
      %v2707 = vpack.c.b16 %v2699, %v2698
      %v2716 = vunpack.c.l.b16 %v2660
      %v2717 = vunpack.c.l.b16 %v2661
      %v2718 = vunpack.c.l.b16 %v2662
      %v2719 = vunpack.c.l.b16 %v2663
      %v2720 = vunpack.c.l.b16 %v2664
      %v2721 = vunpack.c.l.b16 %v2665
      %v2722 = vunpack.c.l.b16 %v2666
      %v2723 = vunpack.c.l.b16 %v2667
      %v2724 = vpack.c.b16 %v2717, %v2716
      %v2725 = vpack.c.b16 %v2719, %v2718
      %v2726 = vpack.c.b16 %v2721, %v2720
      %v2727 = vpack.c.b16 %v2723, %v2722
      %v2733 = vsel %vm680, %v2700, 0
      %v2736 = vsel %vm680, %v2701, 0
      %v2739 = vsel %vm680, %v2702, 0
      %v2742 = vsel %vm680, %v2703, 0
      %v2745 = vsel %vm680, %v2704, 0
      %v2748 = vsel %vm680, %v2705, 0
      %v2751 = vsel %vm680, %v2706, 0
      %v2754 = vsel %vm680, %v2707, 0
      %2756 = vmatpush.bf16.msra.mxu0 0
      %2757 = vmatpush.bf16.msra.mxu0 0
      %2758 = vmatpush.bf16.msra.mxu0 0
      %2759 = vmatpush.bf16.msra.mxu0 0
      %2760 = vmatpush.bf16.msra.mxu0 %v2727
      %2761 = vmatpush.bf16.msra.mxu0 %v2726
      %2762 = vmatpush.bf16.msra.mxu0 %v2725
      %2763 = vmatpush.bf16.msra.mxu0 %v2724
      %2764 = vmatmul.bf16.gmra.mxu0 %v2733
      %v2765 = vpop.f32.mrf.mxu0
      %v2766 = vadd.f32 0.0, %v2765
      %v2767 = vpop.f32.mrf.mxu0
      %v2768 = vadd.f32 0.0, %v2767
      %2769 = vmatmul.bf16.gmra.mxu0 %v2736
      %v2770 = vpop.f32.mrf.mxu0
      %v2771 = vadd.f32 0.0, %v2770
      %v2772 = vpop.f32.mrf.mxu0
      %v2773 = vadd.f32 0.0, %v2772
      %2774 = vmatmul.bf16.gmra.mxu0 %v2739
      %v2775 = vpop.f32.mrf.mxu0
      %v2776 = vadd.f32 0.0, %v2775
      %v2777 = vpop.f32.mrf.mxu0
      %v2778 = vadd.f32 0.0, %v2777
      %2779 = vmatmul.bf16.gmra.mxu0 %v2742
      %v2780 = vpop.f32.mrf.mxu0
      %v2781 = vadd.f32 0.0, %v2780
      %v2782 = vpop.f32.mrf.mxu0
      %v2783 = vadd.f32 0.0, %v2782
      %2784 = vmatmul.bf16.gmra.mxu0 %v2745
      %v2785 = vpop.f32.mrf.mxu0
      %v2786 = vadd.f32 0.0, %v2785
      %v2787 = vpop.f32.mrf.mxu0
      %v2788 = vadd.f32 0.0, %v2787
      %2789 = vmatmul.bf16.gmra.mxu0 %v2748
      %v2790 = vpop.f32.mrf.mxu0
      %v2791 = vadd.f32 0.0, %v2790
      %v2792 = vpop.f32.mrf.mxu0
      %v2793 = vadd.f32 0.0, %v2792
      %2794 = vmatmul.bf16.gmra.mxu0 %v2751
      %v2795 = vpop.f32.mrf.mxu0
      %v2796 = vadd.f32 0.0, %v2795
      %v2797 = vpop.f32.mrf.mxu0
      %v2798 = vadd.f32 0.0, %v2797
      %2799 = vmatmul.bf16.gmra.mxu0 %v2754
      %v2800 = vpop.f32.mrf.mxu0
      %v2801 = vadd.f32 0.0, %v2800
      %v2802 = vpop.f32.mrf.mxu0
      %v2803 = vadd.f32 0.0, %v2802
      %2804 = vdwg.mxu0
      %v2805 = vld [vmem:[%s5] sm:$0x1]
      %v2807 = vperm.slane %v2805, 0
      %v2809 = vmul.f32 %v2766, %v2807
      %v2810 = vmul.f32 %v2768, %v2807
      %v2811 = vmul.f32 %v2771, %v2807
      %v2812 = vmul.f32 %v2773, %v2807
      %v2813 = vmul.f32 %v2776, %v2807
      %v2814 = vmul.f32 %v2778, %v2807
      %v2815 = vmul.f32 %v2781, %v2807
      %v2816 = vmul.f32 %v2783, %v2807
      %v2817 = vmul.f32 %v2786, %v2807
      %v2818 = vmul.f32 %v2788, %v2807
      %v2819 = vmul.f32 %v2791, %v2807
      %v2820 = vmul.f32 %v2793, %v2807
      %v2821 = vmul.f32 %v2796, %v2807
      %v2822 = vmul.f32 %v2798, %v2807
      %v2823 = vmul.f32 %v2801, %v2807
      %v2824 = vmul.f32 %v2803, %v2807
      %v2825 = vld [vmem:[%s6] sm:$0x1]
      %v2827 = vperm.slane %v2825, 0
      %v2829 = vadd.f32 %v2809, %v2827
      %v2830 = vadd.f32 %v2810, %v2827
      %v2831 = vadd.f32 %v2811, %v2827
      %v2832 = vadd.f32 %v2812, %v2827
      %v2833 = vadd.f32 %v2813, %v2827
      %v2834 = vadd.f32 %v2814, %v2827
      %v2835 = vadd.f32 %v2815, %v2827
      %v2836 = vadd.f32 %v2816, %v2827
      %v2837 = vadd.f32 %v2817, %v2827
      %v2838 = vadd.f32 %v2818, %v2827
      %v2839 = vadd.f32 %v2819, %v2827
      %v2840 = vadd.f32 %v2820, %v2827
      %v2841 = vadd.f32 %v2821, %v2827
      %v2842 = vadd.f32 %v2822, %v2827
      %v2843 = vadd.f32 %v2823, %v2827
      %v2844 = vadd.f32 %v2824, %v2827
      %v2845 = vmul.f32 %v2829, 0.1
      %v2846 = vmul.f32 %v2830, 0.1
      %v2847 = vmul.f32 %v2831, 0.1
      %v2848 = vmul.f32 %v2832, 0.1
      %v2849 = vmul.f32 %v2833, 0.1
      %v2850 = vmul.f32 %v2834, 0.1
      %v2851 = vmul.f32 %v2835, 0.1
      %v2852 = vmul.f32 %v2836, 0.1
      %v2853 = vmul.f32 %v2837, 0.1
      %v2854 = vmul.f32 %v2838, 0.1
      %v2855 = vmul.f32 %v2839, 0.1
      %v2856 = vmul.f32 %v2840, 0.1
      %v2857 = vmul.f32 %v2841, 0.1
      %v2858 = vmul.f32 %v2842, 0.1
      %v2859 = vmul.f32 %v2843, 0.1
      %v2860 = vmul.f32 %v2844, 0.1
      %v2861 = vmax.f32 %v2829, %v2845
      %v2862 = vmax.f32 %v2830, %v2846
      %v2863 = vmax.f32 %v2831, %v2847
      %v2864 = vmax.f32 %v2832, %v2848
      %v2865 = vmax.f32 %v2833, %v2849
      %v2866 = vmax.f32 %v2834, %v2850
      %v2867 = vmax.f32 %v2835, %v2851
      %v2868 = vmax.f32 %v2836, %v2852
      %v2869 = vmax.f32 %v2837, %v2853
      %v2870 = vmax.f32 %v2838, %v2854
      %v2871 = vmax.f32 %v2839, %v2855
      %v2872 = vmax.f32 %v2840, %v2856
      %v2873 = vmax.f32 %v2841, %v2857
      %v2874 = vmax.f32 %v2842, %v2858
      %v2875 = vmax.f32 %v2843, %v2859
      %v2876 = vmax.f32 %v2844, %v2860
      %v2877 = vpack.c.bf16 %v2862, %v2861
      %v2878 = vpack.c.bf16 %v2864, %v2863
      %v2879 = vpack.c.bf16 %v2866, %v2865
      %v2880 = vpack.c.bf16 %v2868, %v2867
      %v2881 = vpack.c.bf16 %v2870, %v2869
      %v2882 = vpack.c.bf16 %v2872, %v2871
      %v2883 = vpack.c.bf16 %v2874, %v2873
      %v2884 = vpack.c.bf16 %v2876, %v2875
      %v2885 = vld [vmem:[%s13] sm:$0xf]
      %v2886 = vld [vmem:[%s13 + $0x4] sm:$0xf]
      %v2887 = vld [vmem:[%s13 + $0x8] sm:$0xf]
      %v2888 = vld [vmem:[%s13 + $0xc] sm:$0xf]
      %v2889 = vld [vmem:[%s14] sm:$0xf]
      %v2890 = vld [vmem:[%s14 + $0x4] sm:$0xf]
      %v2891 = vld [vmem:[%s14 + $0x8] sm:$0xf]
      %v2892 = vld [vmem:[%s14 + $0xc] sm:$0xf]
      %v2897 = vunpack.c.l.b16 %v2889
      %v2898 = vunpack.c.l.b16 %v2890
      %v2899 = vunpack.c.l.b16 %v2891
      %v2900 = vunpack.c.l.b16 %v2892
      %v2901 = vpack.c.b16 %v2898, %v2897
      %v2902 = vpack.c.b16 %v2900, %v2899
      %v2906 = vsel %vm1164, %v2877, 0
      %v2909 = vsel %vm1164, %v2878, 0
      %v2912 = vsel %vm1164, %v2879, 0
      %v2915 = vsel %vm1164, %v2880, 0
      %v2918 = vsel %vm1164, %v2881, 0
      %v2921 = vsel %vm1164, %v2882, 0
      %v2924 = vsel %vm1164, %v2883, 0
      %v2927 = vsel %vm1164, %v2884, 0
      %2929 = vmatpush.bf16.msra.mxu0 0
      %2930 = vmatpush.bf16.msra.mxu0 0
      %2931 = vmatpush.bf16.msra.mxu0 0
      %2932 = vmatpush.bf16.msra.mxu0 0
      %2933 = vmatpush.bf16.msra.mxu0 0
      %2934 = vmatpush.bf16.msra.mxu0 0
      %2935 = vmatpush.bf16.msra.mxu0 %v2902
      %2936 = vmatpush.bf16.msra.mxu0 %v2901
      %2937 = vmatmul.bf16.gmra.mxu0 %v2906
      %v2938 = vpop.f32.mrf.mxu0
      %v2939 = vadd.f32 0.0, %v2938
      %v2940 = vpop.f32.mrf.mxu0
      %v2941 = vadd.f32 0.0, %v2940
      %2942 = vmatmul.bf16.gmra.mxu0 %v2909
      %v2943 = vpop.f32.mrf.mxu0
      %v2944 = vadd.f32 0.0, %v2943
      %v2945 = vpop.f32.mrf.mxu0
      %v2946 = vadd.f32 0.0, %v2945
      %2947 = vmatmul.bf16.gmra.mxu0 %v2912
      %v2948 = vpop.f32.mrf.mxu0
      %v2949 = vadd.f32 0.0, %v2948
      %v2950 = vpop.f32.mrf.mxu0
      %v2951 = vadd.f32 0.0, %v2950
      %2952 = vmatmul.bf16.gmra.mxu0 %v2915
      %v2953 = vpop.f32.mrf.mxu0
      %v2954 = vadd.f32 0.0, %v2953
      %v2955 = vpop.f32.mrf.mxu0
      %v2956 = vadd.f32 0.0, %v2955
      %2957 = vmatmul.bf16.gmra.mxu0 %v2918
      %v2958 = vpop.f32.mrf.mxu0
      %v2959 = vadd.f32 0.0, %v2958
      %v2960 = vpop.f32.mrf.mxu0
      %v2961 = vadd.f32 0.0, %v2960
      %2962 = vmatmul.bf16.gmra.mxu0 %v2921
      %v2963 = vpop.f32.mrf.mxu0
      %v2964 = vadd.f32 0.0, %v2963
      %v2965 = vpop.f32.mrf.mxu0
      %v2966 = vadd.f32 0.0, %v2965
      %2967 = vmatmul.bf16.gmra.mxu0 %v2924
      %v2968 = vpop.f32.mrf.mxu0
      %v2969 = vadd.f32 0.0, %v2968
      %v2970 = vpop.f32.mrf.mxu0
      %v2971 = vadd.f32 0.0, %v2970
      %2972 = vmatmul.bf16.gmra.mxu0 %v2927
      %v2973 = vpop.f32.mrf.mxu0
      %v2974 = vadd.f32 0.0, %v2973
      %v2975 = vpop.f32.mrf.mxu0
      %v2976 = vadd.f32 0.0, %v2975
      %2977 = vdwg.mxu0
      %v2982 = vunpack.c.l.b16 %v2885
      %v2983 = vunpack.c.l.b16 %v2886
      %v2984 = vunpack.c.l.b16 %v2887
      %v2985 = vunpack.c.l.b16 %v2888
      %v2986 = vpack.c.b16 %v2983, %v2982
      %v2987 = vpack.c.b16 %v2985, %v2984
      %v2991 = vsel %vm1164, %v2631, 0
      %v2994 = vsel %vm1164, %v2632, 0
      %v2997 = vsel %vm1164, %v2633, 0
      %v3000 = vsel %vm1164, %v2634, 0
      %v3003 = vsel %vm1164, %v2635, 0
      %v3006 = vsel %vm1164, %v2636, 0
      %v3009 = vsel %vm1164, %v2637, 0
      %v3012 = vsel %vm1164, %v2638, 0
      %3014 = vmatpush.bf16.msra.mxu0 0
      %3015 = vmatpush.bf16.msra.mxu0 0
      %3016 = vmatpush.bf16.msra.mxu0 0
      %3017 = vmatpush.bf16.msra.mxu0 0
      %3018 = vmatpush.bf16.msra.mxu0 0
      %3019 = vmatpush.bf16.msra.mxu0 0
      %3020 = vmatpush.bf16.msra.mxu0 %v2987
      %3021 = vmatpush.bf16.msra.mxu0 %v2986
      %3022 = vmatmul.bf16.gmra.mxu0 %v2991
      %v3023 = vpop.f32.mrf.mxu0
      %v3024 = vadd.f32 %v2939, %v3023
      %v3025 = vpop.f32.mrf.mxu0
      %v3026 = vadd.f32 %v2941, %v3025
      %3027 = vmatmul.bf16.gmra.mxu0 %v2994
      %v3028 = vpop.f32.mrf.mxu0
      %v3029 = vadd.f32 %v2944, %v3028
      %v3030 = vpop.f32.mrf.mxu0
      %v3031 = vadd.f32 %v2946, %v3030
      %3032 = vmatmul.bf16.gmra.mxu0 %v2997
      %v3033 = vpop.f32.mrf.mxu0
      %v3034 = vadd.f32 %v2949, %v3033
      %v3035 = vpop.f32.mrf.mxu0
      %v3036 = vadd.f32 %v2951, %v3035
      %3037 = vmatmul.bf16.gmra.mxu0 %v3000
      %v3038 = vpop.f32.mrf.mxu0
      %v3039 = vadd.f32 %v2954, %v3038
      %v3040 = vpop.f32.mrf.mxu0
      %v3041 = vadd.f32 %v2956, %v3040
      %3042 = vmatmul.bf16.gmra.mxu0 %v3003
      %v3043 = vpop.f32.mrf.mxu0
      %v3044 = vadd.f32 %v2959, %v3043
      %v3045 = vpop.f32.mrf.mxu0
      %v3046 = vadd.f32 %v2961, %v3045
      %3047 = vmatmul.bf16.gmra.mxu0 %v3006
      %v3048 = vpop.f32.mrf.mxu0
      %v3049 = vadd.f32 %v2964, %v3048
      %v3050 = vpop.f32.mrf.mxu0
      %v3051 = vadd.f32 %v2966, %v3050
      %3052 = vmatmul.bf16.gmra.mxu0 %v3009
      %v3053 = vpop.f32.mrf.mxu0
      %v3054 = vadd.f32 %v2969, %v3053
      %v3055 = vpop.f32.mrf.mxu0
      %v3056 = vadd.f32 %v2971, %v3055
      %3057 = vmatmul.bf16.gmra.mxu0 %v3012
      %v3058 = vpop.f32.mrf.mxu0
      %v3059 = vadd.f32 %v2974, %v3058
      %v3060 = vpop.f32.mrf.mxu0
      %v3061 = vadd.f32 %v2976, %v3060
      %3062 = vdwg.mxu0
      %v3063 = vld [vmem:[%s15] sm:$0x1]
      %v3065 = vperm.slane %v3063, 0
      %v3067 = vmul.f32 %v3024, %v3065
      %v3068 = vmul.f32 %v3026, %v3065
      %v3069 = vmul.f32 %v3029, %v3065
      %v3070 = vmul.f32 %v3031, %v3065
      %v3071 = vmul.f32 %v3034, %v3065
      %v3072 = vmul.f32 %v3036, %v3065
      %v3073 = vmul.f32 %v3039, %v3065
      %v3074 = vmul.f32 %v3041, %v3065
      %v3075 = vmul.f32 %v3044, %v3065
      %v3076 = vmul.f32 %v3046, %v3065
      %v3077 = vmul.f32 %v3049, %v3065
      %v3078 = vmul.f32 %v3051, %v3065
      %v3079 = vmul.f32 %v3054, %v3065
      %v3080 = vmul.f32 %v3056, %v3065
      %v3081 = vmul.f32 %v3059, %v3065
      %v3082 = vmul.f32 %v3061, %v3065
      %v3083 = vld [vmem:[%s16] sm:$0x1]
      %v3085 = vperm.slane %v3083, 0
      %v3087 = vadd.f32 %v3067, %v3085
      %v3088 = vadd.f32 %v3068, %v3085
      %v3089 = vadd.f32 %v3069, %v3085
      %v3090 = vadd.f32 %v3070, %v3085
      %v3091 = vadd.f32 %v3071, %v3085
      %v3092 = vadd.f32 %v3072, %v3085
      %v3093 = vadd.f32 %v3073, %v3085
      %v3094 = vadd.f32 %v3074, %v3085
      %v3095 = vadd.f32 %v3075, %v3085
      %v3096 = vadd.f32 %v3076, %v3085
      %v3097 = vadd.f32 %v3077, %v3085
      %v3098 = vadd.f32 %v3078, %v3085
      %v3099 = vadd.f32 %v3079, %v3085
      %v3100 = vadd.f32 %v3080, %v3085
      %v3101 = vadd.f32 %v3081, %v3085
      %v3102 = vadd.f32 %v3082, %v3085
      %v3103 = vmul.f32 %v3087, 0.1
      %v3104 = vmul.f32 %v3088, 0.1
      %v3105 = vmul.f32 %v3089, 0.1
      %v3106 = vmul.f32 %v3090, 0.1
      %v3107 = vmul.f32 %v3091, 0.1
      %v3108 = vmul.f32 %v3092, 0.1
      %v3109 = vmul.f32 %v3093, 0.1
      %v3110 = vmul.f32 %v3094, 0.1
      %v3111 = vmul.f32 %v3095, 0.1
      %v3112 = vmul.f32 %v3096, 0.1
      %v3113 = vmul.f32 %v3097, 0.1
      %v3114 = vmul.f32 %v3098, 0.1
      %v3115 = vmul.f32 %v3099, 0.1
      %v3116 = vmul.f32 %v3100, 0.1
      %v3117 = vmul.f32 %v3101, 0.1
      %v3118 = vmul.f32 %v3102, 0.1
      %v3119 = vmax.f32 %v3087, %v3103
      %v3120 = vmax.f32 %v3088, %v3104
      %v3121 = vmax.f32 %v3089, %v3105
      %v3122 = vmax.f32 %v3090, %v3106
      %v3123 = vmax.f32 %v3091, %v3107
      %v3124 = vmax.f32 %v3092, %v3108
      %v3125 = vmax.f32 %v3093, %v3109
      %v3126 = vmax.f32 %v3094, %v3110
      %v3127 = vmax.f32 %v3095, %v3111
      %v3128 = vmax.f32 %v3096, %v3112
      %v3129 = vmax.f32 %v3097, %v3113
      %v3130 = vmax.f32 %v3098, %v3114
      %v3131 = vmax.f32 %v3099, %v3115
      %v3132 = vmax.f32 %v3100, %v3116
      %v3133 = vmax.f32 %v3101, %v3117
      %v3134 = vmax.f32 %v3102, %v3118
      %3135 = vst.msk [vmem:[%s570] sm:$0xff] %vm680, %v3119
      %3136 = vst.msk [vmem:[%s570 + $0x8] sm:$0xff] %vm680, %v3120
      %3137 = vst.msk [vmem:[%s570 + $0x10] sm:$0xff] %vm680, %v3121
      %3138 = vst.msk [vmem:[%s570 + $0x18] sm:$0xff] %vm680, %v3122
      %3139 = vst.msk [vmem:[%s570 + $0x20] sm:$0xff] %vm680, %v3123
      %3140 = vst.msk [vmem:[%s570 + $0x28] sm:$0xff] %vm680, %v3124
      %3141 = vst.msk [vmem:[%s570 + $0x30] sm:$0xff] %vm680, %v3125
      %3142 = vst.msk [vmem:[%s570 + $0x38] sm:$0xff] %vm680, %v3126
      %3143 = vst.msk [vmem:[%s570 + $0x40] sm:$0xff] %vm680, %v3127
      %3144 = vst.msk [vmem:[%s570 + $0x48] sm:$0xff] %vm680, %v3128
      %3145 = vst.msk [vmem:[%s570 + $0x50] sm:$0xff] %vm680, %v3129
      %3146 = vst.msk [vmem:[%s570 + $0x58] sm:$0xff] %vm680, %v3130
      %3147 = vst.msk [vmem:[%s570 + $0x60] sm:$0xff] %vm680, %v3131
      %3148 = vst.msk [vmem:[%s570 + $0x68] sm:$0xff] %vm680, %v3132
      %3149 = vst.msk [vmem:[%s570 + $0x70] sm:$0xff] %vm680, %v3133
      %3150 = vst.msk [vmem:[%s570 + $0x78] sm:$0xff] %vm680, %v3134
      %s3151 = smul.u32 16, %s33
      %p3152 = scmp.lt.s32.totalorder %s32, 1
      %s3153 = scalar_select %p3152, %s32, 1
      %p3154 = scmp.lt.s32.totalorder %s3151, 31
      %s3155 = scalar_select %p3154, %s3151, 31
      %s3156 = smul.addr %s3153, 32
      %s3157 = sadd.s32 %s3155, %s3156
      %s3158 = smul.addr %s3157, 8
      %s3159 = scalar_lea.vmem %s17, %s3158
      // Predicated region
      $region97: #{tpu_custom_call.1} parent=87 // pred_check
        %p3160 = pneg %p422
      $region98: #{tpu_custom_call.1} parent=87 // pred_check_branch
        %3162 = sbr.rel (%p3160) target = $region100
      $region99: #{tpu_custom_call.1} parent=87 // pred_region
        %s3163 = smul.u32 16, %s33
      $region100: #{tpu_custom_call.1} parent=87 // pred_fallthru
        _
    $region88: #{tpu_custom_call.1} parent=5 // pred_fallthru
      _
    %p3164 = scmp.le.s32.totalorder 2, %s23
    // Predicated region
    $region101: #{tpu_custom_call.1} parent=5 // pred_check
      %p3165 = pneg %p3164
    $region102: #{tpu_custom_call.1} parent=5 // pred_check_branch
      %3167 = sbr.rel (%p3165) target = $region104
    $region103: #{tpu_custom_call.1} parent=5 // pred_region
      %s3168 = ssub.s32 %s23, 2
      // Predicated region
      $region105: #{tpu_custom_call.1} parent=103 // pred_check
        %p3169 = pneg %p428
      $region106: #{tpu_custom_call.1} parent=103 // pred_check_branch
        %3171 = sbr.rel (%p3169) target = $region108
      $region107: #{tpu_custom_call.1} parent=103 // pred_region
        %s3172 = smul.u32 16, %s35
        %p3173 = scmp.lt.s32.totalorder %s34, 1
        %s3174 = scalar_select %p3173, %s34, 1
        %p3175 = scmp.lt.s32.totalorder %s3172, 31
        %s3176 = scalar_select %p3175, %s3172, 31
        %s3177 = smul.addr %s3174, 32
        %s3178 = sadd.s32 %s3176, %s3177
        %s3179 = smul.addr %s3178, 8
        %s3180 = scalar_lea.vmem %s17, %s3179
      $region108: #{tpu_custom_call.1} parent=103 // pred_fallthru
        _
    $region104: #{tpu_custom_call.1} parent=5 // pred_fallthru
      _
  $region6: #{tpu_custom_call.1} parent=0 // loop_footer
    %s27 = sadd.s32 1, %s23
  $region7: #{tpu_custom_call.1} parent=0 // loop_footer_branch
    %22 = sbr.rel target = $region3
  $region8: #{tpu_custom_call.1} parent=0 // loop_exit
    _

</llo_original>
